<compile_context>
chip_gen: v7x
topology: tpu7x:2x2x1
jax: 0.10.0
libtpu: 0.0.40
codegen_flags: <defaults>
</compile_context>

<pallas_src>
import jax
import jax.numpy as jnp
import numpy as np
from jax.experimental import pallas as pl
from jax.experimental.pallas import tpu as pltpu


# ----------------------------------------------------------------------------
# Small helpers.
# ----------------------------------------------------------------------------
def _round_up(a, b):
    return -(-a // b) * b


def _padded_vmem_bytes(shape, itemsize):
    """VMEM footprint of one buffer with (sublane, lane) tile padding."""
    dims = list(shape)
    dims[-1] = _round_up(dims[-1], 128)
    if len(dims) >= 2:
        dims[-2] = _round_up(dims[-2], 8 * (4 // itemsize))
    n = 1
    for d in dims:
        n *= d
    return n * itemsize


def _vmem_limit_bytes(double_buffered, single_buffered):
    """Return an explicit vmem_limit_bytes only when the default may not fit."""
    est = sum(2 * _padded_vmem_bytes(s, i) for s, i in double_buffered)
    est += sum(_padded_vmem_bytes(s, i) for s, i in single_buffered)
    est = int(1.5 * est) + (2 << 20)
    if est <= 12 * (1 << 20):        # fits every chip's scoped default
        return None
    return min(est, 64 * (1 << 20))  # cap: v7x physical VMEM is 64 MiB


def _choose_row_tile(Ho, Wo, cap_rows=512):
    """Largest TR | Ho with (TR*Wo, t_cout) stores sublane-aligned
    (TR*Wo % 8 == 0 or the block covers the full Ho*Wo dim) and TR*Wo <= cap."""
    divisors = [d for d in range(1, Ho + 1) if Ho % d == 0]
    valid = [d for d in divisors if (d * Wo) % 8 == 0 or d == Ho]
    fitting = [d for d in valid if d * Wo <= cap_rows]
    return max(fitting) if fitting else min(valid)


# ----------------------------------------------------------------------------
# Fused Conv2d (+optional bias, +LeakyReLU) kernel.
#
# The wrapper presents the activation as a zero-padded, space-to-depth
# rearranged bf16 tensor xs of shape (N, Hs, Ws, Cs=s*s*C), so that every conv
# tap is a unit-stride window of xs.  The kernel does one bf16 MXU matmul per
# tap with f32 accumulation in a VMEM scratch.
# ----------------------------------------------------------------------------
def _make_conv_kernel(*, taps, TR, Wo, Cs, alpha, has_bias):
    ntaps = len(taps)

    def kernel(*refs):
        x_ref = refs[0]                              # (Hs, Ws, Cs)        bf16
        w_ref = refs[1]                              # (ntaps, Cs, t_cout) bf16
        b_ref = refs[2] if has_bias else None        # (1, t_cout)         f32
        o_ref = refs[3 if has_bias else 2]           # (TR*Wo, t_cout)     bf16
        p_ref = refs[-2]                             # (ntaps, TR*Wo, Cs)  bf16
        acc_ref = refs[-1]                           # (TR*Wo, t_cout)     f32

        r = pl.program_id(1)
        j = pl.program_id(2)
        oh0 = r * TR

        # Rebuild tap windows only when (batch, row-block) changes; the cout
        # tile axis (innermost, "arbitrary") reuses them.
        @pl.when(j == 0)
        def _build_patches():
            for t, (oi, oj) in enumerate(taps):
                win = x_ref[pl.ds(oh0 + oi, TR), pl.ds(oj, Wo), :]  # (TR,Wo,Cs)
                p_ref[t] = win.reshape(TR * Wo, Cs)

        # Per-tap accumulated matmuls (no lane-axis concat), f32 accumulation.
        acc_ref[...] = jnp.dot(p_ref[0], w_ref[0],
                               preferred_element_type=jnp.float32)
        for t in range(1, ntaps):
            acc_ref[...] += jnp.dot(p_ref[t], w_ref[t],
                                    preferred_element_type=jnp.float32)

        acc = acc_ref[...]
        if has_bias:
            acc = acc + b_ref[...]
        acc = jnp.where(acc >= 0.0, acc, jnp.float32(alpha) * acc)
        o_ref[...] = acc.astype(o_ref.dtype)

    return kernel


def conv2d_pallas(x_nhwc, w_hwio, bias, *, stride, pad, alpha):
    """x: (N,H,W,C) bf16, w: (kh,kw,Cin,Cout) f32, bias: (Cout,) f32 or None."""
    N, H, W, C = x_nhwc.shape
    kh, kw, cin, cout = w_hwio.shape
    assert cin == C
    s = stride
    Hp, Wp = H + 2 * pad, W + 2 * pad
    assert Hp % s == 0 and Wp % s == 0 and kh % s == 0 and kw % s == 0
    Hs, Ws, Cs = Hp // s, Wp // s, s * s * C
    khs, kws = kh // s, kw // s
    Ho, Wo = Hs - khs + 1, Ws - kws + 1
    taps = [(oi, oj) for oi in range(khs) for oj in range(kws)]
    ntaps = len(taps)

    # bf16 layout glue: zero-pad + space-to-depth
    #   xs[n,i,j,(di,dj,c)] = xpad[n, i*s+di, j*s+dj, c]
    xb = x_nhwc.astype(jnp.bfloat16)
    xp = jnp.pad(xb, ((0, 0), (pad, pad), (pad, pad), (0, 0)))
    xs = (xp.reshape(N, Hs, s, Ws, s, C)
            .transpose(0, 1, 3, 2, 4, 5)
            .reshape(N, Hs, Ws, Cs))
    # TODO(synk): emit the previous layer's output directly in this s2d layout
    # so the activation is not re-read/re-written by XLA between pallas_calls.

    # Weights -> per-tap (ntaps, Cs, coutP), feature order [di, dj, c] per tap,
    # cout lane-padded to a multiple of 128 for dense stores; bf16 MXU operand.
    coutP = 128 * pl.cdiv(cout, 128)
    w_taps = (w_hwio.reshape(khs, s, kws, s, C, cout)
                    .transpose(0, 2, 1, 3, 4, 5)
                    .reshape(ntaps, Cs, cout))
    w_taps = jnp.pad(w_taps, ((0, 0), (0, 0), (0, coutP - cout))
                     ).astype(jnp.bfloat16)

    t_cout = 256 if coutP % 256 == 0 else 128
    J = coutP // t_cout
    TR = _choose_row_tile(Ho, Wo)
    R = Ho // TR
    has_bias = bias is not None

    grid = (N, R, J)
    in_specs = [
        pl.BlockSpec((pl.Squeezed(), Hs, Ws, Cs), lambda n, r, j: (n, 0, 0, 0)),
        pl.BlockSpec((ntaps, Cs, t_cout), lambda n, r, j: (0, 0, j)),
    ]
    operands = [xs, w_taps]
    if has_bias:
        b_pad = jnp.pad(bias.astype(jnp.float32),
                        (0, coutP - cout)).reshape(1, coutP)
        in_specs.append(pl.BlockSpec((1, t_cout), lambda n, r, j: (0, j)))
        operands.append(b_pad)

    out_specs = pl.BlockSpec((pl.Squeezed(), TR * Wo, t_cout),
                             lambda n, r, j: (n, r, j))
    out_shape = jax.ShapeDtypeStruct((N, Ho * Wo, coutP), jnp.bfloat16)

    scratch_shapes = [pltpu.VMEM((ntaps, TR * Wo, Cs), jnp.bfloat16),
                      pltpu.VMEM((TR * Wo, t_cout), jnp.float32)]

    kernel = _make_conv_kernel(taps=taps, TR=TR, Wo=Wo, Cs=Cs,
                               alpha=alpha, has_bias=has_bias)

    flops = 2 * N * Ho * Wo * kh * kw * C * cout        # real (unpadded) work
    bytes_accessed = (xs.size * 2 + w_taps.size * 2
                      + N * Ho * Wo * coutP * 2
                      + (coutP * 4 if has_bias else 0))

    dbuf = [((Hs, Ws, Cs), 2), ((ntaps, Cs, t_cout), 2), ((TR * Wo, t_cout), 2)]
    if has_bias:
        dbuf.append(((1, t_cout), 4))
    sbuf = [((ntaps, TR * Wo, Cs), 2), ((TR * Wo, t_cout), 4)]
    vmem_limit = _vmem_limit_bytes(dbuf, sbuf)

    out = pl.pallas_call(
        kernel,
        grid=grid,
        in_specs=in_specs,
        out_specs=out_specs,
        out_shape=out_shape,
        scratch_shapes=scratch_shapes,
        compiler_params=pltpu.CompilerParams(
            dimension_semantics=("parallel", "parallel", "arbitrary"),
            vmem_limit_bytes=vmem_limit),
        cost_estimate=pl.CostEstimate(flops=flops, transcendentals=0,
                                      bytes_accessed=bytes_accessed),
    )(*operands)

    return out[:, :, :cout].reshape(N, Ho, Wo, cout)


# ----------------------------------------------------------------------------
# Fused heads: dis_top (3x3, s1, p1) + aus_top (k=final spatial, s1, p0) in one
# pallas_call; per-tap accumulated dots, outputs padded to 128 lanes.
# ----------------------------------------------------------------------------
def _make_heads_kernel(*, Hf, Wf, Cf, kf):
    def kernel(x_ref, wd_ref, wa_ref, om_ref, oa_ref):
        # dis_top: 3x3 conv over the zero-padded activation (Hf+2, Wf+2, Cf).
        acc_d = None
        for oi in range(3):
            for oj in range(3):
                t = oi * 3 + oj
                win = x_ref[oi:oi + Hf, oj:oj + Wf, :].reshape(Hf * Wf, Cf)
                part = jnp.dot(win, wd_ref[t],
                               preferred_element_type=jnp.float32)
                acc_d = part if acc_d is None else acc_d + part
        om_ref[...] = acc_d

        # aus_top: full-spatial conv -> single output pixel, accumulated
        # per-tap M=1 dots over the interior (no kf*kf lane concat).
        acc_a = None
        for i in range(kf):
            for jj in range(kf):
                t = i * kf + jj
                row = x_ref[1 + i, 1 + jj:2 + jj, :]            # (1, Cf)
                part = jnp.dot(row, wa_ref[t],
                               preferred_element_type=jnp.float32)
                acc_a = part if acc_a is None else acc_a + part
        oa_ref[...] = acc_a

    return kernel


def heads_pallas(x_nhwc, w_dis, w_aus):
    N, Hf, Wf, Cf = x_nhwc.shape
    kd = w_dis.shape[0]
    kf = w_aus.shape[0]
    assert kd == 3 and kf == Hf == Wf
    n_dis, n_aus = w_dis.shape[-1], w_aus.shape[-1]
    CP = 128 * pl.cdiv(max(n_dis, n_aus), 128)      # lane-dense padded cout

    xp = jnp.pad(x_nhwc.astype(jnp.bfloat16),
                 ((0, 0), (1, 1), (1, 1), (0, 0)))
    wd = jnp.pad(w_dis.reshape(kd * kd, Cf, n_dis),
                 ((0, 0), (0, 0), (0, CP - n_dis))).astype(jnp.bfloat16)
    wa = jnp.pad(w_aus.reshape(kf * kf, Cf, n_aus),
                 ((0, 0), (0, 0), (0, CP - n_aus))).astype(jnp.bfloat16)

    kernel = _make_heads_kernel(Hf=Hf, Wf=Wf, Cf=Cf, kf=kf)
    flops = 2 * N * (Hf * Wf * kd * kd * Cf * n_dis + kf * kf * Cf * n_aus)
    bytes_accessed = (xp.size * 2 + wd.size * 2 + wa.size * 2
                      + N * (Hf * Wf + 1) * CP * 4)

    om, oa = pl.pallas_call(
        kernel,
        grid=(N,),
        in_specs=[
            pl.BlockSpec((pl.Squeezed(), Hf + 2, Wf + 2, Cf),
                         lambda n: (n, 0, 0, 0)),
            pl.BlockSpec((kd * kd, Cf, CP), lambda n: (0, 0, 0)),
            pl.BlockSpec((kf * kf, Cf, CP), lambda n: (0, 0, 0)),
        ],
        out_specs=(
            pl.BlockSpec((pl.Squeezed(), Hf * Wf, CP), lambda n: (n, 0, 0)),
            pl.BlockSpec((pl.Squeezed(), 1, CP), lambda n: (n, 0, 0)),
        ),
        out_shape=(
            jax.ShapeDtypeStruct((N, Hf * Wf, CP), jnp.float32),
            jax.ShapeDtypeStruct((N, 1, CP), jnp.float32),
        ),
        compiler_params=pltpu.CompilerParams(dimension_semantics=("parallel",)),
        cost_estimate=pl.CostEstimate(flops=flops, transcendentals=0,
                                      bytes_accessed=bytes_accessed),
    )(xp, wd, wa)

    pred_map = om[:, :, 0].reshape(N, Hf, Wf)
    pred_aus = oa[:, 0, :n_aus]
    return pred_map, pred_aus


# ----------------------------------------------------------------------------
# Parameters (deterministic synthetic init) and forward pass.
# ----------------------------------------------------------------------------
def init_params(key, input_nc, aus_nc, image_size, ndf, n_layers):
    kw = 4
    keys = jax.random.split(key, n_layers + 3)
    params = {"model": []}

    # first conv: bias=True (PyTorch Conv2d default)
    w0 = 0.05 * jax.random.normal(keys[0], (kw, kw, input_nc, ndf), jnp.float32)
    b0 = 0.05 * jax.random.normal(keys[1], (ndf,), jnp.float32)
    params["model"].append((w0, b0))

    cur = ndf
    for n in range(1, n_layers):
        # bias=use_bias=False (norm_layer == BatchNorm2d)
        w = 0.05 * jax.random.normal(keys[1 + n], (kw, kw, cur, 2 * cur),
                                     jnp.float32)
        params["model"].append((w, None))
        cur *= 2

    # dis_top: Conv(cur->1, k=3, s=1, p=1, bias=False)
    params["dis_top"] = 0.05 * jax.random.normal(
        keys[n_layers + 1], (kw - 1, kw - 1, cur, 1), jnp.float32)
    # aus_top: Conv(cur->aus_nc, k=image_size/2^n_layers, s=1, bias=False)
    k_size = image_size // (2 ** n_layers)
    params["aus_top"] = 0.05 * jax.random.normal(
        keys[n_layers + 2], (k_size, k_size, cur, aus_nc), jnp.float32)
    return params


def split_discriminator_forward(img_nchw, params):
    # accept NCHW (PyTorch convention), compute in NHWC, bf16 activations.
    x = jnp.transpose(img_nchw, (0, 2, 3, 1)).astype(jnp.bfloat16)

    # body: [Conv(k4,s2,p1) + LeakyReLU(0.01)] * n_layers
    for w, b in params["model"]:
        x = conv2d_pallas(x, w, b, stride=2, pad=1, alpha=0.01)

    # TODO(synk): fold the last body conv into the heads pallas_call so the
    # tiny tail activation never round-trips through HBM.
    pred_map, pred_aus = heads_pallas(x, params["dis_top"], params["aus_top"])

    # torch returns (pred_map.squeeze(), pred_aus.squeeze())
    return jnp.squeeze(pred_map), jnp.squeeze(pred_aus)


# ----------------------------------------------------------------------------
# Pure-JAX reference (f32 lax.conv) for a correctness sanity check.
# ----------------------------------------------------------------------------
def _reference_forward(img_nchw, params):
    x = jnp.transpose(img_nchw, (0, 2, 3, 1)).astype(jnp.float32)

    def conv(x, w, b, stride, pad):
        y = jax.lax.conv_general_dilated(
            x, w, window_strides=(stride, stride),
            padding=[(pad, pad), (pad, pad)],
            dimension_numbers=("NHWC", "HWIO", "NHWC"))
        return y if b is None else y + b

    for w, b in params["model"]:
        y = conv(x, w, b, 2, 1)
        x = jnp.where(y >= 0, y, 0.01 * y)
    pm = conv(x, params["dis_top"], None, 1, 1)
    pa = conv(x, params["aus_top"], None, 1, 0)
    pm = jnp.squeeze(jnp.transpose(pm, (0, 3, 1, 2)))
    pa = jnp.squeeze(jnp.transpose(pa, (0, 3, 1, 2)))
    return pm, pa


if __name__ == "__main__":
    # Small config consistent with the module:
    #   input_nc=4, aus_nc=5, image_size=16, ndf=8, n_layers=3, batch=2
    batch, input_nc, aus_nc, image_size, ndf, n_layers = 2, 4, 5, 16, 8, 3

    key = jax.random.PRNGKey(0)
    k_img, k_par = jax.random.split(key)
    img = jax.random.normal(k_img, (batch, input_nc, image_size, image_size),
                            jnp.float32)
    params = init_params(k_par, input_nc, aus_nc, image_size, ndf, n_layers)

    fwd = jax.jit(lambda x: split_discriminator_forward(x, params))
    pred_map, pred_aus = fwd(img)
    jax.block_until_ready((pred_map, pred_aus))

    fin = image_size // (2 ** n_layers)          # 16 / 2^3 = 2
    assert pred_map.shape == (batch, fin, fin), pred_map.shape
    assert pred_aus.shape == (batch, aus_nc), pred_aus.shape

    # Numerical check vs f32 reference (bf16 activations + MXU operands).
    ref_map, ref_aus = _reference_forward(img, params)
    np.testing.assert_allclose(np.asarray(pred_map), np.asarray(ref_map),
                               rtol=0.1, atol=0.05)
    np.testing.assert_allclose(np.asarray(pred_aus), np.asarray(ref_aus),
                               rtol=0.1, atol=0.05)

    print("KERNEL_OK")
</pallas_src>

<mosaic_0001>
module attributes {stable_mosaic.version = 11 : i64} {
  func.func @kernel(%arg0: i32, %arg1: i32, %arg2: i32, %arg3: memref<1x9x9x16xbf16, #tpu.memory_space<vmem>>, %arg4: memref<4x16x128xbf16, #tpu.memory_space<vmem>>, %arg5: memref<1x128xf32, #tpu.memory_space<vmem>>, %arg6: memref<1x64x128xbf16, #tpu.memory_space<vmem>>, %arg7: memref<4x64x16xbf16, #tpu.memory_space<vmem>>, %arg8: memref<64x128xf32, #tpu.memory_space<vmem>>) attributes {dimension_semantics = [#tpu.dimension_semantics<parallel>, #tpu.dimension_semantics<parallel>, #tpu.dimension_semantics<arbitrary>], iteration_bounds = array<i64: 2, 1, 1>, scalar_prefetch = 0 : i64, scratch_operands = 2 : i64, tpu.core_type = #tpu.core_type<tc>, window_params = [{transform_indices = @transform_0, window_bounds = array<i64: 1, 9, 9, 16>}, {transform_indices = @transform_1, window_bounds = array<i64: 4, 16, 128>}, {transform_indices = @transform_2, window_bounds = array<i64: 1, 128>}, {transform_indices = @transform_3, window_bounds = array<i64: 1, 64, 128>}]} {
    %c8_i32 = arith.constant 8 : i32
    %0 = arith.muli %arg1, %c8_i32 : i32
    %c0_i32 = arith.constant 0 : i32
    %1 = arith.cmpi eq, %arg2, %c0_i32 : i32
    %2 = arith.extui %1 : i1 to i32
    %c0_i32_0 = arith.constant 0 : i32
    %3 = arith.cmpi ne, %2, %c0_i32_0 : i32
    scf.if %3 {
      %c0_i32_47 = arith.constant 0 : i32
      %47 = arith.addi %0, %c0_i32_47 : i32
      %c0_48 = arith.constant 0 : index
      %48 = arith.index_cast %47 : i32 to index
      %c0_49 = arith.constant 0 : index
      %c0_50 = arith.constant 0 : index
      %49 = vector.load %arg3[%c0_48, %48, %c0_49, %c0_50] : memref<1x9x9x16xbf16, #tpu.memory_space<vmem>>, vector<1x8x8x16xbf16>
      %50 = vector.shape_cast %49 : vector<1x8x8x16xbf16> to vector<8x8x16xbf16>
      %51 = vector.shape_cast %50 : vector<8x8x16xbf16> to vector<64x16xbf16>
      %c0_51 = arith.constant 0 : index
      %c0_52 = arith.constant 0 : index
      %c0_53 = arith.constant 0 : index
      %52 = vector.load %arg7[%c0_51, %c0_52, %c0_53] : memref<4x64x16xbf16, #tpu.memory_space<vmem>>, vector<1x64x16xbf16>
      %53 = vector.shape_cast %52 : vector<1x64x16xbf16> to vector<64x16xbf16>
      %54 = vector.shape_cast %51 : vector<64x16xbf16> to vector<1x64x16xbf16>
      tpu.vector_store %arg7[%c0_51, %c0_52, %c0_53], %54 {strides = array<i32>} : memref<4x64x16xbf16, #tpu.memory_space<vmem>>, vector<1x64x16xbf16>,
      %c0_i32_54 = arith.constant 0 : i32
      %55 = arith.addi %0, %c0_i32_54 : i32
      %c0_55 = arith.constant 0 : index
      %56 = arith.index_cast %55 : i32 to index
      %c1_56 = arith.constant 1 : index
      %c0_57 = arith.constant 0 : index
      %57 = vector.load %arg3[%c0_55, %56, %c1_56, %c0_57] : memref<1x9x9x16xbf16, #tpu.memory_space<vmem>>, vector<1x8x8x16xbf16>
      %58 = vector.shape_cast %57 : vector<1x8x8x16xbf16> to vector<8x8x16xbf16>
      %59 = vector.shape_cast %58 : vector<8x8x16xbf16> to vector<64x16xbf16>
      %c1_58 = arith.constant 1 : index
      %c0_59 = arith.constant 0 : index
      %c0_60 = arith.constant 0 : index
      %60 = vector.load %arg7[%c1_58, %c0_59, %c0_60] : memref<4x64x16xbf16, #tpu.memory_space<vmem>>, vector<1x64x16xbf16>
      %61 = vector.shape_cast %60 : vector<1x64x16xbf16> to vector<64x16xbf16>
      %62 = vector.shape_cast %59 : vector<64x16xbf16> to vector<1x64x16xbf16>
      tpu.vector_store %arg7[%c1_58, %c0_59, %c0_60], %62 {strides = array<i32>} : memref<4x64x16xbf16, #tpu.memory_space<vmem>>, vector<1x64x16xbf16>,
      %c1_i32 = arith.constant 1 : i32
      %63 = arith.addi %0, %c1_i32 : i32
      %c0_61 = arith.constant 0 : index
      %64 = arith.index_cast %63 : i32 to index
      %c0_62 = arith.constant 0 : index
      %c0_63 = arith.constant 0 : index
      %65 = vector.load %arg3[%c0_61, %64, %c0_62, %c0_63] : memref<1x9x9x16xbf16, #tpu.memory_space<vmem>>, vector<1x8x8x16xbf16>
      %66 = vector.shape_cast %65 : vector<1x8x8x16xbf16> to vector<8x8x16xbf16>
      %67 = vector.shape_cast %66 : vector<8x8x16xbf16> to vector<64x16xbf16>
      %c2_64 = arith.constant 2 : index
      %c0_65 = arith.constant 0 : index
      %c0_66 = arith.constant 0 : index
      %68 = vector.load %arg7[%c2_64, %c0_65, %c0_66] : memref<4x64x16xbf16, #tpu.memory_space<vmem>>, vector<1x64x16xbf16>
      %69 = vector.shape_cast %68 : vector<1x64x16xbf16> to vector<64x16xbf16>
      %70 = vector.shape_cast %67 : vector<64x16xbf16> to vector<1x64x16xbf16>
      tpu.vector_store %arg7[%c2_64, %c0_65, %c0_66], %70 {strides = array<i32>} : memref<4x64x16xbf16, #tpu.memory_space<vmem>>, vector<1x64x16xbf16>,
      %c1_i32_67 = arith.constant 1 : i32
      %71 = arith.addi %0, %c1_i32_67 : i32
      %c0_68 = arith.constant 0 : index
      %72 = arith.index_cast %71 : i32 to index
      %c1_69 = arith.constant 1 : index
      %c0_70 = arith.constant 0 : index
      %73 = vector.load %arg3[%c0_68, %72, %c1_69, %c0_70] : memref<1x9x9x16xbf16, #tpu.memory_space<vmem>>, vector<1x8x8x16xbf16>
      %74 = vector.shape_cast %73 : vector<1x8x8x16xbf16> to vector<8x8x16xbf16>
      %75 = vector.shape_cast %74 : vector<8x8x16xbf16> to vector<64x16xbf16>
      %c3_71 = arith.constant 3 : index
      %c0_72 = arith.constant 0 : index
      %c0_73 = arith.constant 0 : index
      %76 = vector.load %arg7[%c3_71, %c0_72, %c0_73] : memref<4x64x16xbf16, #tpu.memory_space<vmem>>, vector<1x64x16xbf16>
      %77 = vector.shape_cast %76 : vector<1x64x16xbf16> to vector<64x16xbf16>
      %78 = vector.shape_cast %75 : vector<64x16xbf16> to vector<1x64x16xbf16>
      tpu.vector_store %arg7[%c3_71, %c0_72, %c0_73], %78 {strides = array<i32>} : memref<4x64x16xbf16, #tpu.memory_space<vmem>>, vector<1x64x16xbf16>,
    } else {
    }
    %c0 = arith.constant 0 : index
    %c0_1 = arith.constant 0 : index
    %c0_2 = arith.constant 0 : index
    %4 = vector.load %arg7[%c0, %c0_1, %c0_2] : memref<4x64x16xbf16, #tpu.memory_space<vmem>>, vector<1x64x16xbf16>
    %5 = vector.shape_cast %4 : vector<1x64x16xbf16> to vector<64x16xbf16>
    %c0_3 = arith.constant 0 : index
    %c0_4 = arith.constant 0 : index
    %c0_5 = arith.constant 0 : index
    %6 = vector.load %arg4[%c0_3, %c0_4, %c0_5] : memref<4x16x128xbf16, #tpu.memory_space<vmem>>, vector<1x16x128xbf16>
    %7 = vector.shape_cast %6 : vector<1x16x128xbf16> to vector<16x128xbf16>
    %cst = arith.constant dense<0.000000e+00> : vector<64x128xf32>
    %8 = tpu.matmul %5, %7, %cst {dimension_numbers = #tpu.dot_dimension_numbers<[1], [0], [0], [1], [0, 0, 1, 1], [], []>} : vector<64x16xbf16>, vector<16x128xbf16>, vector<64x128xf32> -> vector<64x128xf32>
    %c0_6 = arith.constant 0 : index
    %c0_7 = arith.constant 0 : index
    %9 = vector.load %arg8[%c0_6, %c0_7] : memref<64x128xf32, #tpu.memory_space<vmem>>, vector<64x128xf32>
    tpu.vector_store %arg8[%c0_6, %c0_7], %8 {strides = array<i32>} : memref<64x128xf32, #tpu.memory_space<vmem>>, vector<64x128xf32>,
    %c0_8 = arith.constant 0 : index
    %c0_9 = arith.constant 0 : index
    %10 = vector.load %arg8[%c0_8, %c0_9] : memref<64x128xf32, #tpu.memory_space<vmem>>, vector<64x128xf32>
    %c1 = arith.constant 1 : index
    %c0_10 = arith.constant 0 : index
    %c0_11 = arith.constant 0 : index
    %11 = vector.load %arg7[%c1, %c0_10, %c0_11] : memref<4x64x16xbf16, #tpu.memory_space<vmem>>, vector<1x64x16xbf16>
    %12 = vector.shape_cast %11 : vector<1x64x16xbf16> to vector<64x16xbf16>
    %c1_12 = arith.constant 1 : index
    %c0_13 = arith.constant 0 : index
    %c0_14 = arith.constant 0 : index
    %13 = vector.load %arg4[%c1_12, %c0_13, %c0_14] : memref<4x16x128xbf16, #tpu.memory_space<vmem>>, vector<1x16x128xbf16>
    %14 = vector.shape_cast %13 : vector<1x16x128xbf16> to vector<16x128xbf16>
    %cst_15 = arith.constant dense<0.000000e+00> : vector<64x128xf32>
    %15 = tpu.matmul %12, %14, %cst_15 {dimension_numbers = #tpu.dot_dimension_numbers<[1], [0], [0], [1], [0, 0, 1, 1], [], []>} : vector<64x16xbf16>, vector<16x128xbf16>, vector<64x128xf32> -> vector<64x128xf32>
    %16 = arith.addf %10, %15 : vector<64x128xf32>
    %c0_16 = arith.constant 0 : index
    %c0_17 = arith.constant 0 : index
    %17 = vector.load %arg8[%c0_16, %c0_17] : memref<64x128xf32, #tpu.memory_space<vmem>>, vector<64x128xf32>
    tpu.vector_store %arg8[%c0_16, %c0_17], %16 {strides = array<i32>} : memref<64x128xf32, #tpu.memory_space<vmem>>, vector<64x128xf32>,
    %c0_18 = arith.constant 0 : index
    %c0_19 = arith.constant 0 : index
    %18 = vector.load %arg8[%c0_18, %c0_19] : memref<64x128xf32, #tpu.memory_space<vmem>>, vector<64x128xf32>
    %c2 = arith.constant 2 : index
    %c0_20 = arith.constant 0 : index
    %c0_21 = arith.constant 0 : index
    %19 = vector.load %arg7[%c2, %c0_20, %c0_21] : memref<4x64x16xbf16, #tpu.memory_space<vmem>>, vector<1x64x16xbf16>
    %20 = vector.shape_cast %19 : vector<1x64x16xbf16> to vector<64x16xbf16>
    %c2_22 = arith.constant 2 : index
    %c0_23 = arith.constant 0 : index
    %c0_24 = arith.constant 0 : index
    %21 = vector.load %arg4[%c2_22, %c0_23, %c0_24] : memref<4x16x128xbf16, #tpu.memory_space<vmem>>, vector<1x16x128xbf16>
    %22 = vector.shape_cast %21 : vector<1x16x128xbf16> to vector<16x128xbf16>
    %cst_25 = arith.constant dense<0.000000e+00> : vector<64x128xf32>
    %23 = tpu.matmul %20, %22, %cst_25 {dimension_numbers = #tpu.dot_dimension_numbers<[1], [0], [0], [1], [0, 0, 1, 1], [], []>} : vector<64x16xbf16>, vector<16x128xbf16>, vector<64x128xf32> -> vector<64x128xf32>
    %24 = arith.addf %18, %23 : vector<64x128xf32>
    %c0_26 = arith.constant 0 : index
    %c0_27 = arith.constant 0 : index
    %25 = vector.load %arg8[%c0_26, %c0_27] : memref<64x128xf32, #tpu.memory_space<vmem>>, vector<64x128xf32>
    tpu.vector_store %arg8[%c0_26, %c0_27], %24 {strides = array<i32>} : memref<64x128xf32, #tpu.memory_space<vmem>>, vector<64x128xf32>,
    %c0_28 = arith.constant 0 : index
    %c0_29 = arith.constant 0 : index
    %26 = vector.load %arg8[%c0_28, %c0_29] : memref<64x128xf32, #tpu.memory_space<vmem>>, vector<64x128xf32>
    %c3 = arith.constant 3 : index
    %c0_30 = arith.constant 0 : index
    %c0_31 = arith.constant 0 : index
    %27 = vector.load %arg7[%c3, %c0_30, %c0_31] : memref<4x64x16xbf16, #tpu.memory_space<vmem>>, vector<1x64x16xbf16>
    %28 = vector.shape_cast %27 : vector<1x64x16xbf16> to vector<64x16xbf16>
    %c3_32 = arith.constant 3 : index
    %c0_33 = arith.constant 0 : index
    %c0_34 = arith.constant 0 : index
    %29 = vector.load %arg4[%c3_32, %c0_33, %c0_34] : memref<4x16x128xbf16, #tpu.memory_space<vmem>>, vector<1x16x128xbf16>
    %30 = vector.shape_cast %29 : vector<1x16x128xbf16> to vector<16x128xbf16>
    %cst_35 = arith.constant dense<0.000000e+00> : vector<64x128xf32>
    %31 = tpu.matmul %28, %30, %cst_35 {dimension_numbers = #tpu.dot_dimension_numbers<[1], [0], [0], [1], [0, 0, 1, 1], [], []>} : vector<64x16xbf16>, vector<16x128xbf16>, vector<64x128xf32> -> vector<64x128xf32>
    %32 = arith.addf %26, %31 : vector<64x128xf32>
    %c0_36 = arith.constant 0 : index
    %c0_37 = arith.constant 0 : index
    %33 = vector.load %arg8[%c0_36, %c0_37] : memref<64x128xf32, #tpu.memory_space<vmem>>, vector<64x128xf32>
    tpu.vector_store %arg8[%c0_36, %c0_37], %32 {strides = array<i32>} : memref<64x128xf32, #tpu.memory_space<vmem>>, vector<64x128xf32>,
    %c0_38 = arith.constant 0 : index
    %c0_39 = arith.constant 0 : index
    %34 = vector.load %arg8[%c0_38, %c0_39] : memref<64x128xf32, #tpu.memory_space<vmem>>, vector<64x128xf32>
    %c0_40 = arith.constant 0 : index
    %c0_41 = arith.constant 0 : index
    %35 = vector.load %arg5[%c0_40, %c0_41] : memref<1x128xf32, #tpu.memory_space<vmem>>, vector<1x128xf32>
    %36 = vector.broadcast %35 : vector<1x128xf32> to vector<64x128xf32>
    %37 = arith.addf %34, %36 : vector<64x128xf32>
    %cst_42 = arith.constant 0.000000e+00 : f32
    %38 = vector.broadcast %cst_42 : f32 to vector<64x128xf32>
    %39 = arith.cmpf oge, %37, %38 : vector<64x128xf32>
    %cst_43 = arith.constant 0.00999999977 : f32
    %40 = vector.broadcast %cst_43 : f32 to vector<64x128xf32>
    %41 = arith.mulf %40, %37 : vector<64x128xf32>
    %42 = arith.select %39, %37, %41 : vector<64x128xi1>, vector<64x128xf32>
    %43 = arith.truncf %42 : vector<64x128xf32> to vector<64x128xbf16>
    %c0_44 = arith.constant 0 : index
    %c0_45 = arith.constant 0 : index
    %c0_46 = arith.constant 0 : index
    %44 = vector.load %arg6[%c0_44, %c0_45, %c0_46] : memref<1x64x128xbf16, #tpu.memory_space<vmem>>, vector<1x64x128xbf16>
    %45 = vector.shape_cast %44 : vector<1x64x128xbf16> to vector<64x128xbf16>
    %46 = vector.shape_cast %43 : vector<64x128xbf16> to vector<1x64x128xbf16>
    tpu.vector_store %arg6[%c0_44, %c0_45, %c0_46], %46 {strides = array<i32>} : memref<1x64x128xbf16, #tpu.memory_space<vmem>>, vector<1x64x128xbf16>,
    return
  }
  func.func @transform_0(%arg0: i32, %arg1: i32, %arg2: i32) -> (i32, i32, i32, i32) {
    %c0_i32 = arith.constant 0 : i32
    %c0_i32_0 = arith.constant 0 : i32
    %c0_i32_1 = arith.constant 0 : i32
    %c0_i32_2 = arith.constant 0 : i32
    return %arg0, %c0_i32, %c0_i32_0, %c0_i32_1 : i32, i32, i32, i32
  }
  func.func @transform_1(%arg0: i32, %arg1: i32, %arg2: i32) -> (i32, i32, i32) {
    %c0_i32 = arith.constant 0 : i32
    %c0_i32_0 = arith.constant 0 : i32
    %c0_i32_1 = arith.constant 0 : i32
    return %c0_i32, %c0_i32_0, %arg2 : i32, i32, i32
  }
  func.func @transform_2(%arg0: i32, %arg1: i32, %arg2: i32) -> (i32, i32) {
    %c0_i32 = arith.constant 0 : i32
    %c0_i32_0 = arith.constant 0 : i32
    return %c0_i32, %arg2 : i32, i32
  }
  func.func @transform_3(%arg0: i32, %arg1: i32, %arg2: i32) -> (i32, i32, i32) {
    %c0_i32 = arith.constant 0 : i32
    return %arg0, %arg1, %arg2 : i32, i32, i32
  }
}

module attributes {stable_mosaic.version = 11 : i64} {
  func.func @kernel(%arg0: i32, %arg1: i32, %arg2: i32, %arg3: memref<1x5x5x32xbf16, #tpu.memory_space<vmem>>, %arg4: memref<4x32x128xbf16, #tpu.memory_space<vmem>>, %arg5: memref<1x16x128xbf16, #tpu.memory_space<vmem>>, %arg6: memref<4x16x32xbf16, #tpu.memory_space<vmem>>, %arg7: memref<16x128xf32, #tpu.memory_space<vmem>>) attributes {dimension_semantics = [#tpu.dimension_semantics<parallel>, #tpu.dimension_semantics<parallel>, #tpu.dimension_semantics<arbitrary>], iteration_bounds = array<i64: 2, 1, 1>, scalar_prefetch = 0 : i64, scratch_operands = 2 : i64, tpu.core_type = #tpu.core_type<tc>, window_params = [{transform_indices = @transform_0, window_bounds = array<i64: 1, 5, 5, 32>}, {transform_indices = @transform_1, window_bounds = array<i64: 4, 32, 128>}, {transform_indices = @transform_2, window_bounds = array<i64: 1, 16, 128>}]} {
    %c4_i32 = arith.constant 4 : i32
    %0 = arith.muli %arg1, %c4_i32 : i32
    %c0_i32 = arith.constant 0 : i32
    %1 = arith.cmpi eq, %arg2, %c0_i32 : i32
    %2 = arith.extui %1 : i1 to i32
    %c0_i32_0 = arith.constant 0 : i32
    %3 = arith.cmpi ne, %2, %c0_i32_0 : i32
    scf.if %3 {
      %c0_i32_45 = arith.constant 0 : i32
      %44 = arith.addi %0, %c0_i32_45 : i32
      %c0_46 = arith.constant 0 : index
      %45 = arith.index_cast %44 : i32 to index
      %c0_47 = arith.constant 0 : index
      %c0_48 = arith.constant 0 : index
      %46 = vector.load %arg3[%c0_46, %45, %c0_47, %c0_48] : memref<1x5x5x32xbf16, #tpu.memory_space<vmem>>, vector<1x4x4x32xbf16>
      %47 = vector.shape_cast %46 : vector<1x4x4x32xbf16> to vector<4x4x32xbf16>
      %48 = vector.shape_cast %47 : vector<4x4x32xbf16> to vector<16x32xbf16>
      %c0_49 = arith.constant 0 : index
      %c0_50 = arith.constant 0 : index
      %c0_51 = arith.constant 0 : index
      %49 = vector.load %arg6[%c0_49, %c0_50, %c0_51] : memref<4x16x32xbf16, #tpu.memory_space<vmem>>, vector<1x16x32xbf16>
      %50 = vector.shape_cast %49 : vector<1x16x32xbf16> to vector<16x32xbf16>
      %51 = vector.shape_cast %48 : vector<16x32xbf16> to vector<1x16x32xbf16>
      tpu.vector_store %arg6[%c0_49, %c0_50, %c0_51], %51 {strides = array<i32>} : memref<4x16x32xbf16, #tpu.memory_space<vmem>>, vector<1x16x32xbf16>,
      %c0_i32_52 = arith.constant 0 : i32
      %52 = arith.addi %0, %c0_i32_52 : i32
      %c0_53 = arith.constant 0 : index
      %53 = arith.index_cast %52 : i32 to index
      %c1_54 = arith.constant 1 : index
      %c0_55 = arith.constant 0 : index
      %54 = vector.load %arg3[%c0_53, %53, %c1_54, %c0_55] : memref<1x5x5x32xbf16, #tpu.memory_space<vmem>>, vector<1x4x4x32xbf16>
      %55 = vector.shape_cast %54 : vector<1x4x4x32xbf16> to vector<4x4x32xbf16>
      %56 = vector.shape_cast %55 : vector<4x4x32xbf16> to vector<16x32xbf16>
      %c1_56 = arith.constant 1 : index
      %c0_57 = arith.constant 0 : index
      %c0_58 = arith.constant 0 : index
      %57 = vector.load %arg6[%c1_56, %c0_57, %c0_58] : memref<4x16x32xbf16, #tpu.memory_space<vmem>>, vector<1x16x32xbf16>
      %58 = vector.shape_cast %57 : vector<1x16x32xbf16> to vector<16x32xbf16>
      %59 = vector.shape_cast %56 : vector<16x32xbf16> to vector<1x16x32xbf16>
      tpu.vector_store %arg6[%c1_56, %c0_57, %c0_58], %59 {strides = array<i32>} : memref<4x16x32xbf16, #tpu.memory_space<vmem>>, vector<1x16x32xbf16>,
      %c1_i32 = arith.constant 1 : i32
      %60 = arith.addi %0, %c1_i32 : i32
      %c0_59 = arith.constant 0 : index
      %61 = arith.index_cast %60 : i32 to index
      %c0_60 = arith.constant 0 : index
      %c0_61 = arith.constant 0 : index
      %62 = vector.load %arg3[%c0_59, %61, %c0_60, %c0_61] : memref<1x5x5x32xbf16, #tpu.memory_space<vmem>>, vector<1x4x4x32xbf16>
      %63 = vector.shape_cast %62 : vector<1x4x4x32xbf16> to vector<4x4x32xbf16>
      %64 = vector.shape_cast %63 : vector<4x4x32xbf16> to vector<16x32xbf16>
      %c2_62 = arith.constant 2 : index
      %c0_63 = arith.constant 0 : index
      %c0_64 = arith.constant 0 : index
      %65 = vector.load %arg6[%c2_62, %c0_63, %c0_64] : memref<4x16x32xbf16, #tpu.memory_space<vmem>>, vector<1x16x32xbf16>
      %66 = vector.shape_cast %65 : vector<1x16x32xbf16> to vector<16x32xbf16>
      %67 = vector.shape_cast %64 : vector<16x32xbf16> to vector<1x16x32xbf16>
      tpu.vector_store %arg6[%c2_62, %c0_63, %c0_64], %67 {strides = array<i32>} : memref<4x16x32xbf16, #tpu.memory_space<vmem>>, vector<1x16x32xbf16>,
      %c1_i32_65 = arith.constant 1 : i32
      %68 = arith.addi %0, %c1_i32_65 : i32
      %c0_66 = arith.constant 0 : index
      %69 = arith.index_cast %68 : i32 to index
      %c1_67 = arith.constant 1 : index
      %c0_68 = arith.constant 0 : index
      %70 = vector.load %arg3[%c0_66, %69, %c1_67, %c0_68] : memref<1x5x5x32xbf16, #tpu.memory_space<vmem>>, vector<1x4x4x32xbf16>
      %71 = vector.shape_cast %70 : vector<1x4x4x32xbf16> to vector<4x4x32xbf16>
      %72 = vector.shape_cast %71 : vector<4x4x32xbf16> to vector<16x32xbf16>
      %c3_69 = arith.constant 3 : index
      %c0_70 = arith.constant 0 : index
      %c0_71 = arith.constant 0 : index
      %73 = vector.load %arg6[%c3_69, %c0_70, %c0_71] : memref<4x16x32xbf16, #tpu.memory_space<vmem>>, vector<1x16x32xbf16>
      %74 = vector.shape_cast %73 : vector<1x16x32xbf16> to vector<16x32xbf16>
      %75 = vector.shape_cast %72 : vector<16x32xbf16> to vector<1x16x32xbf16>
      tpu.vector_store %arg6[%c3_69, %c0_70, %c0_71], %75 {strides = array<i32>} : memref<4x16x32xbf16, #tpu.memory_space<vmem>>, vector<1x16x32xbf16>,
    } else {
    }
    %c0 = arith.constant 0 : index
    %c0_1 = arith.constant 0 : index
    %c0_2 = arith.constant 0 : index
    %4 = vector.load %arg6[%c0, %c0_1, %c0_2] : memref<4x16x32xbf16, #tpu.memory_space<vmem>>, vector<1x16x32xbf16>
    %5 = vector.shape_cast %4 : vector<1x16x32xbf16> to vector<16x32xbf16>
    %c0_3 = arith.constant 0 : index
    %c0_4 = arith.constant 0 : index
    %c0_5 = arith.constant 0 : index
    %6 = vector.load %arg4[%c0_3, %c0_4, %c0_5] : memref<4x32x128xbf16, #tpu.memory_space<vmem>>, vector<1x32x128xbf16>
    %7 = vector.shape_cast %6 : vector<1x32x128xbf16> to vector<32x128xbf16>
    %cst = arith.constant dense<0.000000e+00> : vector<16x128xf32>
    %8 = tpu.matmul %5, %7, %cst {dimension_numbers = #tpu.dot_dimension_numbers<[1], [0], [0], [1], [0, 0, 1, 1], [], []>} : vector<16x32xbf16>, vector<32x128xbf16>, vector<16x128xf32> -> vector<16x128xf32>
    %c0_6 = arith.constant 0 : index
    %c0_7 = arith.constant 0 : index
    %9 = vector.load %arg7[%c0_6, %c0_7] : memref<16x128xf32, #tpu.memory_space<vmem>>, vector<16x128xf32>
    tpu.vector_store %arg7[%c0_6, %c0_7], %8 {strides = array<i32>} : memref<16x128xf32, #tpu.memory_space<vmem>>, vector<16x128xf32>,
    %c0_8 = arith.constant 0 : index
    %c0_9 = arith.constant 0 : index
    %10 = vector.load %arg7[%c0_8, %c0_9] : memref<16x128xf32, #tpu.memory_space<vmem>>, vector<16x128xf32>
    %c1 = arith.constant 1 : index
    %c0_10 = arith.constant 0 : index
    %c0_11 = arith.constant 0 : index
    %11 = vector.load %arg6[%c1, %c0_10, %c0_11] : memref<4x16x32xbf16, #tpu.memory_space<vmem>>, vector<1x16x32xbf16>
    %12 = vector.shape_cast %11 : vector<1x16x32xbf16> to vector<16x32xbf16>
    %c1_12 = arith.constant 1 : index
    %c0_13 = arith.constant 0 : index
    %c0_14 = arith.constant 0 : index
    %13 = vector.load %arg4[%c1_12, %c0_13, %c0_14] : memref<4x32x128xbf16, #tpu.memory_space<vmem>>, vector<1x32x128xbf16>
    %14 = vector.shape_cast %13 : vector<1x32x128xbf16> to vector<32x128xbf16>
    %cst_15 = arith.constant dense<0.000000e+00> : vector<16x128xf32>
    %15 = tpu.matmul %12, %14, %cst_15 {dimension_numbers = #tpu.dot_dimension_numbers<[1], [0], [0], [1], [0, 0, 1, 1], [], []>} : vector<16x32xbf16>, vector<32x128xbf16>, vector<16x128xf32> -> vector<16x128xf32>
    %16 = arith.addf %10, %15 : vector<16x128xf32>
    %c0_16 = arith.constant 0 : index
    %c0_17 = arith.constant 0 : index
    %17 = vector.load %arg7[%c0_16, %c0_17] : memref<16x128xf32, #tpu.memory_space<vmem>>, vector<16x128xf32>
    tpu.vector_store %arg7[%c0_16, %c0_17], %16 {strides = array<i32>} : memref<16x128xf32, #tpu.memory_space<vmem>>, vector<16x128xf32>,
    %c0_18 = arith.constant 0 : index
    %c0_19 = arith.constant 0 : index
    %18 = vector.load %arg7[%c0_18, %c0_19] : memref<16x128xf32, #tpu.memory_space<vmem>>, vector<16x128xf32>
    %c2 = arith.constant 2 : index
    %c0_20 = arith.constant 0 : index
    %c0_21 = arith.constant 0 : index
    %19 = vector.load %arg6[%c2, %c0_20, %c0_21] : memref<4x16x32xbf16, #tpu.memory_space<vmem>>, vector<1x16x32xbf16>
    %20 = vector.shape_cast %19 : vector<1x16x32xbf16> to vector<16x32xbf16>
    %c2_22 = arith.constant 2 : index
    %c0_23 = arith.constant 0 : index
    %c0_24 = arith.constant 0 : index
    %21 = vector.load %arg4[%c2_22, %c0_23, %c0_24] : memref<4x32x128xbf16, #tpu.memory_space<vmem>>, vector<1x32x128xbf16>
    %22 = vector.shape_cast %21 : vector<1x32x128xbf16> to vector<32x128xbf16>
    %cst_25 = arith.constant dense<0.000000e+00> : vector<16x128xf32>
    %23 = tpu.matmul %20, %22, %cst_25 {dimension_numbers = #tpu.dot_dimension_numbers<[1], [0], [0], [1], [0, 0, 1, 1], [], []>} : vector<16x32xbf16>, vector<32x128xbf16>, vector<16x128xf32> -> vector<16x128xf32>
    %24 = arith.addf %18, %23 : vector<16x128xf32>
    %c0_26 = arith.constant 0 : index
    %c0_27 = arith.constant 0 : index
    %25 = vector.load %arg7[%c0_26, %c0_27] : memref<16x128xf32, #tpu.memory_space<vmem>>, vector<16x128xf32>
    tpu.vector_store %arg7[%c0_26, %c0_27], %24 {strides = array<i32>} : memref<16x128xf32, #tpu.memory_space<vmem>>, vector<16x128xf32>,
    %c0_28 = arith.constant 0 : index
    %c0_29 = arith.constant 0 : index
    %26 = vector.load %arg7[%c0_28, %c0_29] : memref<16x128xf32, #tpu.memory_space<vmem>>, vector<16x128xf32>
    %c3 = arith.constant 3 : index
    %c0_30 = arith.constant 0 : index
    %c0_31 = arith.constant 0 : index
    %27 = vector.load %arg6[%c3, %c0_30, %c0_31] : memref<4x16x32xbf16, #tpu.memory_space<vmem>>, vector<1x16x32xbf16>
    %28 = vector.shape_cast %27 : vector<1x16x32xbf16> to vector<16x32xbf16>
    %c3_32 = arith.constant 3 : index
    %c0_33 = arith.constant 0 : index
    %c0_34 = arith.constant 0 : index
    %29 = vector.load %arg4[%c3_32, %c0_33, %c0_34] : memref<4x32x128xbf16, #tpu.memory_space<vmem>>, vector<1x32x128xbf16>
    %30 = vector.shape_cast %29 : vector<1x32x128xbf16> to vector<32x128xbf16>
    %cst_35 = arith.constant dense<0.000000e+00> : vector<16x128xf32>
    %31 = tpu.matmul %28, %30, %cst_35 {dimension_numbers = #tpu.dot_dimension_numbers<[1], [0], [0], [1], [0, 0, 1, 1], [], []>} : vector<16x32xbf16>, vector<32x128xbf16>, vector<16x128xf32> -> vector<16x128xf32>
    %32 = arith.addf %26, %31 : vector<16x128xf32>
    %c0_36 = arith.constant 0 : index
    %c0_37 = arith.constant 0 : index
    %33 = vector.load %arg7[%c0_36, %c0_37] : memref<16x128xf32, #tpu.memory_space<vmem>>, vector<16x128xf32>
    tpu.vector_store %arg7[%c0_36, %c0_37], %32 {strides = array<i32>} : memref<16x128xf32, #tpu.memory_space<vmem>>, vector<16x128xf32>,
    %c0_38 = arith.constant 0 : index
    %c0_39 = arith.constant 0 : index
    %34 = vector.load %arg7[%c0_38, %c0_39] : memref<16x128xf32, #tpu.memory_space<vmem>>, vector<16x128xf32>
    %cst_40 = arith.constant 0.000000e+00 : f32
    %35 = vector.broadcast %cst_40 : f32 to vector<16x128xf32>
    %36 = arith.cmpf oge, %34, %35 : vector<16x128xf32>
    %cst_41 = arith.constant 0.00999999977 : f32
    %37 = vector.broadcast %cst_41 : f32 to vector<16x128xf32>
    %38 = arith.mulf %37, %34 : vector<16x128xf32>
    %39 = arith.select %36, %34, %38 : vector<16x128xi1>, vector<16x128xf32>
    %40 = arith.truncf %39 : vector<16x128xf32> to vector<16x128xbf16>
    %c0_42 = arith.constant 0 : index
    %c0_43 = arith.constant 0 : index
    %c0_44 = arith.constant 0 : index
    %41 = vector.load %arg5[%c0_42, %c0_43, %c0_44] : memref<1x16x128xbf16, #tpu.memory_space<vmem>>, vector<1x16x128xbf16>
    %42 = vector.shape_cast %41 : vector<1x16x128xbf16> to vector<16x128xbf16>
    %43 = vector.shape_cast %40 : vector<16x128xbf16> to vector<1x16x128xbf16>
    tpu.vector_store %arg5[%c0_42, %c0_43, %c0_44], %43 {strides = array<i32>} : memref<1x16x128xbf16, #tpu.memory_space<vmem>>, vector<1x16x128xbf16>,
    return
  }
  func.func @transform_0(%arg0: i32, %arg1: i32, %arg2: i32) -> (i32, i32, i32, i32) {
    %c0_i32 = arith.constant 0 : i32
    %c0_i32_0 = arith.constant 0 : i32
    %c0_i32_1 = arith.constant 0 : i32
    %c0_i32_2 = arith.constant 0 : i32
    return %arg0, %c0_i32, %c0_i32_0, %c0_i32_1 : i32, i32, i32, i32
  }
  func.func @transform_1(%arg0: i32, %arg1: i32, %arg2: i32) -> (i32, i32, i32) {
    %c0_i32 = arith.constant 0 : i32
    %c0_i32_0 = arith.constant 0 : i32
    %c0_i32_1 = arith.constant 0 : i32
    return %c0_i32, %c0_i32_0, %arg2 : i32, i32, i32
  }
  func.func @transform_2(%arg0: i32, %arg1: i32, %arg2: i32) -> (i32, i32, i32) {
    %c0_i32 = arith.constant 0 : i32
    return %arg0, %arg1, %arg2 : i32, i32, i32
  }
}

module attributes {stable_mosaic.version = 11 : i64} {
  func.func @kernel(%arg0: i32, %arg1: i32, %arg2: i32, %arg3: memref<1x3x3x64xbf16, #tpu.memory_space<vmem>>, %arg4: memref<4x64x128xbf16, #tpu.memory_space<vmem>>, %arg5: memref<1x4x128xbf16, #tpu.memory_space<vmem>>, %arg6: memref<4x4x64xbf16, #tpu.memory_space<vmem>>, %arg7: memref<4x128xf32, #tpu.memory_space<vmem>>) attributes {dimension_semantics = [#tpu.dimension_semantics<parallel>, #tpu.dimension_semantics<parallel>, #tpu.dimension_semantics<arbitrary>], iteration_bounds = array<i64: 2, 1, 1>, scalar_prefetch = 0 : i64, scratch_operands = 2 : i64, tpu.core_type = #tpu.core_type<tc>, window_params = [{transform_indices = @transform_0, window_bounds = array<i64: 1, 3, 3, 64>}, {transform_indices = @transform_1, window_bounds = array<i64: 4, 64, 128>}, {transform_indices = @transform_2, window_bounds = array<i64: 1, 4, 128>}]} {
    %c2_i32 = arith.constant 2 : i32
    %0 = arith.muli %arg1, %c2_i32 : i32
    %c0_i32 = arith.constant 0 : i32
    %1 = arith.cmpi eq, %arg2, %c0_i32 : i32
    %2 = arith.extui %1 : i1 to i32
    %c0_i32_0 = arith.constant 0 : i32
    %3 = arith.cmpi ne, %2, %c0_i32_0 : i32
    scf.if %3 {
      %c0_i32_45 = arith.constant 0 : i32
      %44 = arith.addi %0, %c0_i32_45 : i32
      %c0_46 = arith.constant 0 : index
      %45 = arith.index_cast %44 : i32 to index
      %c0_47 = arith.constant 0 : index
      %c0_48 = arith.constant 0 : index
      %46 = vector.load %arg3[%c0_46, %45, %c0_47, %c0_48] : memref<1x3x3x64xbf16, #tpu.memory_space<vmem>>, vector<1x2x2x64xbf16>
      %47 = vector.shape_cast %46 : vector<1x2x2x64xbf16> to vector<2x2x64xbf16>
      %48 = vector.shape_cast %47 : vector<2x2x64xbf16> to vector<4x64xbf16>
      %c0_49 = arith.constant 0 : index
      %c0_50 = arith.constant 0 : index
      %c0_51 = arith.constant 0 : index
      %49 = vector.load %arg6[%c0_49, %c0_50, %c0_51] : memref<4x4x64xbf16, #tpu.memory_space<vmem>>, vector<1x4x64xbf16>
      %50 = vector.shape_cast %49 : vector<1x4x64xbf16> to vector<4x64xbf16>
      %51 = vector.shape_cast %48 : vector<4x64xbf16> to vector<1x4x64xbf16>
      tpu.vector_store %arg6[%c0_49, %c0_50, %c0_51], %51 {strides = array<i32>} : memref<4x4x64xbf16, #tpu.memory_space<vmem>>, vector<1x4x64xbf16>,
      %c0_i32_52 = arith.constant 0 : i32
      %52 = arith.addi %0, %c0_i32_52 : i32
      %c0_53 = arith.constant 0 : index
      %53 = arith.index_cast %52 : i32 to index
      %c1_54 = arith.constant 1 : index
      %c0_55 = arith.constant 0 : index
      %54 = vector.load %arg3[%c0_53, %53, %c1_54, %c0_55] : memref<1x3x3x64xbf16, #tpu.memory_space<vmem>>, vector<1x2x2x64xbf16>
      %55 = vector.shape_cast %54 : vector<1x2x2x64xbf16> to vector<2x2x64xbf16>
      %56 = vector.shape_cast %55 : vector<2x2x64xbf16> to vector<4x64xbf16>
      %c1_56 = arith.constant 1 : index
      %c0_57 = arith.constant 0 : index
      %c0_58 = arith.constant 0 : index
      %57 = vector.load %arg6[%c1_56, %c0_57, %c0_58] : memref<4x4x64xbf16, #tpu.memory_space<vmem>>, vector<1x4x64xbf16>
      %58 = vector.shape_cast %57 : vector<1x4x64xbf16> to vector<4x64xbf16>
      %59 = vector.shape_cast %56 : vector<4x64xbf16> to vector<1x4x64xbf16>
      tpu.vector_store %arg6[%c1_56, %c0_57, %c0_58], %59 {strides = array<i32>} : memref<4x4x64xbf16, #tpu.memory_space<vmem>>, vector<1x4x64xbf16>,
      %c1_i32 = arith.constant 1 : i32
      %60 = arith.addi %0, %c1_i32 : i32
      %c0_59 = arith.constant 0 : index
      %61 = arith.index_cast %60 : i32 to index
      %c0_60 = arith.constant 0 : index
      %c0_61 = arith.constant 0 : index
      %62 = vector.load %arg3[%c0_59, %61, %c0_60, %c0_61] : memref<1x3x3x64xbf16, #tpu.memory_space<vmem>>, vector<1x2x2x64xbf16>
      %63 = vector.shape_cast %62 : vector<1x2x2x64xbf16> to vector<2x2x64xbf16>
      %64 = vector.shape_cast %63 : vector<2x2x64xbf16> to vector<4x64xbf16>
      %c2_62 = arith.constant 2 : index
      %c0_63 = arith.constant 0 : index
      %c0_64 = arith.constant 0 : index
      %65 = vector.load %arg6[%c2_62, %c0_63, %c0_64] : memref<4x4x64xbf16, #tpu.memory_space<vmem>>, vector<1x4x64xbf16>
      %66 = vector.shape_cast %65 : vector<1x4x64xbf16> to vector<4x64xbf16>
      %67 = vector.shape_cast %64 : vector<4x64xbf16> to vector<1x4x64xbf16>
      tpu.vector_store %arg6[%c2_62, %c0_63, %c0_64], %67 {strides = array<i32>} : memref<4x4x64xbf16, #tpu.memory_space<vmem>>, vector<1x4x64xbf16>,
      %c1_i32_65 = arith.constant 1 : i32
      %68 = arith.addi %0, %c1_i32_65 : i32
      %c0_66 = arith.constant 0 : index
      %69 = arith.index_cast %68 : i32 to index
      %c1_67 = arith.constant 1 : index
      %c0_68 = arith.constant 0 : index
      %70 = vector.load %arg3[%c0_66, %69, %c1_67, %c0_68] : memref<1x3x3x64xbf16, #tpu.memory_space<vmem>>, vector<1x2x2x64xbf16>
      %71 = vector.shape_cast %70 : vector<1x2x2x64xbf16> to vector<2x2x64xbf16>
      %72 = vector.shape_cast %71 : vector<2x2x64xbf16> to vector<4x64xbf16>
      %c3_69 = arith.constant 3 : index
      %c0_70 = arith.constant 0 : index
      %c0_71 = arith.constant 0 : index
      %73 = vector.load %arg6[%c3_69, %c0_70, %c0_71] : memref<4x4x64xbf16, #tpu.memory_space<vmem>>, vector<1x4x64xbf16>
      %74 = vector.shape_cast %73 : vector<1x4x64xbf16> to vector<4x64xbf16>
      %75 = vector.shape_cast %72 : vector<4x64xbf16> to vector<1x4x64xbf16>
      tpu.vector_store %arg6[%c3_69, %c0_70, %c0_71], %75 {strides = array<i32>} : memref<4x4x64xbf16, #tpu.memory_space<vmem>>, vector<1x4x64xbf16>,
    } else {
    }
    %c0 = arith.constant 0 : index
    %c0_1 = arith.constant 0 : index
    %c0_2 = arith.constant 0 : index
    %4 = vector.load %arg6[%c0, %c0_1, %c0_2] : memref<4x4x64xbf16, #tpu.memory_space<vmem>>, vector<1x4x64xbf16>
    %5 = vector.shape_cast %4 : vector<1x4x64xbf16> to vector<4x64xbf16>
    %c0_3 = arith.constant 0 : index
    %c0_4 = arith.constant 0 : index
    %c0_5 = arith.constant 0 : index
    %6 = vector.load %arg4[%c0_3, %c0_4, %c0_5] : memref<4x64x128xbf16, #tpu.memory_space<vmem>>, vector<1x64x128xbf16>
    %7 = vector.shape_cast %6 : vector<1x64x128xbf16> to vector<64x128xbf16>
    %cst = arith.constant dense<0.000000e+00> : vector<4x128xf32>
    %8 = tpu.matmul %5, %7, %cst {dimension_numbers = #tpu.dot_dimension_numbers<[1], [0], [0], [1], [0, 0, 1, 1], [], []>} : vector<4x64xbf16>, vector<64x128xbf16>, vector<4x128xf32> -> vector<4x128xf32>
    %c0_6 = arith.constant 0 : index
    %c0_7 = arith.constant 0 : index
    %9 = vector.load %arg7[%c0_6, %c0_7] : memref<4x128xf32, #tpu.memory_space<vmem>>, vector<4x128xf32>
    tpu.vector_store %arg7[%c0_6, %c0_7], %8 {strides = array<i32>} : memref<4x128xf32, #tpu.memory_space<vmem>>, vector<4x128xf32>,
    %c0_8 = arith.constant 0 : index
    %c0_9 = arith.constant 0 : index
    %10 = vector.load %arg7[%c0_8, %c0_9] : memref<4x128xf32, #tpu.memory_space<vmem>>, vector<4x128xf32>
    %c1 = arith.constant 1 : index
    %c0_10 = arith.constant 0 : index
    %c0_11 = arith.constant 0 : index
    %11 = vector.load %arg6[%c1, %c0_10, %c0_11] : memref<4x4x64xbf16, #tpu.memory_space<vmem>>, vector<1x4x64xbf16>
    %12 = vector.shape_cast %11 : vector<1x4x64xbf16> to vector<4x64xbf16>
    %c1_12 = arith.constant 1 : index
    %c0_13 = arith.constant 0 : index
    %c0_14 = arith.constant 0 : index
    %13 = vector.load %arg4[%c1_12, %c0_13, %c0_14] : memref<4x64x128xbf16, #tpu.memory_space<vmem>>, vector<1x64x128xbf16>
    %14 = vector.shape_cast %13 : vector<1x64x128xbf16> to vector<64x128xbf16>
    %cst_15 = arith.constant dense<0.000000e+00> : vector<4x128xf32>
    %15 = tpu.matmul %12, %14, %cst_15 {dimension_numbers = #tpu.dot_dimension_numbers<[1], [0], [0], [1], [0, 0, 1, 1], [], []>} : vector<4x64xbf16>, vector<64x128xbf16>, vector<4x128xf32> -> vector<4x128xf32>
    %16 = arith.addf %10, %15 : vector<4x128xf32>
    %c0_16 = arith.constant 0 : index
    %c0_17 = arith.constant 0 : index
    %17 = vector.load %arg7[%c0_16, %c0_17] : memref<4x128xf32, #tpu.memory_space<vmem>>, vector<4x128xf32>
    tpu.vector_store %arg7[%c0_16, %c0_17], %16 {strides = array<i32>} : memref<4x128xf32, #tpu.memory_space<vmem>>, vector<4x128xf32>,
    %c0_18 = arith.constant 0 : index
    %c0_19 = arith.constant 0 : index
    %18 = vector.load %arg7[%c0_18, %c0_19] : memref<4x128xf32, #tpu.memory_space<vmem>>, vector<4x128xf32>
    %c2 = arith.constant 2 : index
    %c0_20 = arith.constant 0 : index
    %c0_21 = arith.constant 0 : index
    %19 = vector.load %arg6[%c2, %c0_20, %c0_21] : memref<4x4x64xbf16, #tpu.memory_space<vmem>>, vector<1x4x64xbf16>
    %20 = vector.shape_cast %19 : vector<1x4x64xbf16> to vector<4x64xbf16>
    %c2_22 = arith.constant 2 : index
    %c0_23 = arith.constant 0 : index
    %c0_24 = arith.constant 0 : index
    %21 = vector.load %arg4[%c2_22, %c0_23, %c0_24] : memref<4x64x128xbf16, #tpu.memory_space<vmem>>, vector<1x64x128xbf16>
    %22 = vector.shape_cast %21 : vector<1x64x128xbf16> to vector<64x128xbf16>
    %cst_25 = arith.constant dense<0.000000e+00> : vector<4x128xf32>
    %23 = tpu.matmul %20, %22, %cst_25 {dimension_numbers = #tpu.dot_dimension_numbers<[1], [0], [0], [1], [0, 0, 1, 1], [], []>} : vector<4x64xbf16>, vector<64x128xbf16>, vector<4x128xf32> -> vector<4x128xf32>
    %24 = arith.addf %18, %23 : vector<4x128xf32>
    %c0_26 = arith.constant 0 : index
    %c0_27 = arith.constant 0 : index
    %25 = vector.load %arg7[%c0_26, %c0_27] : memref<4x128xf32, #tpu.memory_space<vmem>>, vector<4x128xf32>
    tpu.vector_store %arg7[%c0_26, %c0_27], %24 {strides = array<i32>} : memref<4x128xf32, #tpu.memory_space<vmem>>, vector<4x128xf32>,
    %c0_28 = arith.constant 0 : index
    %c0_29 = arith.constant 0 : index
    %26 = vector.load %arg7[%c0_28, %c0_29] : memref<4x128xf32, #tpu.memory_space<vmem>>, vector<4x128xf32>
    %c3 = arith.constant 3 : index
    %c0_30 = arith.constant 0 : index
    %c0_31 = arith.constant 0 : index
    %27 = vector.load %arg6[%c3, %c0_30, %c0_31] : memref<4x4x64xbf16, #tpu.memory_space<vmem>>, vector<1x4x64xbf16>
    %28 = vector.shape_cast %27 : vector<1x4x64xbf16> to vector<4x64xbf16>
    %c3_32 = arith.constant 3 : index
    %c0_33 = arith.constant 0 : index
    %c0_34 = arith.constant 0 : index
    %29 = vector.load %arg4[%c3_32, %c0_33, %c0_34] : memref<4x64x128xbf16, #tpu.memory_space<vmem>>, vector<1x64x128xbf16>
    %30 = vector.shape_cast %29 : vector<1x64x128xbf16> to vector<64x128xbf16>
    %cst_35 = arith.constant dense<0.000000e+00> : vector<4x128xf32>
    %31 = tpu.matmul %28, %30, %cst_35 {dimension_numbers = #tpu.dot_dimension_numbers<[1], [0], [0], [1], [0, 0, 1, 1], [], []>} : vector<4x64xbf16>, vector<64x128xbf16>, vector<4x128xf32> -> vector<4x128xf32>
    %32 = arith.addf %26, %31 : vector<4x128xf32>
    %c0_36 = arith.constant 0 : index
    %c0_37 = arith.constant 0 : index
    %33 = vector.load %arg7[%c0_36, %c0_37] : memref<4x128xf32, #tpu.memory_space<vmem>>, vector<4x128xf32>
    tpu.vector_store %arg7[%c0_36, %c0_37], %32 {strides = array<i32>} : memref<4x128xf32, #tpu.memory_space<vmem>>, vector<4x128xf32>,
    %c0_38 = arith.constant 0 : index
    %c0_39 = arith.constant 0 : index
    %34 = vector.load %arg7[%c0_38, %c0_39] : memref<4x128xf32, #tpu.memory_space<vmem>>, vector<4x128xf32>
    %cst_40 = arith.constant 0.000000e+00 : f32
    %35 = vector.broadcast %cst_40 : f32 to vector<4x128xf32>
    %36 = arith.cmpf oge, %34, %35 : vector<4x128xf32>
    %cst_41 = arith.constant 0.00999999977 : f32
    %37 = vector.broadcast %cst_41 : f32 to vector<4x128xf32>
    %38 = arith.mulf %37, %34 : vector<4x128xf32>
    %39 = arith.select %36, %34, %38 : vector<4x128xi1>, vector<4x128xf32>
    %40 = arith.truncf %39 : vector<4x128xf32> to vector<4x128xbf16>
    %c0_42 = arith.constant 0 : index
    %c0_43 = arith.constant 0 : index
    %c0_44 = arith.constant 0 : index
    %41 = vector.load %arg5[%c0_42, %c0_43, %c0_44] : memref<1x4x128xbf16, #tpu.memory_space<vmem>>, vector<1x4x128xbf16>
    %42 = vector.shape_cast %41 : vector<1x4x128xbf16> to vector<4x128xbf16>
    %43 = vector.shape_cast %40 : vector<4x128xbf16> to vector<1x4x128xbf16>
    tpu.vector_store %arg5[%c0_42, %c0_43, %c0_44], %43 {strides = array<i32>} : memref<1x4x128xbf16, #tpu.memory_space<vmem>>, vector<1x4x128xbf16>,
    return
  }
  func.func @transform_0(%arg0: i32, %arg1: i32, %arg2: i32) -> (i32, i32, i32, i32) {
    %c0_i32 = arith.constant 0 : i32
    %c0_i32_0 = arith.constant 0 : i32
    %c0_i32_1 = arith.constant 0 : i32
    %c0_i32_2 = arith.constant 0 : i32
    return %arg0, %c0_i32, %c0_i32_0, %c0_i32_1 : i32, i32, i32, i32
  }
  func.func @transform_1(%arg0: i32, %arg1: i32, %arg2: i32) -> (i32, i32, i32) {
    %c0_i32 = arith.constant 0 : i32
    %c0_i32_0 = arith.constant 0 : i32
    %c0_i32_1 = arith.constant 0 : i32
    return %c0_i32, %c0_i32_0, %arg2 : i32, i32, i32
  }
  func.func @transform_2(%arg0: i32, %arg1: i32, %arg2: i32) -> (i32, i32, i32) {
    %c0_i32 = arith.constant 0 : i32
    return %arg0, %arg1, %arg2 : i32, i32, i32
  }
}

module attributes {stable_mosaic.version = 11 : i64} {
  func.func @kernel(%arg0: i32, %arg1: memref<1x4x4x32xbf16, #tpu.memory_space<vmem>>, %arg2: memref<9x32x128xbf16, #tpu.memory_space<vmem>>, %arg3: memref<4x32x128xbf16, #tpu.memory_space<vmem>>, %arg4: memref<1x4x128xf32, #tpu.memory_space<vmem>>, %arg5: memref<1x1x128xf32, #tpu.memory_space<vmem>>) attributes {dimension_semantics = [#tpu.dimension_semantics<parallel>], iteration_bounds = array<i64: 2>, scalar_prefetch = 0 : i64, scratch_operands = 0 : i64, tpu.core_type = #tpu.core_type<tc>, window_params = [{transform_indices = @transform_0, window_bounds = array<i64: 1, 4, 4, 32>}, {pipeline_mode = #tpu.pipeline_mode<synchronous>, transform_indices = @transform_1, window_bounds = array<i64: 9, 32, 128>}, {pipeline_mode = #tpu.pipeline_mode<synchronous>, transform_indices = @transform_2, window_bounds = array<i64: 4, 32, 128>}, {transform_indices = @transform_3, window_bounds = array<i64: 1, 4, 128>}, {transform_indices = @transform_4, window_bounds = array<i64: 1, 1, 128>}]} {
    %c0 = arith.constant 0 : index
    %c0_0 = arith.constant 0 : index
    %c0_1 = arith.constant 0 : index
    %c0_2 = arith.constant 0 : index
    %0 = vector.load %arg1[%c0, %c0_0, %c0_1, %c0_2] : memref<1x4x4x32xbf16, #tpu.memory_space<vmem>>, vector<1x2x2x32xbf16>
    %1 = vector.shape_cast %0 : vector<1x2x2x32xbf16> to vector<2x2x32xbf16>
    %2 = vector.shape_cast %1 : vector<2x2x32xbf16> to vector<4x32xbf16>
    %c0_3 = arith.constant 0 : index
    %c0_4 = arith.constant 0 : index
    %c0_5 = arith.constant 0 : index
    %3 = vector.load %arg2[%c0_3, %c0_4, %c0_5] : memref<9x32x128xbf16, #tpu.memory_space<vmem>>, vector<1x32x128xbf16>
    %4 = vector.shape_cast %3 : vector<1x32x128xbf16> to vector<32x128xbf16>
    %cst = arith.constant dense<0.000000e+00> : vector<4x128xf32>
    %5 = tpu.matmul %2, %4, %cst {dimension_numbers = #tpu.dot_dimension_numbers<[1], [0], [0], [1], [0, 0, 1, 1], [], []>} : vector<4x32xbf16>, vector<32x128xbf16>, vector<4x128xf32> -> vector<4x128xf32>
    %c0_6 = arith.constant 0 : index
    %c0_7 = arith.constant 0 : index
    %c1 = arith.constant 1 : index
    %c0_8 = arith.constant 0 : index
    %6 = vector.load %arg1[%c0_6, %c0_7, %c1, %c0_8] : memref<1x4x4x32xbf16, #tpu.memory_space<vmem>>, vector<1x2x2x32xbf16>
    %7 = vector.shape_cast %6 : vector<1x2x2x32xbf16> to vector<2x2x32xbf16>
    %8 = vector.shape_cast %7 : vector<2x2x32xbf16> to vector<4x32xbf16>
    %c1_9 = arith.constant 1 : index
    %c0_10 = arith.constant 0 : index
    %c0_11 = arith.constant 0 : index
    %9 = vector.load %arg2[%c1_9, %c0_10, %c0_11] : memref<9x32x128xbf16, #tpu.memory_space<vmem>>, vector<1x32x128xbf16>
    %10 = vector.shape_cast %9 : vector<1x32x128xbf16> to vector<32x128xbf16>
    %cst_12 = arith.constant dense<0.000000e+00> : vector<4x128xf32>
    %11 = tpu.matmul %8, %10, %cst_12 {dimension_numbers = #tpu.dot_dimension_numbers<[1], [0], [0], [1], [0, 0, 1, 1], [], []>} : vector<4x32xbf16>, vector<32x128xbf16>, vector<4x128xf32> -> vector<4x128xf32>
    %12 = arith.addf %5, %11 : vector<4x128xf32>
    %c0_13 = arith.constant 0 : index
    %c0_14 = arith.constant 0 : index
    %c2 = arith.constant 2 : index
    %c0_15 = arith.constant 0 : index
    %13 = vector.load %arg1[%c0_13, %c0_14, %c2, %c0_15] : memref<1x4x4x32xbf16, #tpu.memory_space<vmem>>, vector<1x2x2x32xbf16>
    %14 = vector.shape_cast %13 : vector<1x2x2x32xbf16> to vector<2x2x32xbf16>
    %15 = vector.shape_cast %14 : vector<2x2x32xbf16> to vector<4x32xbf16>
    %c2_16 = arith.constant 2 : index
    %c0_17 = arith.constant 0 : index
    %c0_18 = arith.constant 0 : index
    %16 = vector.load %arg2[%c2_16, %c0_17, %c0_18] : memref<9x32x128xbf16, #tpu.memory_space<vmem>>, vector<1x32x128xbf16>
    %17 = vector.shape_cast %16 : vector<1x32x128xbf16> to vector<32x128xbf16>
    %cst_19 = arith.constant dense<0.000000e+00> : vector<4x128xf32>
    %18 = tpu.matmul %15, %17, %cst_19 {dimension_numbers = #tpu.dot_dimension_numbers<[1], [0], [0], [1], [0, 0, 1, 1], [], []>} : vector<4x32xbf16>, vector<32x128xbf16>, vector<4x128xf32> -> vector<4x128xf32>
    %19 = arith.addf %12, %18 : vector<4x128xf32>
    %c0_20 = arith.constant 0 : index
    %c1_21 = arith.constant 1 : index
    %c0_22 = arith.constant 0 : index
    %c0_23 = arith.constant 0 : index
    %20 = vector.load %arg1[%c0_20, %c1_21, %c0_22, %c0_23] : memref<1x4x4x32xbf16, #tpu.memory_space<vmem>>, vector<1x2x2x32xbf16>
    %21 = vector.shape_cast %20 : vector<1x2x2x32xbf16> to vector<2x2x32xbf16>
    %22 = vector.shape_cast %21 : vector<2x2x32xbf16> to vector<4x32xbf16>
    %c3 = arith.constant 3 : index
    %c0_24 = arith.constant 0 : index
    %c0_25 = arith.constant 0 : index
    %23 = vector.load %arg2[%c3, %c0_24, %c0_25] : memref<9x32x128xbf16, #tpu.memory_space<vmem>>, vector<1x32x128xbf16>
    %24 = vector.shape_cast %23 : vector<1x32x128xbf16> to vector<32x128xbf16>
    %cst_26 = arith.constant dense<0.000000e+00> : vector<4x128xf32>
    %25 = tpu.matmul %22, %24, %cst_26 {dimension_numbers = #tpu.dot_dimension_numbers<[1], [0], [0], [1], [0, 0, 1, 1], [], []>} : vector<4x32xbf16>, vector<32x128xbf16>, vector<4x128xf32> -> vector<4x128xf32>
    %26 = arith.addf %19, %25 : vector<4x128xf32>
    %c0_27 = arith.constant 0 : index
    %c1_28 = arith.constant 1 : index
    %c1_29 = arith.constant 1 : index
    %c0_30 = arith.constant 0 : index
    %27 = vector.load %arg1[%c0_27, %c1_28, %c1_29, %c0_30] : memref<1x4x4x32xbf16, #tpu.memory_space<vmem>>, vector<1x2x2x32xbf16>
    %28 = vector.shape_cast %27 : vector<1x2x2x32xbf16> to vector<2x2x32xbf16>
    %29 = vector.shape_cast %28 : vector<2x2x32xbf16> to vector<4x32xbf16>
    %c4 = arith.constant 4 : index
    %c0_31 = arith.constant 0 : index
    %c0_32 = arith.constant 0 : index
    %30 = vector.load %arg2[%c4, %c0_31, %c0_32] : memref<9x32x128xbf16, #tpu.memory_space<vmem>>, vector<1x32x128xbf16>
    %31 = vector.shape_cast %30 : vector<1x32x128xbf16> to vector<32x128xbf16>
    %cst_33 = arith.constant dense<0.000000e+00> : vector<4x128xf32>
    %32 = tpu.matmul %29, %31, %cst_33 {dimension_numbers = #tpu.dot_dimension_numbers<[1], [0], [0], [1], [0, 0, 1, 1], [], []>} : vector<4x32xbf16>, vector<32x128xbf16>, vector<4x128xf32> -> vector<4x128xf32>
    %33 = arith.addf %26, %32 : vector<4x128xf32>
    %c0_34 = arith.constant 0 : index
    %c1_35 = arith.constant 1 : index
    %c2_36 = arith.constant 2 : index
    %c0_37 = arith.constant 0 : index
    %34 = vector.load %arg1[%c0_34, %c1_35, %c2_36, %c0_37] : memref<1x4x4x32xbf16, #tpu.memory_space<vmem>>, vector<1x2x2x32xbf16>
    %35 = vector.shape_cast %34 : vector<1x2x2x32xbf16> to vector<2x2x32xbf16>
    %36 = vector.shape_cast %35 : vector<2x2x32xbf16> to vector<4x32xbf16>
    %c5 = arith.constant 5 : index
    %c0_38 = arith.constant 0 : index
    %c0_39 = arith.constant 0 : index
    %37 = vector.load %arg2[%c5, %c0_38, %c0_39] : memref<9x32x128xbf16, #tpu.memory_space<vmem>>, vector<1x32x128xbf16>
    %38 = vector.shape_cast %37 : vector<1x32x128xbf16> to vector<32x128xbf16>
    %cst_40 = arith.constant dense<0.000000e+00> : vector<4x128xf32>
    %39 = tpu.matmul %36, %38, %cst_40 {dimension_numbers = #tpu.dot_dimension_numbers<[1], [0], [0], [1], [0, 0, 1, 1], [], []>} : vector<4x32xbf16>, vector<32x128xbf16>, vector<4x128xf32> -> vector<4x128xf32>
    %40 = arith.addf %33, %39 : vector<4x128xf32>
    %c0_41 = arith.constant 0 : index
    %c2_42 = arith.constant 2 : index
    %c0_43 = arith.constant 0 : index
    %c0_44 = arith.constant 0 : index
    %41 = vector.load %arg1[%c0_41, %c2_42, %c0_43, %c0_44] : memref<1x4x4x32xbf16, #tpu.memory_space<vmem>>, vector<1x2x2x32xbf16>
    %42 = vector.shape_cast %41 : vector<1x2x2x32xbf16> to vector<2x2x32xbf16>
    %43 = vector.shape_cast %42 : vector<2x2x32xbf16> to vector<4x32xbf16>
    %c6 = arith.constant 6 : index
    %c0_45 = arith.constant 0 : index
    %c0_46 = arith.constant 0 : index
    %44 = vector.load %arg2[%c6, %c0_45, %c0_46] : memref<9x32x128xbf16, #tpu.memory_space<vmem>>, vector<1x32x128xbf16>
    %45 = vector.shape_cast %44 : vector<1x32x128xbf16> to vector<32x128xbf16>
    %cst_47 = arith.constant dense<0.000000e+00> : vector<4x128xf32>
    %46 = tpu.matmul %43, %45, %cst_47 {dimension_numbers = #tpu.dot_dimension_numbers<[1], [0], [0], [1], [0, 0, 1, 1], [], []>} : vector<4x32xbf16>, vector<32x128xbf16>, vector<4x128xf32> -> vector<4x128xf32>
    %47 = arith.addf %40, %46 : vector<4x128xf32>
    %c0_48 = arith.constant 0 : index
    %c2_49 = arith.constant 2 : index
    %c1_50 = arith.constant 1 : index
    %c0_51 = arith.constant 0 : index
    %48 = vector.load %arg1[%c0_48, %c2_49, %c1_50, %c0_51] : memref<1x4x4x32xbf16, #tpu.memory_space<vmem>>, vector<1x2x2x32xbf16>
    %49 = vector.shape_cast %48 : vector<1x2x2x32xbf16> to vector<2x2x32xbf16>
    %50 = vector.shape_cast %49 : vector<2x2x32xbf16> to vector<4x32xbf16>
    %c7 = arith.constant 7 : index
    %c0_52 = arith.constant 0 : index
    %c0_53 = arith.constant 0 : index
    %51 = vector.load %arg2[%c7, %c0_52, %c0_53] : memref<9x32x128xbf16, #tpu.memory_space<vmem>>, vector<1x32x128xbf16>
    %52 = vector.shape_cast %51 : vector<1x32x128xbf16> to vector<32x128xbf16>
    %cst_54 = arith.constant dense<0.000000e+00> : vector<4x128xf32>
    %53 = tpu.matmul %50, %52, %cst_54 {dimension_numbers = #tpu.dot_dimension_numbers<[1], [0], [0], [1], [0, 0, 1, 1], [], []>} : vector<4x32xbf16>, vector<32x128xbf16>, vector<4x128xf32> -> vector<4x128xf32>
    %54 = arith.addf %47, %53 : vector<4x128xf32>
    %c0_55 = arith.constant 0 : index
    %c2_56 = arith.constant 2 : index
    %c2_57 = arith.constant 2 : index
    %c0_58 = arith.constant 0 : index
    %55 = vector.load %arg1[%c0_55, %c2_56, %c2_57, %c0_58] : memref<1x4x4x32xbf16, #tpu.memory_space<vmem>>, vector<1x2x2x32xbf16>
    %56 = vector.shape_cast %55 : vector<1x2x2x32xbf16> to vector<2x2x32xbf16>
    %57 = vector.shape_cast %56 : vector<2x2x32xbf16> to vector<4x32xbf16>
    %c8 = arith.constant 8 : index
    %c0_59 = arith.constant 0 : index
    %c0_60 = arith.constant 0 : index
    %58 = vector.load %arg2[%c8, %c0_59, %c0_60] : memref<9x32x128xbf16, #tpu.memory_space<vmem>>, vector<1x32x128xbf16>
    %59 = vector.shape_cast %58 : vector<1x32x128xbf16> to vector<32x128xbf16>
    %cst_61 = arith.constant dense<0.000000e+00> : vector<4x128xf32>
    %60 = tpu.matmul %57, %59, %cst_61 {dimension_numbers = #tpu.dot_dimension_numbers<[1], [0], [0], [1], [0, 0, 1, 1], [], []>} : vector<4x32xbf16>, vector<32x128xbf16>, vector<4x128xf32> -> vector<4x128xf32>
    %61 = arith.addf %54, %60 : vector<4x128xf32>
    %c0_62 = arith.constant 0 : index
    %c0_63 = arith.constant 0 : index
    %c0_64 = arith.constant 0 : index
    %62 = vector.load %arg4[%c0_62, %c0_63, %c0_64] : memref<1x4x128xf32, #tpu.memory_space<vmem>>, vector<1x4x128xf32>
    %63 = vector.shape_cast %62 : vector<1x4x128xf32> to vector<4x128xf32>
    %64 = vector.shape_cast %61 : vector<4x128xf32> to vector<1x4x128xf32>
    tpu.vector_store %arg4[%c0_62, %c0_63, %c0_64], %64 {strides = array<i32>} : memref<1x4x128xf32, #tpu.memory_space<vmem>>, vector<1x4x128xf32>,
    %c0_65 = arith.constant 0 : index
    %c1_66 = arith.constant 1 : index
    %c1_67 = arith.constant 1 : index
    %c0_68 = arith.constant 0 : index
    %65 = vector.load %arg1[%c0_65, %c1_66, %c1_67, %c0_68] : memref<1x4x4x32xbf16, #tpu.memory_space<vmem>>, vector<1x1x1x32xbf16>
    %66 = vector.shape_cast %65 : vector<1x1x1x32xbf16> to vector<1x32xbf16>
    %c0_69 = arith.constant 0 : index
    %c0_70 = arith.constant 0 : index
    %c0_71 = arith.constant 0 : index
    %67 = vector.load %arg3[%c0_69, %c0_70, %c0_71] : memref<4x32x128xbf16, #tpu.memory_space<vmem>>, vector<1x32x128xbf16>
    %68 = vector.shape_cast %67 : vector<1x32x128xbf16> to vector<32x128xbf16>
    %cst_72 = arith.constant dense<0.000000e+00> : vector<1x128xf32>
    %69 = tpu.matmul %66, %68, %cst_72 {dimension_numbers = #tpu.dot_dimension_numbers<[1], [0], [0], [1], [0, 0, 1, 1], [], []>} : vector<1x32xbf16>, vector<32x128xbf16>, vector<1x128xf32> -> vector<1x128xf32>
    %c0_73 = arith.constant 0 : index
    %c1_74 = arith.constant 1 : index
    %c2_75 = arith.constant 2 : index
    %c0_76 = arith.constant 0 : index
    %70 = vector.load %arg1[%c0_73, %c1_74, %c2_75, %c0_76] : memref<1x4x4x32xbf16, #tpu.memory_space<vmem>>, vector<1x1x1x32xbf16>
    %71 = vector.shape_cast %70 : vector<1x1x1x32xbf16> to vector<1x32xbf16>
    %c1_77 = arith.constant 1 : index
    %c0_78 = arith.constant 0 : index
    %c0_79 = arith.constant 0 : index
    %72 = vector.load %arg3[%c1_77, %c0_78, %c0_79] : memref<4x32x128xbf16, #tpu.memory_space<vmem>>, vector<1x32x128xbf16>
    %73 = vector.shape_cast %72 : vector<1x32x128xbf16> to vector<32x128xbf16>
    %cst_80 = arith.constant dense<0.000000e+00> : vector<1x128xf32>
    %74 = tpu.matmul %71, %73, %cst_80 {dimension_numbers = #tpu.dot_dimension_numbers<[1], [0], [0], [1], [0, 0, 1, 1], [], []>} : vector<1x32xbf16>, vector<32x128xbf16>, vector<1x128xf32> -> vector<1x128xf32>
    %75 = arith.addf %69, %74 : vector<1x128xf32>
    %c0_81 = arith.constant 0 : index
    %c2_82 = arith.constant 2 : index
    %c1_83 = arith.constant 1 : index
    %c0_84 = arith.constant 0 : index
    %76 = vector.load %arg1[%c0_81, %c2_82, %c1_83, %c0_84] : memref<1x4x4x32xbf16, #tpu.memory_space<vmem>>, vector<1x1x1x32xbf16>
    %77 = vector.shape_cast %76 : vector<1x1x1x32xbf16> to vector<1x32xbf16>
    %c2_85 = arith.constant 2 : index
    %c0_86 = arith.constant 0 : index
    %c0_87 = arith.constant 0 : index
    %78 = vector.load %arg3[%c2_85, %c0_86, %c0_87] : memref<4x32x128xbf16, #tpu.memory_space<vmem>>, vector<1x32x128xbf16>
    %79 = vector.shape_cast %78 : vector<1x32x128xbf16> to vector<32x128xbf16>
    %cst_88 = arith.constant dense<0.000000e+00> : vector<1x128xf32>
    %80 = tpu.matmul %77, %79, %cst_88 {dimension_numbers = #tpu.dot_dimension_numbers<[1], [0], [0], [1], [0, 0, 1, 1], [], []>} : vector<1x32xbf16>, vector<32x128xbf16>, vector<1x128xf32> -> vector<1x128xf32>
    %81 = arith.addf %75, %80 : vector<1x128xf32>
    %c0_89 = arith.constant 0 : index
    %c2_90 = arith.constant 2 : index
    %c2_91 = arith.constant 2 : index
    %c0_92 = arith.constant 0 : index
    %82 = vector.load %arg1[%c0_89, %c2_90, %c2_91, %c0_92] : memref<1x4x4x32xbf16, #tpu.memory_space<vmem>>, vector<1x1x1x32xbf16>
    %83 = vector.shape_cast %82 : vector<1x1x1x32xbf16> to vector<1x32xbf16>
    %c3_93 = arith.constant 3 : index
    %c0_94 = arith.constant 0 : index
    %c0_95 = arith.constant 0 : index
    %84 = vector.load %arg3[%c3_93, %c0_94, %c0_95] : memref<4x32x128xbf16, #tpu.memory_space<vmem>>, vector<1x32x128xbf16>
    %85 = vector.shape_cast %84 : vector<1x32x128xbf16> to vector<32x128xbf16>
    %cst_96 = arith.constant dense<0.000000e+00> : vector<1x128xf32>
    %86 = tpu.matmul %83, %85, %cst_96 {dimension_numbers = #tpu.dot_dimension_numbers<[1], [0], [0], [1], [0, 0, 1, 1], [], []>} : vector<1x32xbf16>, vector<32x128xbf16>, vector<1x128xf32> -> vector<1x128xf32>
    %87 = arith.addf %81, %86 : vector<1x128xf32>
    %c0_97 = arith.constant 0 : index
    %c0_98 = arith.constant 0 : index
    %c0_99 = arith.constant 0 : index
    %88 = vector.load %arg5[%c0_97, %c0_98, %c0_99] : memref<1x1x128xf32, #tpu.memory_space<vmem>>, vector<1x1x128xf32>
    %89 = vector.shape_cast %88 : vector<1x1x128xf32> to vector<1x128xf32>
    %90 = vector.shape_cast %87 : vector<1x128xf32> to vector<1x1x128xf32>
    tpu.vector_store %arg5[%c0_97, %c0_98, %c0_99], %90 {strides = array<i32>} : memref<1x1x128xf32, #tpu.memory_space<vmem>>, vector<1x1x128xf32>,
    return
  }
  func.func @transform_0(%arg0: i32) -> (i32, i32, i32, i32) {
    %c0_i32 = arith.constant 0 : i32
    %c0_i32_0 = arith.constant 0 : i32
    %c0_i32_1 = arith.constant 0 : i32
    %c0_i32_2 = arith.constant 0 : i32
    return %arg0, %c0_i32, %c0_i32_0, %c0_i32_1 : i32, i32, i32, i32
  }
  func.func @transform_1(%arg0: i32) -> (i32, i32, i32) {
    %c0_i32 = arith.constant 0 : i32
    %c0_i32_0 = arith.constant 0 : i32
    %c0_i32_1 = arith.constant 0 : i32
    %c0_i32_2 = arith.constant 0 : i32
    return %c0_i32, %c0_i32_0, %c0_i32_1 : i32, i32, i32
  }
  func.func @transform_2(%arg0: i32) -> (i32, i32, i32) {
    %c0_i32 = arith.constant 0 : i32
    %c0_i32_0 = arith.constant 0 : i32
    %c0_i32_1 = arith.constant 0 : i32
    %c0_i32_2 = arith.constant 0 : i32
    return %c0_i32, %c0_i32_0, %c0_i32_1 : i32, i32, i32
  }
  func.func @transform_3(%arg0: i32) -> (i32, i32, i32) {
    %c0_i32 = arith.constant 0 : i32
    %c0_i32_0 = arith.constant 0 : i32
    %c0_i32_1 = arith.constant 0 : i32
    return %arg0, %c0_i32, %c0_i32_0 : i32, i32, i32
  }
  func.func @transform_4(%arg0: i32) -> (i32, i32, i32) {
    %c0_i32 = arith.constant 0 : i32
    %c0_i32_0 = arith.constant 0 : i32
    %c0_i32_1 = arith.constant 0 : i32
    return %arg0, %c0_i32, %c0_i32_0 : i32, i32, i32
  }
}

</mosaic_0001>

<llo_original>
// kernel: _lambda_.5
$region0: #{_lambda_.5}
  #allocation0 [shape = 'u32[]', space=smem, size = 0x4, offset = 0x4, fixed_abs, tag = 'smem constant byte address 0x4 - core index']
  #allocation1 [shape = 'u32[144,128]{1,0:T(1,128)}', space=vmem, size = 0x12000, scoped, tag = 'internal scratch']
  #allocation2 [shape = 'bf16[4,16,32]{2,1,0:T(16,128)(2,1)}', space=vmem, size = 0x4000, scoped, tag = 'scratch operand']
  #allocation3 [shape = 'f32[16,128]{1,0:T(8,128)}', space=vmem, size = 0x2000, scoped, tag = 'scratch operand']
  %s0 = inlined_call_operand.vmem [shape: bf16[2,5,5,32], index: 0, kind: input, shape index: {}]
  %s1 = inlined_call_operand.vmem [shape: bf16[4,32,128], index: 1, kind: input, shape index: {}]
  %s2 = inlined_call_operand.vmem [shape: bf16[2,16,128], index: 2, kind: output, shape index: {}]
  %s3 = sld [smem:[#allocation0]]
  $region45: #{_lambda_.5} parent=0
    _
  %s5 = ssub.s32 1, %s3
  %s6 = scalar_select 0, %s5, %s3
  loop: start=0, step=1, limit=4
  $region2: #{_lambda_.5} parent=0 // loop_pre_header
    _
  $region3: #{_lambda_.5} parent=0 // loop_header
    %s8 = sphi 0, %s12
    %p9 = scmp.ge.s32.totalorder %s8, 4
    %s15 = sphi 0, %s34
    %s16 = sphi 0, %s30
    %s17 = sphi 0, %s26
    %s18 = sphi 0, %s15
    %s19 = sphi 0, %s16
    %s20 = sphi 0, %s17
    %s21 = sphi 0, %s18
    %s22 = sphi 0, %s19
    %s23 = sphi 0, %s20
    %s37 = sphi 0, %s39
    %s40 = sphi 0, %s37
    %s41 = sphi 0, %s40
    %s57 = sphi 0, %s41
    %s63 = sphi 0, %s65
    %s66 = sphi 0, %s63
    %s67 = sphi 0, %s66
    %s83 = sphi 0, %s67
    %s93 = sphi 0, %s95
    %s96 = sphi 0, %s93
    %s97 = sphi 0, %s96
    %s113 = sphi 0, %s97
  $region4: #{_lambda_.5} parent=0 // loop_header_branch
    %11 = sbr.rel (%p9) target = $region8
  $region5: #{_lambda_.5} parent=0 // loop_body
    %s13 = ssub.s32 %s8, 1
    %s14 = ssub.s32 %s8, 2
    %s24 = sadd.s32 1, %s17
    %p25 = scmp.ge.s32.totalorder %s24, 1
    %s26 = scalar_select %p25, 0, %s24
    %s27 = sadd.s32 1, %s16
    %s28 = scalar_select %p25, %s27, %s16
    %p29 = scmp.ge.s32.totalorder %s28, 1
    %s30 = scalar_select %p29, 0, %s28
    %s31 = sadd.s32 1, %s15
    %s32 = scalar_select %p29, %s31, %s15
    %p33 = scmp.ge.s32.totalorder %s32, 2
    %s34 = scalar_select %p33, 0, %s32
    %s35 = ssub.s32 %s15, %s34
    %p36 = scmp.eq.s32.totalorder %s35, 0
    %s38 = sadd.s32 %s37, 1
    %s39 = scalar_select %p36, %s37, %s38
    %p42 = pneg %p36
    %p43 = scmp.eq.s32.totalorder %s8, 1
    %p44 = por %p42, %p43
    %p45 = scmp.ne.s32.totalorder %s37, %s40
    %p46 = scmp.eq.s32.totalorder %s8, 0
    %p47 = por %p45, %p46
    %p48 = scmp.ne.s32.totalorder %s37, %s40
    %p49 = scmp.eq.s32.totalorder %s13, 1
    %p50 = por %p48, %p49
    %p51 = scmp.ne.s32.totalorder %s40, %s41
    %p52 = scmp.eq.s32.totalorder %s13, 0
    %p53 = por %p51, %p52
    %p54 = scmp.ne.s32.totalorder %s40, %s41
    %p55 = scmp.eq.s32.totalorder %s14, 1
    %p56 = por %p54, %p55
    %p58 = scmp.ne.s32.totalorder %s41, %s57
    %p59 = scmp.eq.s32.totalorder %s14, 0
    %p60 = por %p58, %p59
    %s61 = ssub.s32 %s17, %s26
    %p62 = scmp.eq.s32.totalorder %s61, 0
    %s64 = sadd.s32 %s63, 1
    %s65 = scalar_select %p62, %s63, %s64
    %p68 = pneg %p62
    %p69 = scmp.eq.s32.totalorder %s8, 1
    %p70 = por %p68, %p69
    %p71 = scmp.ne.s32.totalorder %s63, %s66
    %p72 = scmp.eq.s32.totalorder %s8, 0
    %p73 = por %p71, %p72
    %p74 = scmp.ne.s32.totalorder %s63, %s66
    %p75 = scmp.eq.s32.totalorder %s13, 1
    %p76 = por %p74, %p75
    %p77 = scmp.ne.s32.totalorder %s66, %s67
    %p78 = scmp.eq.s32.totalorder %s13, 0
    %p79 = por %p77, %p78
    %p80 = scmp.ne.s32.totalorder %s66, %s67
    %p81 = scmp.eq.s32.totalorder %s14, 1
    %p82 = por %p80, %p81
    %p84 = scmp.ne.s32.totalorder %s67, %s83
    %p85 = scmp.eq.s32.totalorder %s14, 0
    %p86 = por %p84, %p85
    %s87 = ssub.s32 %s15, %s34
    %s88 = ssub.s32 %s16, %s30
    %s89 = sor.u32 %s87, %s88
    %s90 = ssub.s32 %s17, %s26
    %s91 = sor.u32 %s89, %s90
    %p92 = scmp.eq.s32.totalorder %s91, 0
    %s94 = sadd.s32 %s93, 1
    %s95 = scalar_select %p92, %s93, %s94
    %p98 = pneg %p92
    %p99 = scmp.eq.s32.totalorder %s8, 1
    %p100 = por %p98, %p99
    %p101 = scmp.ne.s32.totalorder %s93, %s96
    %p102 = scmp.eq.s32.totalorder %s8, 0
    %p103 = por %p101, %p102
    %p104 = scmp.ne.s32.totalorder %s93, %s96
    %p105 = scmp.eq.s32.totalorder %s13, 1
    %p106 = por %p104, %p105
    %p107 = scmp.ne.s32.totalorder %s96, %s97
    %p108 = scmp.eq.s32.totalorder %s13, 0
    %p109 = por %p107, %p108
    %p110 = scmp.ne.s32.totalorder %s96, %s97
    %p111 = scmp.eq.s32.totalorder %s14, 1
    %p112 = por %p110, %p111
    %p114 = scmp.ne.s32.totalorder %s97, %s113
    %p115 = scmp.eq.s32.totalorder %s14, 0
    %p116 = por %p114, %p115
    %p117 = scmp.le.s32.totalorder 1, %s8
    %p118 = scmp.lt.s32.totalorder %s8, 3
    %p119 = pnand %p117, %p118
    %p120 = pneg %p119
    // Predicated region
    $region9: #{_lambda_.5} parent=5 // pred_check
      _
    $region10: #{_lambda_.5} parent=5 // pred_check_branch
      %122 = sbr.rel (%p119) target = $region12
    $region11: #{_lambda_.5} parent=5 // pred_region
      %s123 = ssub.s32 %s8, 1
      // Predicated region
      $region13: #{_lambda_.5} parent=11 // pred_check
        %p124 = pneg %p79
      $region14: #{_lambda_.5} parent=11 // pred_check_branch
        %126 = sbr.rel (%p124) target = $region16
      $region15: #{_lambda_.5} parent=11 // pred_region
        %p127 = scmp.lt.s32.totalorder %s20, 0
        %s128 = scalar_select %p127, %s20, 0
        %s129 = smul.addr %s128, 4
        %s130 = scalar_lea.vmem %s1, %s129
      $region16: #{_lambda_.5} parent=11 // pred_fallthru
        _
    $region12: #{_lambda_.5} parent=5 // pred_fallthru
      _
    %p131 = scmp.lt.s32.totalorder %s8, 2
    // Predicated region
    $region17: #{_lambda_.5} parent=5 // pred_check
      %p132 = pneg %p131
    $region18: #{_lambda_.5} parent=5 // pred_check_branch
      %134 = sbr.rel (%p132) target = $region20
    $region19: #{_lambda_.5} parent=5 // pred_region
      // Predicated region
      $region21: #{_lambda_.5} parent=19 // pred_check
        %p135 = pneg %p47
      $region22: #{_lambda_.5} parent=19 // pred_check_branch
        %137 = sbr.rel (%p135) target = $region24
      $region23: #{_lambda_.5} parent=19 // pred_region
        %p138 = scmp.lt.s32.totalorder %s15, 1
        %s139 = scalar_select %p138, %s15, 1
        %s140 = smul.addr %s139, 5
        %s141 = smul.addr %s140, 4
        %s142 = scalar_lea.vmem %s0, %s141
      $region24: #{_lambda_.5} parent=19 // pred_fallthru
        _
    $region20: #{_lambda_.5} parent=5 // pred_fallthru
      _
    %p143 = scmp.le.s32.totalorder 1, %s8
    %p144 = scmp.lt.s32.totalorder %s8, 3
    %p145 = pnand %p143, %p144
    %p146 = pneg %p145
    // Predicated region
    $region25: #{_lambda_.5} parent=5 // pred_check
      _
    $region26: #{_lambda_.5} parent=5 // pred_check_branch
      %148 = sbr.rel (%p145) target = $region28
    $region27: #{_lambda_.5} parent=5 // pred_region
      %s149 = ssub.s32 %s8, 1
      %p150 = scmp.lt.s32.totalorder %s18, 1
      %s151 = scalar_select %p150, %s18, 1
      %s152 = smul.addr %s151, 5
      %s153 = smul.addr %s152, 4
      %s154 = scalar_lea.vmem %s0, %s153
      %p155 = pneg %p53
      %p156 = pneg %p50
      %p157 = scmp.lt.s32.totalorder %s20, 0
      %s158 = scalar_select %p157, %s20, 0
      %s159 = smul.addr %s158, 4
      %s160 = scalar_lea.vmem %s1, %s159
      %p161 = pneg %p79
      %p162 = pneg %p76
      %p163 = pneg %p109
      %p164 = pneg %p106
      %s165 = smul.u32 2, %s19
      %p166 = scmp.lt.s32.totalorder %s18, 1
      %s167 = scalar_select %p166, %s18, 1
      %p168 = scmp.lt.s32.totalorder %s165, 1
      %s169 = scalar_select %p168, %s165, 1
      %p170 = scmp.lt.s32.totalorder %s20, 0
      %s171 = scalar_select %p170, %s20, 0
      %s172 = sadd.s32 %s171, %s169
      %s173 = smul.addr %s167, 2
      %s174 = sadd.s32 %s172, %s173
      %s175 = smul.addr %s174, 4
      %s176 = scalar_lea.vmem %s2, %s175
      %p177 = scmp.lt.s32.totalorder %s18, 1
      %s178 = scalar_select %p177, %s18, 1
      %s179 = smul.addr %s178, 5
      %s180 = smul.addr %s179, 4
      %s181 = scalar_lea.vmem %s0, %s180
      %p182 = scmp.lt.s32.totalorder %s20, 0
      %s183 = scalar_select %p182, %s20, 0
      %s184 = smul.addr %s183, 4
      %s185 = scalar_lea.vmem %s1, %s184
      %s186 = smul.u32 2, %s19
      %p187 = scmp.lt.s32.totalorder %s18, 1
      %s188 = scalar_select %p187, %s18, 1
      %p189 = scmp.lt.s32.totalorder %s186, 1
      %s190 = scalar_select %p189, %s186, 1
      %p191 = scmp.lt.s32.totalorder %s20, 0
      %s192 = scalar_select %p191, %s20, 0
      %s193 = sadd.s32 %s192, %s190
      %s194 = smul.addr %s188, 2
      %s195 = sadd.s32 %s193, %s194
      %s196 = smul.addr %s195, 4
      %s197 = scalar_lea.vmem %s2, %s196
      %s198 = smul.u32 2, %s19
      %s200 = smul.u32 %s19, 4
      %p201 = scmp.eq.s32.totalorder %s20, 0
      // Predicated region
      $region29: #{_lambda_.5} parent=27 // pred_check
        %p202 = pneg %p201
      $region30: #{_lambda_.5} parent=27 // pred_check_branch
        %204 = sbr.rel (%p202) target = $region32
      $region31: #{_lambda_.5} parent=27 // pred_region
        %s205 = smul.addr %s200, 4
        %s206 = scalar_lea.vmem %s181, %s205
        %v207 = vld [vmem:[%s206] sm:$0x3]
        %v208 = vld [vmem:[%s206 + $0x4] sm:$0x3]
        %v209 = vld [vmem:[%s206 + $0x8] sm:$0x3]
        %v210 = vld [vmem:[%s206 + $0xc] sm:$0x3]
        %v215 = vcombine.low %v207, %v208
        %v216 = vcombine.low %v209, %v210
        %v218 = vunpack.c.l.s4 1983009808
        %v219 = vunpack.c.0.s8 %v218
        %v220 = vlaneseq
        %v221 = vshrl.u32 %v220, 7
        %v222 = vsub.s32 %v219, %v221
        %v223 = vrot.slane %v215, %v222
        %v225 = vunpack.c.l.s4 1983009808
        %v226 = vunpack.c.0.s8 %v225
        %v227 = vlaneseq
        %v228 = vshrl.u32 %v227, 7
        %v229 = vsub.s32 %v226, %v228
        %v230 = vrot.slane %v216, %v229
        %v231 = vcombine.low %v223, %v230
        %vm233 = vcmask 261120
        %234 = vst.msk [vmem:[#allocation2] sm:$0xff] %vm233, %v231
        %v235 = vld [vmem:[%s206] sm:$0x7]
        %v236 = vld [vmem:[%s206 + $0x4] sm:$0x7]
        %v237 = vld [vmem:[%s206 + $0x8] sm:$0x7]
        %v238 = vld [vmem:[%s206 + $0xc] sm:$0x7]
        %v244 = vunpack.c.l.s4 1983009808
        %v245 = vunpack.c.0.s8 %v244
        %v246 = vlaneseq
        %v247 = vshrl.u32 %v246, 7
        %v248 = vsub.s32 %v245, %v247
        %v249 = vrot.slane %v235, %v248
        %v250 = vcombine.high %v249, %v249
        %v252 = vunpack.c.l.s4 1983009808
        %v253 = vunpack.c.0.s8 %v252
        %v254 = vlaneseq
        %v255 = vshrl.u32 %v254, 7
        %v256 = vsub.s32 %v253, %v255
        %v257 = vrot.slane %v236, %v256
        %v258 = vcombine.high %v257, %v257
        %v260 = vunpack.c.l.s4 1983009808
        %v261 = vunpack.c.0.s8 %v260
        %v262 = vlaneseq
        %v263 = vshrl.u32 %v262, 7
        %v264 = vsub.s32 %v261, %v263
        %v265 = vrot.slane %v237, %v264
        %v266 = vcombine.high %v265, %v265
        %v268 = vunpack.c.l.s4 1983009808
        %v269 = vunpack.c.0.s8 %v268
        %v270 = vlaneseq
        %v271 = vshrl.u32 %v270, 7
        %v272 = vsub.s32 %v269, %v271
        %v273 = vrot.slane %v238, %v272
        %v274 = vcombine.high %v273, %v273
        %vm275 = vsmask.f32 1280
        %vm276 = vsmask.f32 3336
        %vm277 = vmor %vm275, %vm276
        %vm278 = vsmask.f32 5392
        %vm279 = vmor %vm277, %vm278
        %vm280 = vsmask.f32 7448
        %vm281 = vmor %vm279, %vm280
        %v283 = vshrl.u32 %v249, 16
        %v285 = vrot.slane %v283, 6
        %v286 = vshll.u32 %v249, 16
        %v288 = vrot.slane %v286, 7
        %v289 = vor.u32 %v285, %v288
        %v290 = vrot.slane %v289, 2
        %v292 = vshll.u32 %v250, 16
        %v294 = vrot.slane %v292, 7
        %v295 = vsel %vm281, %v290, %v294
        %v297 = vshrl.u32 %v257, 16
        %v299 = vrot.slane %v297, 6
        %v300 = vshll.u32 %v257, 16
        %v302 = vrot.slane %v300, 7
        %v303 = vor.u32 %v299, %v302
        %v304 = vrot.slane %v303, 2
        %v306 = vshll.u32 %v258, 16
        %v308 = vrot.slane %v306, 7
        %v309 = vsel %vm281, %v304, %v308
        %v311 = vshrl.u32 %v265, 16
        %v313 = vrot.slane %v311, 6
        %v314 = vshll.u32 %v265, 16
        %v316 = vrot.slane %v314, 7
        %v317 = vor.u32 %v313, %v316
        %v318 = vrot.slane %v317, 2
        %v320 = vshll.u32 %v266, 16
        %v322 = vrot.slane %v320, 7
        %v323 = vsel %vm281, %v318, %v322
        %v325 = vshrl.u32 %v273, 16
        %v327 = vrot.slane %v325, 6
        %v328 = vshll.u32 %v273, 16
        %v330 = vrot.slane %v328, 7
        %v331 = vor.u32 %v327, %v330
        %v332 = vrot.slane %v331, 2
        %v334 = vshll.u32 %v274, 16
        %v336 = vrot.slane %v334, 7
        %v337 = vsel %vm281, %v332, %v336
        %v338 = vcombine.low %v295, %v309
        %v339 = vcombine.low %v323, %v337
        %v341 = vunpack.c.l.s4 1983009808
        %v342 = vunpack.c.0.s8 %v341
        %v343 = vlaneseq
        %v344 = vshrl.u32 %v343, 7
        %v345 = vsub.s32 %v342, %v344
        %v346 = vrot.slane %v338, %v345
        %v348 = vunpack.c.l.s4 1983009808
        %v349 = vunpack.c.0.s8 %v348
        %v350 = vlaneseq
        %v351 = vshrl.u32 %v350, 7
        %v352 = vsub.s32 %v349, %v351
        %v353 = vrot.slane %v339, %v352
        %v354 = vcombine.low %v346, %v353
        %s356 = scalar_lea.vmem [#allocation2], 8
        %357 = vst.msk [vmem:[%s356] sm:$0xff] %vm233, %v354
        %s358 = sadd.s32 %s200, 1
        %s359 = smul.addr %s358, 4
        %s360 = scalar_lea.vmem %s181, %s359
        %v361 = vld [vmem:[%s360] sm:$0x3]
        %v362 = vld [vmem:[%s360 + $0x4] sm:$0x3]
        %v363 = vld [vmem:[%s360 + $0x8] sm:$0x3]
        %v364 = vld [vmem:[%s360 + $0xc] sm:$0x3]
        %v369 = vcombine.low %v361, %v362
        %v370 = vcombine.low %v363, %v364
        %v372 = vunpack.c.l.s4 1983009808
        %v373 = vunpack.c.0.s8 %v372
        %v374 = vlaneseq
        %v375 = vshrl.u32 %v374, 7
        %v376 = vsub.s32 %v373, %v375
        %v377 = vrot.slane %v369, %v376
        %v379 = vunpack.c.l.s4 1983009808
        %v380 = vunpack.c.0.s8 %v379
        %v381 = vlaneseq
        %v382 = vshrl.u32 %v381, 7
        %v383 = vsub.s32 %v380, %v382
        %v384 = vrot.slane %v370, %v383
        %v385 = vcombine.low %v377, %v384
        %s387 = scalar_lea.vmem [#allocation2], 16
        %388 = vst.msk [vmem:[%s387] sm:$0xff] %vm233, %v385
        %v389 = vld [vmem:[%s360] sm:$0x7]
        %v390 = vld [vmem:[%s360 + $0x4] sm:$0x7]
        %v391 = vld [vmem:[%s360 + $0x8] sm:$0x7]
        %v392 = vld [vmem:[%s360 + $0xc] sm:$0x7]
        %v398 = vunpack.c.l.s4 1983009808
        %v399 = vunpack.c.0.s8 %v398
        %v400 = vlaneseq
        %v401 = vshrl.u32 %v400, 7
        %v402 = vsub.s32 %v399, %v401
        %v403 = vrot.slane %v389, %v402
        %v404 = vcombine.high %v403, %v403
        %v406 = vunpack.c.l.s4 1983009808
        %v407 = vunpack.c.0.s8 %v406
        %v408 = vlaneseq
        %v409 = vshrl.u32 %v408, 7
        %v410 = vsub.s32 %v407, %v409
        %v411 = vrot.slane %v390, %v410
        %v412 = vcombine.high %v411, %v411
        %v414 = vunpack.c.l.s4 1983009808
        %v415 = vunpack.c.0.s8 %v414
        %v416 = vlaneseq
        %v417 = vshrl.u32 %v416, 7
        %v418 = vsub.s32 %v415, %v417
        %v419 = vrot.slane %v391, %v418
        %v420 = vcombine.high %v419, %v419
        %v422 = vunpack.c.l.s4 1983009808
        %v423 = vunpack.c.0.s8 %v422
        %v424 = vlaneseq
        %v425 = vshrl.u32 %v424, 7
        %v426 = vsub.s32 %v423, %v425
        %v427 = vrot.slane %v392, %v426
        %v428 = vcombine.high %v427, %v427
        %v430 = vshrl.u32 %v403, 16
        %v432 = vrot.slane %v430, 6
        %v433 = vshll.u32 %v403, 16
        %v435 = vrot.slane %v433, 7
        %v436 = vor.u32 %v432, %v435
        %v437 = vrot.slane %v436, 2
        %v439 = vshll.u32 %v404, 16
        %v441 = vrot.slane %v439, 7
        %v442 = vsel %vm281, %v437, %v441
        %v444 = vshrl.u32 %v411, 16
        %v446 = vrot.slane %v444, 6
        %v447 = vshll.u32 %v411, 16
        %v449 = vrot.slane %v447, 7
        %v450 = vor.u32 %v446, %v449
        %v451 = vrot.slane %v450, 2
        %v453 = vshll.u32 %v412, 16
        %v455 = vrot.slane %v453, 7
        %v456 = vsel %vm281, %v451, %v455
        %v458 = vshrl.u32 %v419, 16
        %v460 = vrot.slane %v458, 6
        %v461 = vshll.u32 %v419, 16
        %v463 = vrot.slane %v461, 7
        %v464 = vor.u32 %v460, %v463
        %v465 = vrot.slane %v464, 2
        %v467 = vshll.u32 %v420, 16
        %v469 = vrot.slane %v467, 7
        %v470 = vsel %vm281, %v465, %v469
        %v472 = vshrl.u32 %v427, 16
        %v474 = vrot.slane %v472, 6
        %v475 = vshll.u32 %v427, 16
        %v477 = vrot.slane %v475, 7
        %v478 = vor.u32 %v474, %v477
        %v479 = vrot.slane %v478, 2
        %v481 = vshll.u32 %v428, 16
        %v483 = vrot.slane %v481, 7
        %v484 = vsel %vm281, %v479, %v483
        %v485 = vcombine.low %v442, %v456
        %v486 = vcombine.low %v470, %v484
        %v488 = vunpack.c.l.s4 1983009808
        %v489 = vunpack.c.0.s8 %v488
        %v490 = vlaneseq
        %v491 = vshrl.u32 %v490, 7
        %v492 = vsub.s32 %v489, %v491
        %v493 = vrot.slane %v485, %v492
        %v495 = vunpack.c.l.s4 1983009808
        %v496 = vunpack.c.0.s8 %v495
        %v497 = vlaneseq
        %v498 = vshrl.u32 %v497, 7
        %v499 = vsub.s32 %v496, %v498
        %v500 = vrot.slane %v486, %v499
        %v501 = vcombine.low %v493, %v500
        %s503 = scalar_lea.vmem [#allocation2], 24
        %504 = vst.msk [vmem:[%s503] sm:$0xff] %vm233, %v501
      $region32: #{_lambda_.5} parent=27 // pred_fallthru
        _
      %v505 = vld [vmem:[#allocation2] sm:$0xff]
      %v506 = vld [vmem:[%s185] sm:$0xf]
      %v507 = vld [vmem:[%s185 + $0x4] sm:$0xf]
      %v508 = vld [vmem:[%s185 + $0x8] sm:$0xf]
      %v509 = vld [vmem:[%s185 + $0xc] sm:$0xf]
      %v514 = vunpack.c.l.b16 %v506
      %v515 = vunpack.c.l.b16 %v507
      %v516 = vunpack.c.l.b16 %v508
      %v517 = vunpack.c.l.b16 %v509
      %v518 = vpack.c.b16 %v515, %v514
      %v519 = vpack.c.b16 %v517, %v516
      %vm522 = vcmask 261120
      %v524 = vsel %vm522, %v505, 0
      %526 = vmatprep.subr.bf16.mxu0 0
      %527 = vmatpush1.bf16.msra.mxu0 %v518
      %528 = vmatprep.subr.bf16.mxu0 0
      %529 = vmatpush1.bf16.msra.mxu0 %v519
      %530 = vmatprep.subr.bf16.mxu0 0
      %531 = vmatpush1.bf16.msra.mxu0 0
      %532 = vmatprep.subr.bf16.mxu0 0
      %533 = vmatpush1.bf16.msra.mxu0 0
      %534 = vmatprep.subr.bf16.mxu0 0
      %535 = vmatpush1.bf16.msra.mxu0 0
      %536 = vmatprep.subr.bf16.mxu0 0
      %537 = vmatpush1.bf16.msra.mxu0 0
      %538 = vmatprep.subr.bf16.mxu0 0
      %539 = vmatpush1.bf16.msra.mxu0 0
      %540 = vmatprep.subr.bf16.mxu0 0
      %541 = vmatpush1.bf16.msra.mxu0 0
      %542 = vmatprep.subr.bf16.mxu0 0
      %543 = vmatpush1.bf16.msra.mxu0 0
      %544 = vmatprep.subr.bf16.mxu0 0
      %545 = vmatpush1.bf16.msra.mxu0 0
      %546 = vmatprep.subr.bf16.mxu0 0
      %547 = vmatpush1.bf16.msra.mxu0 0
      %548 = vmatprep.subr.bf16.mxu0 0
      %549 = vmatpush1.bf16.msra.mxu0 0
      %550 = vmatprep.subr.bf16.mxu0 0
      %551 = vmatpush1.bf16.msra.mxu0 0
      %552 = vmatprep.subr.bf16.mxu0 0
      %553 = vmatpush1.bf16.msra.mxu0 0
      %554 = vmatprep.subr.bf16.mxu0 0
      %555 = vmatpush1.bf16.msra.mxu0 0
      %556 = vmatprep.subr.bf16.mxu0 0
      %557 = vmatpush1.bf16.msra.mxu0 0
      %558 = vmatprep.mubr.bf16.mxu0 0
      %559 = vmatmul.mubr.bf16.gmra.mrb[0].mxu0 %v524
      %v560 = vpop.f32.mrb[0].mxu0
      %v561 = vadd.f32 0.0, %v560
      %v562 = vpop.f32.mrb[0].mxu0
      %v563 = vpop.f32.mrb[0].mxu0
      %v564 = vadd.f32 0.0, %v563
      %v565 = vpop.f32.mrb[0].mxu0
      %566 = vdwg.mxu0
      %567 = vst [vmem:[#allocation3] sm:$0xff] %v561
      %568 = vst [vmem:[#allocation3 + $0x8] sm:$0xff] %v564
      %v569 = vld [vmem:[#allocation3] sm:$0xff]
      %v570 = vld [vmem:[#allocation3 + $0x8] sm:$0xff]
      %s571 = scalar_lea.vmem [#allocation2], 8
      %v572 = vld [vmem:[%s571] sm:$0xff]
      %s573 = scalar_lea.vmem %s185, 16
      %v574 = vld [vmem:[%s573] sm:$0xf]
      %v575 = vld [vmem:[%s573 + $0x4] sm:$0xf]
      %v576 = vld [vmem:[%s573 + $0x8] sm:$0xf]
      %v577 = vld [vmem:[%s573 + $0xc] sm:$0xf]
      %v582 = vunpack.c.l.b16 %v574
      %v583 = vunpack.c.l.b16 %v575
      %v584 = vunpack.c.l.b16 %v576
      %v585 = vunpack.c.l.b16 %v577
      %v586 = vpack.c.b16 %v583, %v582
      %v587 = vpack.c.b16 %v585, %v584
      %v591 = vsel %vm522, %v572, 0
      %593 = vmatprep.subr.bf16.mxu0 0
      %594 = vmatpush1.bf16.msra.mxu0 %v586
      %595 = vmatprep.subr.bf16.mxu0 0
      %596 = vmatpush1.bf16.msra.mxu0 %v587
      %597 = vmatprep.subr.bf16.mxu0 0
      %598 = vmatpush1.bf16.msra.mxu0 0
      %599 = vmatprep.subr.bf16.mxu0 0
      %600 = vmatpush1.bf16.msra.mxu0 0
      %601 = vmatprep.subr.bf16.mxu0 0
      %602 = vmatpush1.bf16.msra.mxu0 0
      %603 = vmatprep.subr.bf16.mxu0 0
      %604 = vmatpush1.bf16.msra.mxu0 0
      %605 = vmatprep.subr.bf16.mxu0 0
      %606 = vmatpush1.bf16.msra.mxu0 0
      %607 = vmatprep.subr.bf16.mxu0 0
      %608 = vmatpush1.bf16.msra.mxu0 0
      %609 = vmatprep.subr.bf16.mxu0 0
      %610 = vmatpush1.bf16.msra.mxu0 0
      %611 = vmatprep.subr.bf16.mxu0 0
      %612 = vmatpush1.bf16.msra.mxu0 0
      %613 = vmatprep.subr.bf16.mxu0 0
      %614 = vmatpush1.bf16.msra.mxu0 0
      %615 = vmatprep.subr.bf16.mxu0 0
      %616 = vmatpush1.bf16.msra.mxu0 0
      %617 = vmatprep.subr.bf16.mxu0 0
      %618 = vmatpush1.bf16.msra.mxu0 0
      %619 = vmatprep.subr.bf16.mxu0 0
      %620 = vmatpush1.bf16.msra.mxu0 0
      %621 = vmatprep.subr.bf16.mxu0 0
      %622 = vmatpush1.bf16.msra.mxu0 0
      %623 = vmatprep.subr.bf16.mxu0 0
      %624 = vmatpush1.bf16.msra.mxu0 0
      %625 = vmatprep.mubr.bf16.mxu0 0
      %626 = vmatmul.mubr.bf16.gmra.mrb[0].mxu0 %v591
      %v627 = vpop.f32.mrb[0].mxu0
      %v628 = vadd.f32 0.0, %v627
      %v629 = vpop.f32.mrb[0].mxu0
      %v630 = vpop.f32.mrb[0].mxu0
      %v631 = vadd.f32 0.0, %v630
      %v632 = vpop.f32.mrb[0].mxu0
      %633 = vdwg.mxu0
      %v634 = vadd.f32 %v569, %v628
      %v635 = vadd.f32 %v570, %v631
      %636 = vst [vmem:[#allocation3] sm:$0xff] %v634
      %637 = vst [vmem:[#allocation3 + $0x8] sm:$0xff] %v635
      %v638 = vld [vmem:[#allocation3] sm:$0xff]
      %v639 = vld [vmem:[#allocation3 + $0x8] sm:$0xff]
      %s640 = scalar_lea.vmem [#allocation2], 16
      %v641 = vld [vmem:[%s640] sm:$0xff]
      %s642 = scalar_lea.vmem %s185, 32
      %v643 = vld [vmem:[%s642] sm:$0xf]
      %v644 = vld [vmem:[%s642 + $0x4] sm:$0xf]
      %v645 = vld [vmem:[%s642 + $0x8] sm:$0xf]
      %v646 = vld [vmem:[%s642 + $0xc] sm:$0xf]
      %v651 = vunpack.c.l.b16 %v643
      %v652 = vunpack.c.l.b16 %v644
      %v653 = vunpack.c.l.b16 %v645
      %v654 = vunpack.c.l.b16 %v646
      %v655 = vpack.c.b16 %v652, %v651
      %v656 = vpack.c.b16 %v654, %v653
      %v660 = vsel %vm522, %v641, 0
      %662 = vmatprep.subr.bf16.mxu0 0
      %663 = vmatpush1.bf16.msra.mxu0 %v655
      %664 = vmatprep.subr.bf16.mxu0 0
      %665 = vmatpush1.bf16.msra.mxu0 %v656
      %666 = vmatprep.subr.bf16.mxu0 0
      %667 = vmatpush1.bf16.msra.mxu0 0
      %668 = vmatprep.subr.bf16.mxu0 0
      %669 = vmatpush1.bf16.msra.mxu0 0
      %670 = vmatprep.subr.bf16.mxu0 0
      %671 = vmatpush1.bf16.msra.mxu0 0
      %672 = vmatprep.subr.bf16.mxu0 0
      %673 = vmatpush1.bf16.msra.mxu0 0
      %674 = vmatprep.subr.bf16.mxu0 0
      %675 = vmatpush1.bf16.msra.mxu0 0
      %676 = vmatprep.subr.bf16.mxu0 0
      %677 = vmatpush1.bf16.msra.mxu0 0
      %678 = vmatprep.subr.bf16.mxu0 0
      %679 = vmatpush1.bf16.msra.mxu0 0
      %680 = vmatprep.subr.bf16.mxu0 0
      %681 = vmatpush1.bf16.msra.mxu0 0
      %682 = vmatprep.subr.bf16.mxu0 0
      %683 = vmatpush1.bf16.msra.mxu0 0
      %684 = vmatprep.subr.bf16.mxu0 0
      %685 = vmatpush1.bf16.msra.mxu0 0
      %686 = vmatprep.subr.bf16.mxu0 0
      %687 = vmatpush1.bf16.msra.mxu0 0
      %688 = vmatprep.subr.bf16.mxu0 0
      %689 = vmatpush1.bf16.msra.mxu0 0
      %690 = vmatprep.subr.bf16.mxu0 0
      %691 = vmatpush1.bf16.msra.mxu0 0
      %692 = vmatprep.subr.bf16.mxu0 0
      %693 = vmatpush1.bf16.msra.mxu0 0
      %694 = vmatprep.mubr.bf16.mxu0 0
      %695 = vmatmul.mubr.bf16.gmra.mrb[0].mxu0 %v660
      %v696 = vpop.f32.mrb[0].mxu0
      %v697 = vadd.f32 0.0, %v696
      %v698 = vpop.f32.mrb[0].mxu0
      %v699 = vpop.f32.mrb[0].mxu0
      %v700 = vadd.f32 0.0, %v699
      %v701 = vpop.f32.mrb[0].mxu0
      %702 = vdwg.mxu0
      %v703 = vadd.f32 %v638, %v697
      %v704 = vadd.f32 %v639, %v700
      %705 = vst [vmem:[#allocation3] sm:$0xff] %v703
      %706 = vst [vmem:[#allocation3 + $0x8] sm:$0xff] %v704
      %v707 = vld [vmem:[#allocation3] sm:$0xff]
      %v708 = vld [vmem:[#allocation3 + $0x8] sm:$0xff]
      %s709 = scalar_lea.vmem [#allocation2], 24
      %v710 = vld [vmem:[%s709] sm:$0xff]
      %s711 = scalar_lea.vmem %s185, 48
      %v712 = vld [vmem:[%s711] sm:$0xf]
      %v713 = vld [vmem:[%s711 + $0x4] sm:$0xf]
      %v714 = vld [vmem:[%s711 + $0x8] sm:$0xf]
      %v715 = vld [vmem:[%s711 + $0xc] sm:$0xf]
      %v720 = vunpack.c.l.b16 %v712
      %v721 = vunpack.c.l.b16 %v713
      %v722 = vunpack.c.l.b16 %v714
      %v723 = vunpack.c.l.b16 %v715
      %v724 = vpack.c.b16 %v721, %v720
      %v725 = vpack.c.b16 %v723, %v722
      %v729 = vsel %vm522, %v710, 0
      %731 = vmatprep.subr.bf16.mxu0 0
      %732 = vmatpush1.bf16.msra.mxu0 %v724
      %733 = vmatprep.subr.bf16.mxu0 0
      %734 = vmatpush1.bf16.msra.mxu0 %v725
      %735 = vmatprep.subr.bf16.mxu0 0
      %736 = vmatpush1.bf16.msra.mxu0 0
      %737 = vmatprep.subr.bf16.mxu0 0
      %738 = vmatpush1.bf16.msra.mxu0 0
      %739 = vmatprep.subr.bf16.mxu0 0
      %740 = vmatpush1.bf16.msra.mxu0 0
      %741 = vmatprep.subr.bf16.mxu0 0
      %742 = vmatpush1.bf16.msra.mxu0 0
      %743 = vmatprep.subr.bf16.mxu0 0
      %744 = vmatpush1.bf16.msra.mxu0 0
      %745 = vmatprep.subr.bf16.mxu0 0
      %746 = vmatpush1.bf16.msra.mxu0 0
      %747 = vmatprep.subr.bf16.mxu0 0
      %748 = vmatpush1.bf16.msra.mxu0 0
      %749 = vmatprep.subr.bf16.mxu0 0
      %750 = vmatpush1.bf16.msra.mxu0 0
      %751 = vmatprep.subr.bf16.mxu0 0
      %752 = vmatpush1.bf16.msra.mxu0 0
      %753 = vmatprep.subr.bf16.mxu0 0
      %754 = vmatpush1.bf16.msra.mxu0 0
      %755 = vmatprep.subr.bf16.mxu0 0
      %756 = vmatpush1.bf16.msra.mxu0 0
      %757 = vmatprep.subr.bf16.mxu0 0
      %758 = vmatpush1.bf16.msra.mxu0 0
      %759 = vmatprep.subr.bf16.mxu0 0
      %760 = vmatpush1.bf16.msra.mxu0 0
      %761 = vmatprep.subr.bf16.mxu0 0
      %762 = vmatpush1.bf16.msra.mxu0 0
      %763 = vmatprep.mubr.bf16.mxu0 0
      %764 = vmatmul.mubr.bf16.gmra.mrb[0].mxu0 %v729
      %v765 = vpop.f32.mrb[0].mxu0
      %v766 = vadd.f32 0.0, %v765
      %v767 = vpop.f32.mrb[0].mxu0
      %v768 = vpop.f32.mrb[0].mxu0
      %v769 = vadd.f32 0.0, %v768
      %v770 = vpop.f32.mrb[0].mxu0
      %771 = vdwg.mxu0
      %v772 = vadd.f32 %v707, %v766
      %v773 = vadd.f32 %v708, %v769
      %774 = vst [vmem:[#allocation3] sm:$0xff] %v772
      %775 = vst [vmem:[#allocation3 + $0x8] sm:$0xff] %v773
      %v776 = vld [vmem:[#allocation3] sm:$0xff]
      %v777 = vld [vmem:[#allocation3 + $0x8] sm:$0xff]
      %vm778 = vcmp.ge.f32.partialorder %v776, 0.0
      %vm779 = vcmp.ge.f32.partialorder %v777, 0.0
      %v780 = vmul.f32 %v776, 0.01
      %v781 = vmul.f32 %v777, 0.01
      %v782 = vsel %vm778, %v776, %v780
      %v783 = vsel %vm779, %v777, %v781
      %v784 = vpack.c.bf16 %v783, %v782
      %v786 = vunpack.c.l.b16 %v784
      %v787 = vunpack.c.h.b16 %v784
      %v788 = vpack.c.b16 %v786, %v786
      %v789 = vpack.c.b16 %v787, %v787
      %792 = vst [vmem:[%s197] sm:$0xf] %v788
      %793 = vst [vmem:[%s197 + $0x4] sm:$0xf] %v789
      %s794 = smul.u32 2, %s19
      %p795 = scmp.lt.s32.totalorder %s18, 1
      %s796 = scalar_select %p795, %s18, 1
      %p797 = scmp.lt.s32.totalorder %s794, 1
      %s798 = scalar_select %p797, %s794, 1
      %p799 = scmp.lt.s32.totalorder %s20, 0
      %s800 = scalar_select %p799, %s20, 0
      %s801 = sadd.s32 %s800, %s798
      %s802 = smul.addr %s796, 2
      %s803 = sadd.s32 %s801, %s802
      %s804 = smul.addr %s803, 4
      %s805 = scalar_lea.vmem %s2, %s804
      // Predicated region
      $region33: #{_lambda_.5} parent=27 // pred_check
        %p806 = pneg %p106
      $region34: #{_lambda_.5} parent=27 // pred_check_branch
        %808 = sbr.rel (%p806) target = $region36
      $region35: #{_lambda_.5} parent=27 // pred_region
        %s809 = smul.u32 2, %s19
      $region36: #{_lambda_.5} parent=27 // pred_fallthru
        _
    $region28: #{_lambda_.5} parent=5 // pred_fallthru
      _
    %p810 = scmp.le.s32.totalorder 2, %s8
    // Predicated region
    $region37: #{_lambda_.5} parent=5 // pred_check
      %p811 = pneg %p810
    $region38: #{_lambda_.5} parent=5 // pred_check_branch
      %813 = sbr.rel (%p811) target = $region40
    $region39: #{_lambda_.5} parent=5 // pred_region
      %s814 = ssub.s32 %s8, 2
      // Predicated region
      $region41: #{_lambda_.5} parent=39 // pred_check
        %p815 = pneg %p112
      $region42: #{_lambda_.5} parent=39 // pred_check_branch
        %817 = sbr.rel (%p815) target = $region44
      $region43: #{_lambda_.5} parent=39 // pred_region
        %s818 = smul.u32 2, %s22
        %p819 = scmp.lt.s32.totalorder %s21, 1
        %s820 = scalar_select %p819, %s21, 1
        %p821 = scmp.lt.s32.totalorder %s818, 1
        %s822 = scalar_select %p821, %s818, 1
        %p823 = scmp.lt.s32.totalorder %s23, 0
        %s824 = scalar_select %p823, %s23, 0
        %s825 = sadd.s32 %s824, %s822
        %s826 = smul.addr %s820, 2
        %s827 = sadd.s32 %s825, %s826
        %s828 = smul.addr %s827, 4
        %s829 = scalar_lea.vmem %s2, %s828
      $region44: #{_lambda_.5} parent=39 // pred_fallthru
        _
    $region40: #{_lambda_.5} parent=5 // pred_fallthru
      _
  $region6: #{_lambda_.5} parent=0 // loop_footer
    %s12 = sadd.s32 1, %s8
  $region7: #{_lambda_.5} parent=0 // loop_footer_branch
    %7 = sbr.rel target = $region3
  $region8: #{_lambda_.5} parent=0 // loop_exit
    _

// kernel: _lambda_.4
$region0: #{_lambda_.4}
  #allocation0 [shape = 'u32[]', space=smem, size = 0x4, offset = 0x4, fixed_abs, tag = 'smem constant byte address 0x4 - core index']
  #allocation1 [shape = 'u32[144,128]{1,0:T(1,128)}', space=vmem, size = 0x12000, scoped, tag = 'internal scratch']
  #allocation2 [shape = 'bf16[4,64,16]{2,1,0:T(16,128)(2,1)}', space=vmem, size = 0x10000, scoped, tag = 'scratch operand']
  #allocation3 [shape = 'f32[64,128]{1,0:T(8,128)}', space=vmem, size = 0x8000, scoped, tag = 'scratch operand']
  %s0 = inlined_call_operand.vmem [shape: bf16[2,9,9,16], index: 0, kind: input, shape index: {}]
  %s1 = inlined_call_operand.vmem [shape: bf16[4,16,128], index: 1, kind: input, shape index: {}]
  %s2 = inlined_call_operand.vmem [shape: f32[1,128], index: 2, kind: input, shape index: {}]
  %s3 = inlined_call_operand.vmem [shape: bf16[2,64,128], index: 3, kind: output, shape index: {}]
  %s4 = sld [smem:[#allocation0]]
  $region49: #{_lambda_.4} parent=0
    _
  %s6 = ssub.s32 1, %s4
  %s7 = scalar_select 0, %s6, %s4
  loop: start=0, step=1, limit=4
  $region2: #{_lambda_.4} parent=0 // loop_pre_header
    _
  $region3: #{_lambda_.4} parent=0 // loop_header
    %s9 = sphi 0, %s13
    %p10 = scmp.ge.s32.totalorder %s9, 4
    %s16 = sphi 0, %s35
    %s17 = sphi 0, %s31
    %s18 = sphi 0, %s27
    %s19 = sphi 0, %s16
    %s20 = sphi 0, %s17
    %s21 = sphi 0, %s18
    %s22 = sphi 0, %s19
    %s23 = sphi 0, %s20
    %s24 = sphi 0, %s21
    %s38 = sphi 0, %s40
    %s41 = sphi 0, %s38
    %s42 = sphi 0, %s41
    %s58 = sphi 0, %s42
    %s64 = sphi 0, %s66
    %s67 = sphi 0, %s64
    %s68 = sphi 0, %s67
    %s84 = sphi 0, %s68
    %s90 = sphi 0, %s92
    %s93 = sphi 0, %s90
    %s94 = sphi 0, %s93
    %s110 = sphi 0, %s94
    %s120 = sphi 0, %s122
    %s123 = sphi 0, %s120
    %s124 = sphi 0, %s123
    %s140 = sphi 0, %s124
  $region4: #{_lambda_.4} parent=0 // loop_header_branch
    %12 = sbr.rel (%p10) target = $region8
  $region5: #{_lambda_.4} parent=0 // loop_body
    %s14 = ssub.s32 %s9, 1
    %s15 = ssub.s32 %s9, 2
    %s25 = sadd.s32 1, %s18
    %p26 = scmp.ge.s32.totalorder %s25, 1
    %s27 = scalar_select %p26, 0, %s25
    %s28 = sadd.s32 1, %s17
    %s29 = scalar_select %p26, %s28, %s17
    %p30 = scmp.ge.s32.totalorder %s29, 1
    %s31 = scalar_select %p30, 0, %s29
    %s32 = sadd.s32 1, %s16
    %s33 = scalar_select %p30, %s32, %s16
    %p34 = scmp.ge.s32.totalorder %s33, 2
    %s35 = scalar_select %p34, 0, %s33
    %s36 = ssub.s32 %s16, %s35
    %p37 = scmp.eq.s32.totalorder %s36, 0
    %s39 = sadd.s32 %s38, 1
    %s40 = scalar_select %p37, %s38, %s39
    %p43 = pneg %p37
    %p44 = scmp.eq.s32.totalorder %s9, 1
    %p45 = por %p43, %p44
    %p46 = scmp.ne.s32.totalorder %s38, %s41
    %p47 = scmp.eq.s32.totalorder %s9, 0
    %p48 = por %p46, %p47
    %p49 = scmp.ne.s32.totalorder %s38, %s41
    %p50 = scmp.eq.s32.totalorder %s14, 1
    %p51 = por %p49, %p50
    %p52 = scmp.ne.s32.totalorder %s41, %s42
    %p53 = scmp.eq.s32.totalorder %s14, 0
    %p54 = por %p52, %p53
    %p55 = scmp.ne.s32.totalorder %s41, %s42
    %p56 = scmp.eq.s32.totalorder %s15, 1
    %p57 = por %p55, %p56
    %p59 = scmp.ne.s32.totalorder %s42, %s58
    %p60 = scmp.eq.s32.totalorder %s15, 0
    %p61 = por %p59, %p60
    %s62 = ssub.s32 %s18, %s27
    %p63 = scmp.eq.s32.totalorder %s62, 0
    %s65 = sadd.s32 %s64, 1
    %s66 = scalar_select %p63, %s64, %s65
    %p69 = pneg %p63
    %p70 = scmp.eq.s32.totalorder %s9, 1
    %p71 = por %p69, %p70
    %p72 = scmp.ne.s32.totalorder %s64, %s67
    %p73 = scmp.eq.s32.totalorder %s9, 0
    %p74 = por %p72, %p73
    %p75 = scmp.ne.s32.totalorder %s64, %s67
    %p76 = scmp.eq.s32.totalorder %s14, 1
    %p77 = por %p75, %p76
    %p78 = scmp.ne.s32.totalorder %s67, %s68
    %p79 = scmp.eq.s32.totalorder %s14, 0
    %p80 = por %p78, %p79
    %p81 = scmp.ne.s32.totalorder %s67, %s68
    %p82 = scmp.eq.s32.totalorder %s15, 1
    %p83 = por %p81, %p82
    %p85 = scmp.ne.s32.totalorder %s68, %s84
    %p86 = scmp.eq.s32.totalorder %s15, 0
    %p87 = por %p85, %p86
    %s88 = ssub.s32 %s18, %s27
    %p89 = scmp.eq.s32.totalorder %s88, 0
    %s91 = sadd.s32 %s90, 1
    %s92 = scalar_select %p89, %s90, %s91
    %p95 = pneg %p89
    %p96 = scmp.eq.s32.totalorder %s9, 1
    %p97 = por %p95, %p96
    %p98 = scmp.ne.s32.totalorder %s90, %s93
    %p99 = scmp.eq.s32.totalorder %s9, 0
    %p100 = por %p98, %p99
    %p101 = scmp.ne.s32.totalorder %s90, %s93
    %p102 = scmp.eq.s32.totalorder %s14, 1
    %p103 = por %p101, %p102
    %p104 = scmp.ne.s32.totalorder %s93, %s94
    %p105 = scmp.eq.s32.totalorder %s14, 0
    %p106 = por %p104, %p105
    %p107 = scmp.ne.s32.totalorder %s93, %s94
    %p108 = scmp.eq.s32.totalorder %s15, 1
    %p109 = por %p107, %p108
    %p111 = scmp.ne.s32.totalorder %s94, %s110
    %p112 = scmp.eq.s32.totalorder %s15, 0
    %p113 = por %p111, %p112
    %s114 = ssub.s32 %s16, %s35
    %s115 = ssub.s32 %s17, %s31
    %s116 = sor.u32 %s114, %s115
    %s117 = ssub.s32 %s18, %s27
    %s118 = sor.u32 %s116, %s117
    %p119 = scmp.eq.s32.totalorder %s118, 0
    %s121 = sadd.s32 %s120, 1
    %s122 = scalar_select %p119, %s120, %s121
    %p125 = pneg %p119
    %p126 = scmp.eq.s32.totalorder %s9, 1
    %p127 = por %p125, %p126
    %p128 = scmp.ne.s32.totalorder %s120, %s123
    %p129 = scmp.eq.s32.totalorder %s9, 0
    %p130 = por %p128, %p129
    %p131 = scmp.ne.s32.totalorder %s120, %s123
    %p132 = scmp.eq.s32.totalorder %s14, 1
    %p133 = por %p131, %p132
    %p134 = scmp.ne.s32.totalorder %s123, %s124
    %p135 = scmp.eq.s32.totalorder %s14, 0
    %p136 = por %p134, %p135
    %p137 = scmp.ne.s32.totalorder %s123, %s124
    %p138 = scmp.eq.s32.totalorder %s15, 1
    %p139 = por %p137, %p138
    %p141 = scmp.ne.s32.totalorder %s124, %s140
    %p142 = scmp.eq.s32.totalorder %s15, 0
    %p143 = por %p141, %p142
    %p144 = scmp.le.s32.totalorder 1, %s9
    %p145 = scmp.lt.s32.totalorder %s9, 3
    %p146 = pnand %p144, %p145
    %p147 = pneg %p146
    // Predicated region
    $region9: #{_lambda_.4} parent=5 // pred_check
      _
    $region10: #{_lambda_.4} parent=5 // pred_check_branch
      %149 = sbr.rel (%p146) target = $region12
    $region11: #{_lambda_.4} parent=5 // pred_region
      %s150 = ssub.s32 %s9, 1
      // Predicated region
      $region13: #{_lambda_.4} parent=11 // pred_check
        %p151 = pneg %p80
      $region14: #{_lambda_.4} parent=11 // pred_check_branch
        %153 = sbr.rel (%p151) target = $region16
      $region15: #{_lambda_.4} parent=11 // pred_region
        %p154 = scmp.lt.s32.totalorder %s21, 0
        %s155 = scalar_select %p154, %s21, 0
        %s156 = smul.addr %s155, 4
        %s157 = scalar_lea.vmem %s1, %s156
      $region16: #{_lambda_.4} parent=11 // pred_fallthru
        _
      // Predicated region
      $region17: #{_lambda_.4} parent=11 // pred_check
        %p158 = pneg %p106
      $region18: #{_lambda_.4} parent=11 // pred_check_branch
        %160 = sbr.rel (%p158) target = $region20
      $region19: #{_lambda_.4} parent=11 // pred_region
        %p161 = scmp.lt.s32.totalorder %s21, 0
        %s162 = scalar_select %p161, %s21, 0
        %s163 = scalar_lea.vmem %s2, %s162
      $region20: #{_lambda_.4} parent=11 // pred_fallthru
        _
    $region12: #{_lambda_.4} parent=5 // pred_fallthru
      _
    %p164 = scmp.lt.s32.totalorder %s9, 2
    // Predicated region
    $region21: #{_lambda_.4} parent=5 // pred_check
      %p165 = pneg %p164
    $region22: #{_lambda_.4} parent=5 // pred_check_branch
      %167 = sbr.rel (%p165) target = $region24
    $region23: #{_lambda_.4} parent=5 // pred_region
      // Predicated region
      $region25: #{_lambda_.4} parent=23 // pred_check
        %p168 = pneg %p48
      $region26: #{_lambda_.4} parent=23 // pred_check_branch
        %170 = sbr.rel (%p168) target = $region28
      $region27: #{_lambda_.4} parent=23 // pred_region
        %p171 = scmp.lt.s32.totalorder %s16, 1
        %s172 = scalar_select %p171, %s16, 1
        %s173 = smul.addr %s172, 18
        %s174 = smul.addr %s173, 4
        %s175 = scalar_lea.vmem %s0, %s174
      $region28: #{_lambda_.4} parent=23 // pred_fallthru
        _
    $region24: #{_lambda_.4} parent=5 // pred_fallthru
      _
    %p176 = scmp.le.s32.totalorder 1, %s9
    %p177 = scmp.lt.s32.totalorder %s9, 3
    %p178 = pnand %p176, %p177
    %p179 = pneg %p178
    // Predicated region
    $region29: #{_lambda_.4} parent=5 // pred_check
      _
    $region30: #{_lambda_.4} parent=5 // pred_check_branch
      %181 = sbr.rel (%p178) target = $region32
    $region31: #{_lambda_.4} parent=5 // pred_region
      %s182 = ssub.s32 %s9, 1
      %p183 = scmp.lt.s32.totalorder %s19, 1
      %s184 = scalar_select %p183, %s19, 1
      %s185 = smul.addr %s184, 18
      %s186 = smul.addr %s185, 4
      %s187 = scalar_lea.vmem %s0, %s186
      %p188 = pneg %p54
      %p189 = pneg %p51
      %p190 = scmp.lt.s32.totalorder %s21, 0
      %s191 = scalar_select %p190, %s21, 0
      %s192 = smul.addr %s191, 4
      %s193 = scalar_lea.vmem %s1, %s192
      %p194 = pneg %p80
      %p195 = pneg %p77
      %p196 = scmp.lt.s32.totalorder %s21, 0
      %s197 = scalar_select %p196, %s21, 0
      %s198 = scalar_lea.vmem %s2, %s197
      %p199 = pneg %p106
      %p200 = pneg %p103
      %p201 = pneg %p136
      %p202 = pneg %p133
      %s203 = smul.u32 8, %s20
      %p204 = scmp.lt.s32.totalorder %s19, 1
      %s205 = scalar_select %p204, %s19, 1
      %p206 = scmp.lt.s32.totalorder %s203, 7
      %s207 = scalar_select %p206, %s203, 7
      %p208 = scmp.lt.s32.totalorder %s21, 0
      %s209 = scalar_select %p208, %s21, 0
      %s210 = sadd.s32 %s209, %s207
      %s211 = smul.addr %s205, 8
      %s212 = sadd.s32 %s210, %s211
      %s213 = smul.addr %s212, 4
      %s214 = scalar_lea.vmem %s3, %s213
      %p215 = scmp.lt.s32.totalorder %s19, 1
      %s216 = scalar_select %p215, %s19, 1
      %s217 = smul.addr %s216, 18
      %s218 = smul.addr %s217, 4
      %s219 = scalar_lea.vmem %s0, %s218
      %p220 = scmp.lt.s32.totalorder %s21, 0
      %s221 = scalar_select %p220, %s21, 0
      %s222 = smul.addr %s221, 4
      %s223 = scalar_lea.vmem %s1, %s222
      %p224 = scmp.lt.s32.totalorder %s21, 0
      %s225 = scalar_select %p224, %s21, 0
      %s226 = scalar_lea.vmem %s2, %s225
      %s227 = smul.u32 8, %s20
      %p228 = scmp.lt.s32.totalorder %s19, 1
      %s229 = scalar_select %p228, %s19, 1
      %p230 = scmp.lt.s32.totalorder %s227, 7
      %s231 = scalar_select %p230, %s227, 7
      %p232 = scmp.lt.s32.totalorder %s21, 0
      %s233 = scalar_select %p232, %s21, 0
      %s234 = sadd.s32 %s233, %s231
      %s235 = smul.addr %s229, 8
      %s236 = sadd.s32 %s234, %s235
      %s237 = smul.addr %s236, 4
      %s238 = scalar_lea.vmem %s3, %s237
      %s239 = smul.u32 8, %s20
      %s241 = smul.u32 %s20, 8
      %p242 = scmp.eq.s32.totalorder %s21, 0
      // Predicated region
      $region33: #{_lambda_.4} parent=31 // pred_check
        %p243 = pneg %p242
      $region34: #{_lambda_.4} parent=31 // pred_check_branch
        %245 = sbr.rel (%p243) target = $region36
      $region35: #{_lambda_.4} parent=31 // pred_region
        %s246 = smul.u32 %s241, 2
        %s247 = smul.addr %s246, 4
        %s248 = scalar_lea.vmem %s219, %s247
        %v249 = vld [vmem:[%s248] sm:$0xf]
        %v250 = vld [vmem:[%s248 + $0x8] sm:$0xf]
        %v251 = vld [vmem:[%s248 + $0x10] sm:$0xf]
        %v252 = vld [vmem:[%s248 + $0x18] sm:$0xf]
        %v253 = vld [vmem:[%s248 + $0x20] sm:$0xf]
        %v254 = vld [vmem:[%s248 + $0x28] sm:$0xf]
        %v255 = vld [vmem:[%s248 + $0x30] sm:$0xf]
        %v256 = vld [vmem:[%s248 + $0x38] sm:$0xf]
        %v265 = vunpack.c.l.b16 %v249
        %v266 = vunpack.c.l.b16 %v250
        %v267 = vunpack.c.l.b16 %v251
        %v268 = vunpack.c.l.b16 %v252
        %v269 = vunpack.c.l.b16 %v253
        %v270 = vunpack.c.l.b16 %v254
        %v271 = vunpack.c.l.b16 %v255
        %v272 = vunpack.c.l.b16 %v256
        %v273 = vpack.c.b16 %v266, %v265
        %v274 = vpack.c.b16 %v268, %v267
        %v275 = vpack.c.b16 %v270, %v269
        %v276 = vpack.c.b16 %v272, %v271
        %vm281 = vcmask 130048
        %282 = vst.msk [vmem:[#allocation2] sm:$0xff] %vm281, %v273
        %283 = vst.msk [vmem:[#allocation2 + $0x8] sm:$0xff] %vm281, %v274
        %284 = vst.msk [vmem:[#allocation2 + $0x10] sm:$0xff] %vm281, %v275
        %285 = vst.msk [vmem:[#allocation2 + $0x18] sm:$0xff] %vm281, %v276
        %v286 = vld [vmem:[%s248] sm:$0xf]
        %v287 = vld [vmem:[%s248 + $0x4] sm:$0x1]
        %v288 = vld [vmem:[%s248 + $0x8] sm:$0xf]
        %v289 = vld [vmem:[%s248 + $0xc] sm:$0x1]
        %v290 = vld [vmem:[%s248 + $0x10] sm:$0xf]
        %v291 = vld [vmem:[%s248 + $0x14] sm:$0x1]
        %v292 = vld [vmem:[%s248 + $0x18] sm:$0xf]
        %v293 = vld [vmem:[%s248 + $0x1c] sm:$0x1]
        %v294 = vld [vmem:[%s248 + $0x20] sm:$0xf]
        %v295 = vld [vmem:[%s248 + $0x24] sm:$0x1]
        %v296 = vld [vmem:[%s248 + $0x28] sm:$0xf]
        %v297 = vld [vmem:[%s248 + $0x2c] sm:$0x1]
        %v298 = vld [vmem:[%s248 + $0x30] sm:$0xf]
        %v299 = vld [vmem:[%s248 + $0x34] sm:$0x1]
        %v300 = vld [vmem:[%s248 + $0x38] sm:$0xf]
        %v301 = vld [vmem:[%s248 + $0x3c] sm:$0x1]
        %vm302 = vsmask.f32 3328
        %vm303 = vsmask.f32 7440
        %vm304 = vmor %vm302, %vm303
        %v306 = vshrl.u32 %v286, 16
        %v308 = vrot.slane %v306, 4
        %v309 = vshll.u32 %v286, 16
        %v311 = vrot.slane %v309, 5
        %v312 = vor.u32 %v308, %v311
        %v313 = vrot.slane %v312, 4
        %v315 = vshll.u32 %v287, 16
        %v317 = vrot.slane %v315, 5
        %v318 = vsel %vm304, %v313, %v317
        %v320 = vshrl.u32 %v288, 16
        %v322 = vrot.slane %v320, 4
        %v323 = vshll.u32 %v288, 16
        %v325 = vrot.slane %v323, 5
        %v326 = vor.u32 %v322, %v325
        %v327 = vrot.slane %v326, 4
        %v329 = vshll.u32 %v289, 16
        %v331 = vrot.slane %v329, 5
        %v332 = vsel %vm304, %v327, %v331
        %v334 = vshrl.u32 %v290, 16
        %v336 = vrot.slane %v334, 4
        %v337 = vshll.u32 %v290, 16
        %v339 = vrot.slane %v337, 5
        %v340 = vor.u32 %v336, %v339
        %v341 = vrot.slane %v340, 4
        %v343 = vshll.u32 %v291, 16
        %v345 = vrot.slane %v343, 5
        %v346 = vsel %vm304, %v341, %v345
        %v348 = vshrl.u32 %v292, 16
        %v350 = vrot.slane %v348, 4
        %v351 = vshll.u32 %v292, 16
        %v353 = vrot.slane %v351, 5
        %v354 = vor.u32 %v350, %v353
        %v355 = vrot.slane %v354, 4
        %v357 = vshll.u32 %v293, 16
        %v359 = vrot.slane %v357, 5
        %v360 = vsel %vm304, %v355, %v359
        %v362 = vshrl.u32 %v294, 16
        %v364 = vrot.slane %v362, 4
        %v365 = vshll.u32 %v294, 16
        %v367 = vrot.slane %v365, 5
        %v368 = vor.u32 %v364, %v367
        %v369 = vrot.slane %v368, 4
        %v371 = vshll.u32 %v295, 16
        %v373 = vrot.slane %v371, 5
        %v374 = vsel %vm304, %v369, %v373
        %v376 = vshrl.u32 %v296, 16
        %v378 = vrot.slane %v376, 4
        %v379 = vshll.u32 %v296, 16
        %v381 = vrot.slane %v379, 5
        %v382 = vor.u32 %v378, %v381
        %v383 = vrot.slane %v382, 4
        %v385 = vshll.u32 %v297, 16
        %v387 = vrot.slane %v385, 5
        %v388 = vsel %vm304, %v383, %v387
        %v390 = vshrl.u32 %v298, 16
        %v392 = vrot.slane %v390, 4
        %v393 = vshll.u32 %v298, 16
        %v395 = vrot.slane %v393, 5
        %v396 = vor.u32 %v392, %v395
        %v397 = vrot.slane %v396, 4
        %v399 = vshll.u32 %v299, 16
        %v401 = vrot.slane %v399, 5
        %v402 = vsel %vm304, %v397, %v401
        %v404 = vshrl.u32 %v300, 16
        %v406 = vrot.slane %v404, 4
        %v407 = vshll.u32 %v300, 16
        %v409 = vrot.slane %v407, 5
        %v410 = vor.u32 %v406, %v409
        %v411 = vrot.slane %v410, 4
        %v413 = vshll.u32 %v301, 16
        %v415 = vrot.slane %v413, 5
        %v416 = vsel %vm304, %v411, %v415
        %v417 = vunpack.c.l.b16 %v318
        %v418 = vunpack.c.l.b16 %v332
        %v419 = vunpack.c.l.b16 %v346
        %v420 = vunpack.c.l.b16 %v360
        %v421 = vunpack.c.l.b16 %v374
        %v422 = vunpack.c.l.b16 %v388
        %v423 = vunpack.c.l.b16 %v402
        %v424 = vunpack.c.l.b16 %v416
        %v425 = vpack.c.b16 %v418, %v417
        %v426 = vpack.c.b16 %v420, %v419
        %v427 = vpack.c.b16 %v422, %v421
        %v428 = vpack.c.b16 %v424, %v423
        %s433 = scalar_lea.vmem [#allocation2], 32
        %434 = vst.msk [vmem:[%s433] sm:$0xff] %vm281, %v425
        %435 = vst.msk [vmem:[%s433 + $0x8] sm:$0xff] %vm281, %v426
        %436 = vst.msk [vmem:[%s433 + $0x10] sm:$0xff] %vm281, %v427
        %437 = vst.msk [vmem:[%s433 + $0x18] sm:$0xff] %vm281, %v428
        %s438 = sadd.s32 %s241, 1
        %s439 = smul.u32 %s438, 2
        %s440 = smul.addr %s439, 4
        %s441 = scalar_lea.vmem %s219, %s440
        %v442 = vld [vmem:[%s441] sm:$0xf]
        %v443 = vld [vmem:[%s441 + $0x8] sm:$0xf]
        %v444 = vld [vmem:[%s441 + $0x10] sm:$0xf]
        %v445 = vld [vmem:[%s441 + $0x18] sm:$0xf]
        %v446 = vld [vmem:[%s441 + $0x20] sm:$0xf]
        %v447 = vld [vmem:[%s441 + $0x28] sm:$0xf]
        %v448 = vld [vmem:[%s441 + $0x30] sm:$0xf]
        %v449 = vld [vmem:[%s441 + $0x38] sm:$0xf]
        %v458 = vunpack.c.l.b16 %v442
        %v459 = vunpack.c.l.b16 %v443
        %v460 = vunpack.c.l.b16 %v444
        %v461 = vunpack.c.l.b16 %v445
        %v462 = vunpack.c.l.b16 %v446
        %v463 = vunpack.c.l.b16 %v447
        %v464 = vunpack.c.l.b16 %v448
        %v465 = vunpack.c.l.b16 %v449
        %v466 = vpack.c.b16 %v459, %v458
        %v467 = vpack.c.b16 %v461, %v460
        %v468 = vpack.c.b16 %v463, %v462
        %v469 = vpack.c.b16 %v465, %v464
        %s474 = scalar_lea.vmem [#allocation2], 64
        %475 = vst.msk [vmem:[%s474] sm:$0xff] %vm281, %v466
        %476 = vst.msk [vmem:[%s474 + $0x8] sm:$0xff] %vm281, %v467
        %477 = vst.msk [vmem:[%s474 + $0x10] sm:$0xff] %vm281, %v468
        %478 = vst.msk [vmem:[%s474 + $0x18] sm:$0xff] %vm281, %v469
        %v479 = vld [vmem:[%s441] sm:$0xf]
        %v480 = vld [vmem:[%s441 + $0x4] sm:$0x1]
        %v481 = vld [vmem:[%s441 + $0x8] sm:$0xf]
        %v482 = vld [vmem:[%s441 + $0xc] sm:$0x1]
        %v483 = vld [vmem:[%s441 + $0x10] sm:$0xf]
        %v484 = vld [vmem:[%s441 + $0x14] sm:$0x1]
        %v485 = vld [vmem:[%s441 + $0x18] sm:$0xf]
        %v486 = vld [vmem:[%s441 + $0x1c] sm:$0x1]
        %v487 = vld [vmem:[%s441 + $0x20] sm:$0xf]
        %v488 = vld [vmem:[%s441 + $0x24] sm:$0x1]
        %v489 = vld [vmem:[%s441 + $0x28] sm:$0xf]
        %v490 = vld [vmem:[%s441 + $0x2c] sm:$0x1]
        %v491 = vld [vmem:[%s441 + $0x30] sm:$0xf]
        %v492 = vld [vmem:[%s441 + $0x34] sm:$0x1]
        %v493 = vld [vmem:[%s441 + $0x38] sm:$0xf]
        %v494 = vld [vmem:[%s441 + $0x3c] sm:$0x1]
        %v496 = vshrl.u32 %v479, 16
        %v498 = vrot.slane %v496, 4
        %v499 = vshll.u32 %v479, 16
        %v501 = vrot.slane %v499, 5
        %v502 = vor.u32 %v498, %v501
        %v503 = vrot.slane %v502, 4
        %v505 = vshll.u32 %v480, 16
        %v507 = vrot.slane %v505, 5
        %v508 = vsel %vm304, %v503, %v507
        %v510 = vshrl.u32 %v481, 16
        %v512 = vrot.slane %v510, 4
        %v513 = vshll.u32 %v481, 16
        %v515 = vrot.slane %v513, 5
        %v516 = vor.u32 %v512, %v515
        %v517 = vrot.slane %v516, 4
        %v519 = vshll.u32 %v482, 16
        %v521 = vrot.slane %v519, 5
        %v522 = vsel %vm304, %v517, %v521
        %v524 = vshrl.u32 %v483, 16
        %v526 = vrot.slane %v524, 4
        %v527 = vshll.u32 %v483, 16
        %v529 = vrot.slane %v527, 5
        %v530 = vor.u32 %v526, %v529
        %v531 = vrot.slane %v530, 4
        %v533 = vshll.u32 %v484, 16
        %v535 = vrot.slane %v533, 5
        %v536 = vsel %vm304, %v531, %v535
        %v538 = vshrl.u32 %v485, 16
        %v540 = vrot.slane %v538, 4
        %v541 = vshll.u32 %v485, 16
        %v543 = vrot.slane %v541, 5
        %v544 = vor.u32 %v540, %v543
        %v545 = vrot.slane %v544, 4
        %v547 = vshll.u32 %v486, 16
        %v549 = vrot.slane %v547, 5
        %v550 = vsel %vm304, %v545, %v549
        %v552 = vshrl.u32 %v487, 16
        %v554 = vrot.slane %v552, 4
        %v555 = vshll.u32 %v487, 16
        %v557 = vrot.slane %v555, 5
        %v558 = vor.u32 %v554, %v557
        %v559 = vrot.slane %v558, 4
        %v561 = vshll.u32 %v488, 16
        %v563 = vrot.slane %v561, 5
        %v564 = vsel %vm304, %v559, %v563
        %v566 = vshrl.u32 %v489, 16
        %v568 = vrot.slane %v566, 4
        %v569 = vshll.u32 %v489, 16
        %v571 = vrot.slane %v569, 5
        %v572 = vor.u32 %v568, %v571
        %v573 = vrot.slane %v572, 4
        %v575 = vshll.u32 %v490, 16
        %v577 = vrot.slane %v575, 5
        %v578 = vsel %vm304, %v573, %v577
        %v580 = vshrl.u32 %v491, 16
        %v582 = vrot.slane %v580, 4
        %v583 = vshll.u32 %v491, 16
        %v585 = vrot.slane %v583, 5
        %v586 = vor.u32 %v582, %v585
        %v587 = vrot.slane %v586, 4
        %v589 = vshll.u32 %v492, 16
        %v591 = vrot.slane %v589, 5
        %v592 = vsel %vm304, %v587, %v591
        %v594 = vshrl.u32 %v493, 16
        %v596 = vrot.slane %v594, 4
        %v597 = vshll.u32 %v493, 16
        %v599 = vrot.slane %v597, 5
        %v600 = vor.u32 %v596, %v599
        %v601 = vrot.slane %v600, 4
        %v603 = vshll.u32 %v494, 16
        %v605 = vrot.slane %v603, 5
        %v606 = vsel %vm304, %v601, %v605
        %v607 = vunpack.c.l.b16 %v508
        %v608 = vunpack.c.l.b16 %v522
        %v609 = vunpack.c.l.b16 %v536
        %v610 = vunpack.c.l.b16 %v550
        %v611 = vunpack.c.l.b16 %v564
        %v612 = vunpack.c.l.b16 %v578
        %v613 = vunpack.c.l.b16 %v592
        %v614 = vunpack.c.l.b16 %v606
        %v615 = vpack.c.b16 %v608, %v607
        %v616 = vpack.c.b16 %v610, %v609
        %v617 = vpack.c.b16 %v612, %v611
        %v618 = vpack.c.b16 %v614, %v613
        %s623 = scalar_lea.vmem [#allocation2], 96
        %624 = vst.msk [vmem:[%s623] sm:$0xff] %vm281, %v615
        %625 = vst.msk [vmem:[%s623 + $0x8] sm:$0xff] %vm281, %v616
        %626 = vst.msk [vmem:[%s623 + $0x10] sm:$0xff] %vm281, %v617
        %627 = vst.msk [vmem:[%s623 + $0x18] sm:$0xff] %vm281, %v618
      $region36: #{_lambda_.4} parent=31 // pred_fallthru
        _
      %v628 = vld [vmem:[#allocation2] sm:$0xff]
      %v629 = vld [vmem:[#allocation2 + $0x8] sm:$0xff]
      %v630 = vld [vmem:[#allocation2 + $0x10] sm:$0xff]
      %v631 = vld [vmem:[#allocation2 + $0x18] sm:$0xff]
      %v632 = vld [vmem:[%s223] sm:$0xf]
      %v633 = vld [vmem:[%s223 + $0x4] sm:$0xf]
      %v636 = vunpack.c.l.b16 %v632
      %v637 = vunpack.c.l.b16 %v633
      %v638 = vpack.c.b16 %v637, %v636
      %vm640 = vcmask 130048
      %v642 = vsel %vm640, %v628, 0
      %v645 = vsel %vm640, %v629, 0
      %v648 = vsel %vm640, %v630, 0
      %v651 = vsel %vm640, %v631, 0
      %653 = vmatprep.subr.bf16.mxu0 0
      %654 = vmatpush1.bf16.msra.mxu0 %v638
      %655 = vmatprep.subr.bf16.mxu0 0
      %656 = vmatpush1.bf16.msra.mxu0 0
      %657 = vmatprep.subr.bf16.mxu0 0
      %658 = vmatpush1.bf16.msra.mxu0 0
      %659 = vmatprep.subr.bf16.mxu0 0
      %660 = vmatpush1.bf16.msra.mxu0 0
      %661 = vmatprep.subr.bf16.mxu0 0
      %662 = vmatpush1.bf16.msra.mxu0 0
      %663 = vmatprep.subr.bf16.mxu0 0
      %664 = vmatpush1.bf16.msra.mxu0 0
      %665 = vmatprep.subr.bf16.mxu0 0
      %666 = vmatpush1.bf16.msra.mxu0 0
      %667 = vmatprep.subr.bf16.mxu0 0
      %668 = vmatpush1.bf16.msra.mxu0 0
      %669 = vmatprep.subr.bf16.mxu0 0
      %670 = vmatpush1.bf16.msra.mxu0 0
      %671 = vmatprep.subr.bf16.mxu0 0
      %672 = vmatpush1.bf16.msra.mxu0 0
      %673 = vmatprep.subr.bf16.mxu0 0
      %674 = vmatpush1.bf16.msra.mxu0 0
      %675 = vmatprep.subr.bf16.mxu0 0
      %676 = vmatpush1.bf16.msra.mxu0 0
      %677 = vmatprep.subr.bf16.mxu0 0
      %678 = vmatpush1.bf16.msra.mxu0 0
      %679 = vmatprep.subr.bf16.mxu0 0
      %680 = vmatpush1.bf16.msra.mxu0 0
      %681 = vmatprep.subr.bf16.mxu0 0
      %682 = vmatpush1.bf16.msra.mxu0 0
      %683 = vmatprep.subr.bf16.mxu0 0
      %684 = vmatpush1.bf16.msra.mxu0 0
      %685 = vmatprep.mubr.bf16.mxu0 0
      %686 = vmatmul.mubr.bf16.gmra.mrb[0].mxu0 %v642
      %v687 = vpop.f32.mrb[0].mxu0
      %v688 = vadd.f32 0.0, %v687
      %v689 = vpop.f32.mrb[0].mxu0
      %v690 = vpop.f32.mrb[0].mxu0
      %v691 = vadd.f32 0.0, %v690
      %v692 = vpop.f32.mrb[0].mxu0
      %693 = vmatprep.mubr.bf16.mxu0 0
      %694 = vmatmul.mubr.bf16.gmra.mrb[0].mxu0 %v645
      %v695 = vpop.f32.mrb[0].mxu0
      %v696 = vadd.f32 0.0, %v695
      %v697 = vpop.f32.mrb[0].mxu0
      %v698 = vpop.f32.mrb[0].mxu0
      %v699 = vadd.f32 0.0, %v698
      %v700 = vpop.f32.mrb[0].mxu0
      %701 = vmatprep.mubr.bf16.mxu0 0
      %702 = vmatmul.mubr.bf16.gmra.mrb[0].mxu0 %v648
      %v703 = vpop.f32.mrb[0].mxu0
      %v704 = vadd.f32 0.0, %v703
      %v705 = vpop.f32.mrb[0].mxu0
      %v706 = vpop.f32.mrb[0].mxu0
      %v707 = vadd.f32 0.0, %v706
      %v708 = vpop.f32.mrb[0].mxu0
      %709 = vmatprep.mubr.bf16.mxu0 0
      %710 = vmatmul.mubr.bf16.gmra.mrb[0].mxu0 %v651
      %v711 = vpop.f32.mrb[0].mxu0
      %v712 = vadd.f32 0.0, %v711
      %v713 = vpop.f32.mrb[0].mxu0
      %v714 = vpop.f32.mrb[0].mxu0
      %v715 = vadd.f32 0.0, %v714
      %v716 = vpop.f32.mrb[0].mxu0
      %717 = vdwg.mxu0
      %718 = vst [vmem:[#allocation3] sm:$0xff] %v688
      %719 = vst [vmem:[#allocation3 + $0x8] sm:$0xff] %v691
      %720 = vst [vmem:[#allocation3 + $0x10] sm:$0xff] %v696
      %721 = vst [vmem:[#allocation3 + $0x18] sm:$0xff] %v699
      %722 = vst [vmem:[#allocation3 + $0x20] sm:$0xff] %v704
      %723 = vst [vmem:[#allocation3 + $0x28] sm:$0xff] %v707
      %724 = vst [vmem:[#allocation3 + $0x30] sm:$0xff] %v712
      %725 = vst [vmem:[#allocation3 + $0x38] sm:$0xff] %v715
      %v726 = vld [vmem:[#allocation3] sm:$0xff]
      %v727 = vld [vmem:[#allocation3 + $0x8] sm:$0xff]
      %v728 = vld [vmem:[#allocation3 + $0x10] sm:$0xff]
      %v729 = vld [vmem:[#allocation3 + $0x18] sm:$0xff]
      %v730 = vld [vmem:[#allocation3 + $0x20] sm:$0xff]
      %v731 = vld [vmem:[#allocation3 + $0x28] sm:$0xff]
      %v732 = vld [vmem:[#allocation3 + $0x30] sm:$0xff]
      %v733 = vld [vmem:[#allocation3 + $0x38] sm:$0xff]
      %s734 = scalar_lea.vmem [#allocation2], 32
      %v735 = vld [vmem:[%s734] sm:$0xff]
      %v736 = vld [vmem:[%s734 + $0x8] sm:$0xff]
      %v737 = vld [vmem:[%s734 + $0x10] sm:$0xff]
      %v738 = vld [vmem:[%s734 + $0x18] sm:$0xff]
      %s739 = scalar_lea.vmem %s223, 8
      %v740 = vld [vmem:[%s739] sm:$0xf]
      %v741 = vld [vmem:[%s739 + $0x4] sm:$0xf]
      %v744 = vunpack.c.l.b16 %v740
      %v745 = vunpack.c.l.b16 %v741
      %v746 = vpack.c.b16 %v745, %v744
      %v749 = vsel %vm640, %v735, 0
      %v752 = vsel %vm640, %v736, 0
      %v755 = vsel %vm640, %v737, 0
      %v758 = vsel %vm640, %v738, 0
      %760 = vmatprep.subr.bf16.mxu0 0
      %761 = vmatpush1.bf16.msra.mxu0 %v746
      %762 = vmatprep.subr.bf16.mxu0 0
      %763 = vmatpush1.bf16.msra.mxu0 0
      %764 = vmatprep.subr.bf16.mxu0 0
      %765 = vmatpush1.bf16.msra.mxu0 0
      %766 = vmatprep.subr.bf16.mxu0 0
      %767 = vmatpush1.bf16.msra.mxu0 0
      %768 = vmatprep.subr.bf16.mxu0 0
      %769 = vmatpush1.bf16.msra.mxu0 0
      %770 = vmatprep.subr.bf16.mxu0 0
      %771 = vmatpush1.bf16.msra.mxu0 0
      %772 = vmatprep.subr.bf16.mxu0 0
      %773 = vmatpush1.bf16.msra.mxu0 0
      %774 = vmatprep.subr.bf16.mxu0 0
      %775 = vmatpush1.bf16.msra.mxu0 0
      %776 = vmatprep.subr.bf16.mxu0 0
      %777 = vmatpush1.bf16.msra.mxu0 0
      %778 = vmatprep.subr.bf16.mxu0 0
      %779 = vmatpush1.bf16.msra.mxu0 0
      %780 = vmatprep.subr.bf16.mxu0 0
      %781 = vmatpush1.bf16.msra.mxu0 0
      %782 = vmatprep.subr.bf16.mxu0 0
      %783 = vmatpush1.bf16.msra.mxu0 0
      %784 = vmatprep.subr.bf16.mxu0 0
      %785 = vmatpush1.bf16.msra.mxu0 0
      %786 = vmatprep.subr.bf16.mxu0 0
      %787 = vmatpush1.bf16.msra.mxu0 0
      %788 = vmatprep.subr.bf16.mxu0 0
      %789 = vmatpush1.bf16.msra.mxu0 0
      %790 = vmatprep.subr.bf16.mxu0 0
      %791 = vmatpush1.bf16.msra.mxu0 0
      %792 = vmatprep.mubr.bf16.mxu0 0
      %793 = vmatmul.mubr.bf16.gmra.mrb[0].mxu0 %v749
      %v794 = vpop.f32.mrb[0].mxu0
      %v795 = vadd.f32 0.0, %v794
      %v796 = vpop.f32.mrb[0].mxu0
      %v797 = vpop.f32.mrb[0].mxu0
      %v798 = vadd.f32 0.0, %v797
      %v799 = vpop.f32.mrb[0].mxu0
      %800 = vmatprep.mubr.bf16.mxu0 0
      %801 = vmatmul.mubr.bf16.gmra.mrb[0].mxu0 %v752
      %v802 = vpop.f32.mrb[0].mxu0
      %v803 = vadd.f32 0.0, %v802
      %v804 = vpop.f32.mrb[0].mxu0
      %v805 = vpop.f32.mrb[0].mxu0
      %v806 = vadd.f32 0.0, %v805
      %v807 = vpop.f32.mrb[0].mxu0
      %808 = vmatprep.mubr.bf16.mxu0 0
      %809 = vmatmul.mubr.bf16.gmra.mrb[0].mxu0 %v755
      %v810 = vpop.f32.mrb[0].mxu0
      %v811 = vadd.f32 0.0, %v810
      %v812 = vpop.f32.mrb[0].mxu0
      %v813 = vpop.f32.mrb[0].mxu0
      %v814 = vadd.f32 0.0, %v813
      %v815 = vpop.f32.mrb[0].mxu0
      %816 = vmatprep.mubr.bf16.mxu0 0
      %817 = vmatmul.mubr.bf16.gmra.mrb[0].mxu0 %v758
      %v818 = vpop.f32.mrb[0].mxu0
      %v819 = vadd.f32 0.0, %v818
      %v820 = vpop.f32.mrb[0].mxu0
      %v821 = vpop.f32.mrb[0].mxu0
      %v822 = vadd.f32 0.0, %v821
      %v823 = vpop.f32.mrb[0].mxu0
      %824 = vdwg.mxu0
      %v825 = vadd.f32 %v726, %v795
      %v826 = vadd.f32 %v727, %v798
      %v827 = vadd.f32 %v728, %v803
      %v828 = vadd.f32 %v729, %v806
      %v829 = vadd.f32 %v730, %v811
      %v830 = vadd.f32 %v731, %v814
      %v831 = vadd.f32 %v732, %v819
      %v832 = vadd.f32 %v733, %v822
      %833 = vst [vmem:[#allocation3] sm:$0xff] %v825
      %834 = vst [vmem:[#allocation3 + $0x8] sm:$0xff] %v826
      %835 = vst [vmem:[#allocation3 + $0x10] sm:$0xff] %v827
      %836 = vst [vmem:[#allocation3 + $0x18] sm:$0xff] %v828
      %837 = vst [vmem:[#allocation3 + $0x20] sm:$0xff] %v829
      %838 = vst [vmem:[#allocation3 + $0x28] sm:$0xff] %v830
      %839 = vst [vmem:[#allocation3 + $0x30] sm:$0xff] %v831
      %840 = vst [vmem:[#allocation3 + $0x38] sm:$0xff] %v832
      %v841 = vld [vmem:[#allocation3] sm:$0xff]
      %v842 = vld [vmem:[#allocation3 + $0x8] sm:$0xff]
      %v843 = vld [vmem:[#allocation3 + $0x10] sm:$0xff]
      %v844 = vld [vmem:[#allocation3 + $0x18] sm:$0xff]
      %v845 = vld [vmem:[#allocation3 + $0x20] sm:$0xff]
      %v846 = vld [vmem:[#allocation3 + $0x28] sm:$0xff]
      %v847 = vld [vmem:[#allocation3 + $0x30] sm:$0xff]
      %v848 = vld [vmem:[#allocation3 + $0x38] sm:$0xff]
      %s849 = scalar_lea.vmem [#allocation2], 64
      %v850 = vld [vmem:[%s849] sm:$0xff]
      %v851 = vld [vmem:[%s849 + $0x8] sm:$0xff]
      %v852 = vld [vmem:[%s849 + $0x10] sm:$0xff]
      %v853 = vld [vmem:[%s849 + $0x18] sm:$0xff]
      %s854 = scalar_lea.vmem %s223, 16
      %v855 = vld [vmem:[%s854] sm:$0xf]
      %v856 = vld [vmem:[%s854 + $0x4] sm:$0xf]
      %v859 = vunpack.c.l.b16 %v855
      %v860 = vunpack.c.l.b16 %v856
      %v861 = vpack.c.b16 %v860, %v859
      %v864 = vsel %vm640, %v850, 0
      %v867 = vsel %vm640, %v851, 0
      %v870 = vsel %vm640, %v852, 0
      %v873 = vsel %vm640, %v853, 0
      %875 = vmatprep.subr.bf16.mxu0 0
      %876 = vmatpush1.bf16.msra.mxu0 %v861
      %877 = vmatprep.subr.bf16.mxu0 0
      %878 = vmatpush1.bf16.msra.mxu0 0
      %879 = vmatprep.subr.bf16.mxu0 0
      %880 = vmatpush1.bf16.msra.mxu0 0
      %881 = vmatprep.subr.bf16.mxu0 0
      %882 = vmatpush1.bf16.msra.mxu0 0
      %883 = vmatprep.subr.bf16.mxu0 0
      %884 = vmatpush1.bf16.msra.mxu0 0
      %885 = vmatprep.subr.bf16.mxu0 0
      %886 = vmatpush1.bf16.msra.mxu0 0
      %887 = vmatprep.subr.bf16.mxu0 0
      %888 = vmatpush1.bf16.msra.mxu0 0
      %889 = vmatprep.subr.bf16.mxu0 0
      %890 = vmatpush1.bf16.msra.mxu0 0
      %891 = vmatprep.subr.bf16.mxu0 0
      %892 = vmatpush1.bf16.msra.mxu0 0
      %893 = vmatprep.subr.bf16.mxu0 0
      %894 = vmatpush1.bf16.msra.mxu0 0
      %895 = vmatprep.subr.bf16.mxu0 0
      %896 = vmatpush1.bf16.msra.mxu0 0
      %897 = vmatprep.subr.bf16.mxu0 0
      %898 = vmatpush1.bf16.msra.mxu0 0
      %899 = vmatprep.subr.bf16.mxu0 0
      %900 = vmatpush1.bf16.msra.mxu0 0
      %901 = vmatprep.subr.bf16.mxu0 0
      %902 = vmatpush1.bf16.msra.mxu0 0
      %903 = vmatprep.subr.bf16.mxu0 0
      %904 = vmatpush1.bf16.msra.mxu0 0
      %905 = vmatprep.subr.bf16.mxu0 0
      %906 = vmatpush1.bf16.msra.mxu0 0
      %907 = vmatprep.mubr.bf16.mxu0 0
      %908 = vmatmul.mubr.bf16.gmra.mrb[0].mxu0 %v864
      %v909 = vpop.f32.mrb[0].mxu0
      %v910 = vadd.f32 0.0, %v909
      %v911 = vpop.f32.mrb[0].mxu0
      %v912 = vpop.f32.mrb[0].mxu0
      %v913 = vadd.f32 0.0, %v912
      %v914 = vpop.f32.mrb[0].mxu0
      %915 = vmatprep.mubr.bf16.mxu0 0
      %916 = vmatmul.mubr.bf16.gmra.mrb[0].mxu0 %v867
      %v917 = vpop.f32.mrb[0].mxu0
      %v918 = vadd.f32 0.0, %v917
      %v919 = vpop.f32.mrb[0].mxu0
      %v920 = vpop.f32.mrb[0].mxu0
      %v921 = vadd.f32 0.0, %v920
      %v922 = vpop.f32.mrb[0].mxu0
      %923 = vmatprep.mubr.bf16.mxu0 0
      %924 = vmatmul.mubr.bf16.gmra.mrb[0].mxu0 %v870
      %v925 = vpop.f32.mrb[0].mxu0
      %v926 = vadd.f32 0.0, %v925
      %v927 = vpop.f32.mrb[0].mxu0
      %v928 = vpop.f32.mrb[0].mxu0
      %v929 = vadd.f32 0.0, %v928
      %v930 = vpop.f32.mrb[0].mxu0
      %931 = vmatprep.mubr.bf16.mxu0 0
      %932 = vmatmul.mubr.bf16.gmra.mrb[0].mxu0 %v873
      %v933 = vpop.f32.mrb[0].mxu0
      %v934 = vadd.f32 0.0, %v933
      %v935 = vpop.f32.mrb[0].mxu0
      %v936 = vpop.f32.mrb[0].mxu0
      %v937 = vadd.f32 0.0, %v936
      %v938 = vpop.f32.mrb[0].mxu0
      %939 = vdwg.mxu0
      %v940 = vadd.f32 %v841, %v910
      %v941 = vadd.f32 %v842, %v913
      %v942 = vadd.f32 %v843, %v918
      %v943 = vadd.f32 %v844, %v921
      %v944 = vadd.f32 %v845, %v926
      %v945 = vadd.f32 %v846, %v929
      %v946 = vadd.f32 %v847, %v934
      %v947 = vadd.f32 %v848, %v937
      %948 = vst [vmem:[#allocation3] sm:$0xff] %v940
      %949 = vst [vmem:[#allocation3 + $0x8] sm:$0xff] %v941
      %950 = vst [vmem:[#allocation3 + $0x10] sm:$0xff] %v942
      %951 = vst [vmem:[#allocation3 + $0x18] sm:$0xff] %v943
      %952 = vst [vmem:[#allocation3 + $0x20] sm:$0xff] %v944
      %953 = vst [vmem:[#allocation3 + $0x28] sm:$0xff] %v945
      %954 = vst [vmem:[#allocation3 + $0x30] sm:$0xff] %v946
      %955 = vst [vmem:[#allocation3 + $0x38] sm:$0xff] %v947
      %v956 = vld [vmem:[#allocation3] sm:$0xff]
      %v957 = vld [vmem:[#allocation3 + $0x8] sm:$0xff]
      %v958 = vld [vmem:[#allocation3 + $0x10] sm:$0xff]
      %v959 = vld [vmem:[#allocation3 + $0x18] sm:$0xff]
      %v960 = vld [vmem:[#allocation3 + $0x20] sm:$0xff]
      %v961 = vld [vmem:[#allocation3 + $0x28] sm:$0xff]
      %v962 = vld [vmem:[#allocation3 + $0x30] sm:$0xff]
      %v963 = vld [vmem:[#allocation3 + $0x38] sm:$0xff]
      %s964 = scalar_lea.vmem [#allocation2], 96
      %v965 = vld [vmem:[%s964] sm:$0xff]
      %v966 = vld [vmem:[%s964 + $0x8] sm:$0xff]
      %v967 = vld [vmem:[%s964 + $0x10] sm:$0xff]
      %v968 = vld [vmem:[%s964 + $0x18] sm:$0xff]
      %s969 = scalar_lea.vmem %s223, 24
      %v970 = vld [vmem:[%s969] sm:$0xf]
      %v971 = vld [vmem:[%s969 + $0x4] sm:$0xf]
      %v974 = vunpack.c.l.b16 %v970
      %v975 = vunpack.c.l.b16 %v971
      %v976 = vpack.c.b16 %v975, %v974
      %v979 = vsel %vm640, %v965, 0
      %v982 = vsel %vm640, %v966, 0
      %v985 = vsel %vm640, %v967, 0
      %v988 = vsel %vm640, %v968, 0
      %990 = vmatprep.subr.bf16.mxu0 0
      %991 = vmatpush1.bf16.msra.mxu0 %v976
      %992 = vmatprep.subr.bf16.mxu0 0
      %993 = vmatpush1.bf16.msra.mxu0 0
      %994 = vmatprep.subr.bf16.mxu0 0
      %995 = vmatpush1.bf16.msra.mxu0 0
      %996 = vmatprep.subr.bf16.mxu0 0
      %997 = vmatpush1.bf16.msra.mxu0 0
      %998 = vmatprep.subr.bf16.mxu0 0
      %999 = vmatpush1.bf16.msra.mxu0 0
      %1000 = vmatprep.subr.bf16.mxu0 0
      %1001 = vmatpush1.bf16.msra.mxu0 0
      %1002 = vmatprep.subr.bf16.mxu0 0
      %1003 = vmatpush1.bf16.msra.mxu0 0
      %1004 = vmatprep.subr.bf16.mxu0 0
      %1005 = vmatpush1.bf16.msra.mxu0 0
      %1006 = vmatprep.subr.bf16.mxu0 0
      %1007 = vmatpush1.bf16.msra.mxu0 0
      %1008 = vmatprep.subr.bf16.mxu0 0
      %1009 = vmatpush1.bf16.msra.mxu0 0
      %1010 = vmatprep.subr.bf16.mxu0 0
      %1011 = vmatpush1.bf16.msra.mxu0 0
      %1012 = vmatprep.subr.bf16.mxu0 0
      %1013 = vmatpush1.bf16.msra.mxu0 0
      %1014 = vmatprep.subr.bf16.mxu0 0
      %1015 = vmatpush1.bf16.msra.mxu0 0
      %1016 = vmatprep.subr.bf16.mxu0 0
      %1017 = vmatpush1.bf16.msra.mxu0 0
      %1018 = vmatprep.subr.bf16.mxu0 0
      %1019 = vmatpush1.bf16.msra.mxu0 0
      %1020 = vmatprep.subr.bf16.mxu0 0
      %1021 = vmatpush1.bf16.msra.mxu0 0
      %1022 = vmatprep.mubr.bf16.mxu0 0
      %1023 = vmatmul.mubr.bf16.gmra.mrb[0].mxu0 %v979
      %v1024 = vpop.f32.mrb[0].mxu0
      %v1025 = vadd.f32 0.0, %v1024
      %v1026 = vpop.f32.mrb[0].mxu0
      %v1027 = vpop.f32.mrb[0].mxu0
      %v1028 = vadd.f32 0.0, %v1027
      %v1029 = vpop.f32.mrb[0].mxu0
      %1030 = vmatprep.mubr.bf16.mxu0 0
      %1031 = vmatmul.mubr.bf16.gmra.mrb[0].mxu0 %v982
      %v1032 = vpop.f32.mrb[0].mxu0
      %v1033 = vadd.f32 0.0, %v1032
      %v1034 = vpop.f32.mrb[0].mxu0
      %v1035 = vpop.f32.mrb[0].mxu0
      %v1036 = vadd.f32 0.0, %v1035
      %v1037 = vpop.f32.mrb[0].mxu0
      %1038 = vmatprep.mubr.bf16.mxu0 0
      %1039 = vmatmul.mubr.bf16.gmra.mrb[0].mxu0 %v985
      %v1040 = vpop.f32.mrb[0].mxu0
      %v1041 = vadd.f32 0.0, %v1040
      %v1042 = vpop.f32.mrb[0].mxu0
      %v1043 = vpop.f32.mrb[0].mxu0
      %v1044 = vadd.f32 0.0, %v1043
      %v1045 = vpop.f32.mrb[0].mxu0
      %1046 = vmatprep.mubr.bf16.mxu0 0
      %1047 = vmatmul.mubr.bf16.gmra.mrb[0].mxu0 %v988
      %v1048 = vpop.f32.mrb[0].mxu0
      %v1049 = vadd.f32 0.0, %v1048
      %v1050 = vpop.f32.mrb[0].mxu0
      %v1051 = vpop.f32.mrb[0].mxu0
      %v1052 = vadd.f32 0.0, %v1051
      %v1053 = vpop.f32.mrb[0].mxu0
      %1054 = vdwg.mxu0
      %v1055 = vadd.f32 %v956, %v1025
      %v1056 = vadd.f32 %v957, %v1028
      %v1057 = vadd.f32 %v958, %v1033
      %v1058 = vadd.f32 %v959, %v1036
      %v1059 = vadd.f32 %v960, %v1041
      %v1060 = vadd.f32 %v961, %v1044
      %v1061 = vadd.f32 %v962, %v1049
      %v1062 = vadd.f32 %v963, %v1052
      %1063 = vst [vmem:[#allocation3] sm:$0xff] %v1055
      %1064 = vst [vmem:[#allocation3 + $0x8] sm:$0xff] %v1056
      %1065 = vst [vmem:[#allocation3 + $0x10] sm:$0xff] %v1057
      %1066 = vst [vmem:[#allocation3 + $0x18] sm:$0xff] %v1058
      %1067 = vst [vmem:[#allocation3 + $0x20] sm:$0xff] %v1059
      %1068 = vst [vmem:[#allocation3 + $0x28] sm:$0xff] %v1060
      %1069 = vst [vmem:[#allocation3 + $0x30] sm:$0xff] %v1061
      %1070 = vst [vmem:[#allocation3 + $0x38] sm:$0xff] %v1062
      %v1071 = vld [vmem:[#allocation3] sm:$0xff]
      %v1072 = vld [vmem:[#allocation3 + $0x8] sm:$0xff]
      %v1073 = vld [vmem:[#allocation3 + $0x10] sm:$0xff]
      %v1074 = vld [vmem:[#allocation3 + $0x18] sm:$0xff]
      %v1075 = vld [vmem:[#allocation3 + $0x20] sm:$0xff]
      %v1076 = vld [vmem:[#allocation3 + $0x28] sm:$0xff]
      %v1077 = vld [vmem:[#allocation3 + $0x30] sm:$0xff]
      %v1078 = vld [vmem:[#allocation3 + $0x38] sm:$0xff]
      %v1079 = vld [vmem:[%s226] sm:$0x1]
      %v1081 = vlaneseq
      %v1082 = vshrl.u32 %v1081, 7
      %v1083 = vsub.s32 0, %v1082
      %v1084 = vrot.slane %v1079, %v1083
      %v1086 = vadd.f32 %v1071, %v1084
      %v1087 = vadd.f32 %v1072, %v1084
      %v1088 = vadd.f32 %v1073, %v1084
      %v1089 = vadd.f32 %v1074, %v1084
      %v1090 = vadd.f32 %v1075, %v1084
      %v1091 = vadd.f32 %v1076, %v1084
      %v1092 = vadd.f32 %v1077, %v1084
      %v1093 = vadd.f32 %v1078, %v1084
      %vm1094 = vcmp.ge.f32.partialorder %v1086, 0.0
      %vm1095 = vcmp.ge.f32.partialorder %v1087, 0.0
      %vm1096 = vcmp.ge.f32.partialorder %v1088, 0.0
      %vm1097 = vcmp.ge.f32.partialorder %v1089, 0.0
      %vm1098 = vcmp.ge.f32.partialorder %v1090, 0.0
      %vm1099 = vcmp.ge.f32.partialorder %v1091, 0.0
      %vm1100 = vcmp.ge.f32.partialorder %v1092, 0.0
      %vm1101 = vcmp.ge.f32.partialorder %v1093, 0.0
      %v1102 = vmul.f32 %v1086, 0.01
      %v1103 = vmul.f32 %v1087, 0.01
      %v1104 = vmul.f32 %v1088, 0.01
      %v1105 = vmul.f32 %v1089, 0.01
      %v1106 = vmul.f32 %v1090, 0.01
      %v1107 = vmul.f32 %v1091, 0.01
      %v1108 = vmul.f32 %v1092, 0.01
      %v1109 = vmul.f32 %v1093, 0.01
      %v1110 = vsel %vm1094, %v1086, %v1102
      %v1111 = vsel %vm1095, %v1087, %v1103
      %v1112 = vsel %vm1096, %v1088, %v1104
      %v1113 = vsel %vm1097, %v1089, %v1105
      %v1114 = vsel %vm1098, %v1090, %v1106
      %v1115 = vsel %vm1099, %v1091, %v1107
      %v1116 = vsel %vm1100, %v1092, %v1108
      %v1117 = vsel %vm1101, %v1093, %v1109
      %v1118 = vpack.c.bf16 %v1111, %v1110
      %v1119 = vpack.c.bf16 %v1113, %v1112
      %v1120 = vpack.c.bf16 %v1115, %v1114
      %v1121 = vpack.c.bf16 %v1117, %v1116
      %v1126 = vunpack.c.l.b16 %v1118
      %v1127 = vunpack.c.h.b16 %v1118
      %v1128 = vunpack.c.l.b16 %v1119
      %v1129 = vunpack.c.h.b16 %v1119
      %v1130 = vunpack.c.l.b16 %v1120
      %v1131 = vunpack.c.h.b16 %v1120
      %v1132 = vunpack.c.l.b16 %v1121
      %v1133 = vunpack.c.h.b16 %v1121
      %v1134 = vpack.c.b16 %v1126, %v1126
      %v1135 = vpack.c.b16 %v1127, %v1127
      %v1136 = vpack.c.b16 %v1128, %v1128
      %v1137 = vpack.c.b16 %v1129, %v1129
      %v1138 = vpack.c.b16 %v1130, %v1130
      %v1139 = vpack.c.b16 %v1131, %v1131
      %v1140 = vpack.c.b16 %v1132, %v1132
      %v1141 = vpack.c.b16 %v1133, %v1133
      %1150 = vst [vmem:[%s238] sm:$0xf] %v1134
      %1151 = vst [vmem:[%s238 + $0x4] sm:$0xf] %v1135
      %1152 = vst [vmem:[%s238 + $0x8] sm:$0xf] %v1136
      %1153 = vst [vmem:[%s238 + $0xc] sm:$0xf] %v1137
      %1154 = vst [vmem:[%s238 + $0x10] sm:$0xf] %v1138
      %1155 = vst [vmem:[%s238 + $0x14] sm:$0xf] %v1139
      %1156 = vst [vmem:[%s238 + $0x18] sm:$0xf] %v1140
      %1157 = vst [vmem:[%s238 + $0x1c] sm:$0xf] %v1141
      %s1158 = smul.u32 8, %s20
      %p1159 = scmp.lt.s32.totalorder %s19, 1
      %s1160 = scalar_select %p1159, %s19, 1
      %p1161 = scmp.lt.s32.totalorder %s1158, 7
      %s1162 = scalar_select %p1161, %s1158, 7
      %p1163 = scmp.lt.s32.totalorder %s21, 0
      %s1164 = scalar_select %p1163, %s21, 0
      %s1165 = sadd.s32 %s1164, %s1162
      %s1166 = smul.addr %s1160, 8
      %s1167 = sadd.s32 %s1165, %s1166
      %s1168 = smul.addr %s1167, 4
      %s1169 = scalar_lea.vmem %s3, %s1168
      // Predicated region
      $region37: #{_lambda_.4} parent=31 // pred_check
        %p1170 = pneg %p133
      $region38: #{_lambda_.4} parent=31 // pred_check_branch
        %1172 = sbr.rel (%p1170) target = $region40
      $region39: #{_lambda_.4} parent=31 // pred_region
        %s1173 = smul.u32 8, %s20
      $region40: #{_lambda_.4} parent=31 // pred_fallthru
        _
    $region32: #{_lambda_.4} parent=5 // pred_fallthru
      _
    %p1174 = scmp.le.s32.totalorder 2, %s9
    // Predicated region
    $region41: #{_lambda_.4} parent=5 // pred_check
      %p1175 = pneg %p1174
    $region42: #{_lambda_.4} parent=5 // pred_check_branch
      %1177 = sbr.rel (%p1175) target = $region44
    $region43: #{_lambda_.4} parent=5 // pred_region
      %s1178 = ssub.s32 %s9, 2
      // Predicated region
      $region45: #{_lambda_.4} parent=43 // pred_check
        %p1179 = pneg %p139
      $region46: #{_lambda_.4} parent=43 // pred_check_branch
        %1181 = sbr.rel (%p1179) target = $region48
      $region47: #{_lambda_.4} parent=43 // pred_region
        %s1182 = smul.u32 8, %s23
        %p1183 = scmp.lt.s32.totalorder %s22, 1
        %s1184 = scalar_select %p1183, %s22, 1
        %p1185 = scmp.lt.s32.totalorder %s1182, 7
        %s1186 = scalar_select %p1185, %s1182, 7
        %p1187 = scmp.lt.s32.totalorder %s24, 0
        %s1188 = scalar_select %p1187, %s24, 0
        %s1189 = sadd.s32 %s1188, %s1186
        %s1190 = smul.addr %s1184, 8
        %s1191 = sadd.s32 %s1189, %s1190
        %s1192 = smul.addr %s1191, 4
        %s1193 = scalar_lea.vmem %s3, %s1192
      $region48: #{_lambda_.4} parent=43 // pred_fallthru
        _
    $region44: #{_lambda_.4} parent=5 // pred_fallthru
      _
  $region6: #{_lambda_.4} parent=0 // loop_footer
    %s13 = sadd.s32 1, %s9
  $region7: #{_lambda_.4} parent=0 // loop_footer_branch
    %8 = sbr.rel target = $region3
  $region8: #{_lambda_.4} parent=0 // loop_exit
    _

// kernel: squeeze.2
$region0: #{squeeze.2}
  %s0 = inlined_call_operand.vmem [shape: f32[2,4], index: 0, kind: input, shape index: {}]
  %s1 = inlined_call_operand.hbm [shape: f32[2,2,2], index: 1, kind: output, shape index: {}]
  $region1: #{squeeze.2} parent=0
    #allocation0 [shape = 'u8[2048]{0}', space=vmem, size = 0x800, scoped, tag = 'operand span for operand 1']
    #allocation1 [shape = 's32[1]{0}', space=sflag, size = 0x4, scoped, tag = 'scoped memory for squeeze.2']
    #allocation2 [shape = 'u8[8192]{0}', space=vmem, size = 0x2000, scoped, tag = 'scoped mem for output reshape']
    #allocation3 [shape = 'u8[4096]{0}', space=vmem, size = 0x1000, scoped, tag = 'scoped mem for input reshape']
    %2 = vsyncpa [#allocation1], 0
    %s4 = sshllo.u32 0, 2
    %v5 = vld [vmem:[%s0] sm:%s4]
    %6 = vst [vmem:[#allocation3] sm:%s4] %v5
    %v7 = vld [vmem:[#allocation3] sm:$0x3]
    %vm8 = vcmask 15360
    %9 = vst.msk [vmem:[#allocation2] ss:$8 sm:$0x3] %vm8, %v7
    %v10 = vld [vmem:[#allocation3] sm:$0x3]
    %11 = vrot.lane.b32.xlu0 %v10, 126
    %v12 = vpop.permute.xlu0 %11
    %vm13 = vcmask 15360
    %s14 = scalar_lea.vmem [#allocation2], 1
    %15 = vst.msk [vmem:[%s14] ss:$8 sm:$0x3] %vm13, %v12
    %s17 = sshllo.u32 0, 2
    %v19 = vld [vmem:[#allocation2] sm:%s17]
    %s20 = sshllo.u32 0, 2
    %21 = vst [vmem:[#allocation0] sm:%s20] %v19
    %s22 = scalar_lea.vmem [#allocation2], 8
    %v23 = vld [vmem:[%s22] sm:%s17]
    %s24 = sshllo.u32 0, 2
    %s25 = scalar_lea.vmem [#allocation0], 2
    %26 = vst [vmem:[%s25] sm:%s24] %v23
    %s28 = ssub.s32 64, 64
    %29 = vsyncadd [#allocation1], %s28
    %s31 = sshll.u32 [#allocation0], 4
    %s32 = int_to_ptr.vmem [resolvable:$true] %s31
    %34 = dma.vmem_to_hbm [thread:$0]  %s32, 64, %s1, [#allocation1]
    %35 = dma.done [#allocation1], 64
    %36 = vsyncpa [#allocation1], 1

// kernel: _lambda_.6
$region0: #{_lambda_.6}
  #allocation0 [shape = 'u32[]', space=smem, size = 0x4, offset = 0x4, fixed_abs, tag = 'smem constant byte address 0x4 - core index']
  #allocation1 [shape = 'u32[144,128]{1,0:T(1,128)}', space=vmem, size = 0x12000, scoped, tag = 'internal scratch']
  #allocation2 [shape = 'bf16[4,4,64]{2,1,0:T(4,128)(2,1)}', space=vmem, size = 0x1000, scoped, tag = 'scratch operand']
  #allocation3 [shape = 'f32[4,128]{1,0:T(4,128)}', space=vmem, size = 0x800, scoped, tag = 'scratch operand']
  %s0 = inlined_call_operand.vmem [shape: bf16[2,3,3,64], index: 0, kind: input, shape index: {}]
  %s1 = inlined_call_operand.vmem [shape: bf16[4,64,128], index: 1, kind: input, shape index: {}]
  %s2 = inlined_call_operand.vmem [shape: bf16[2,4,128], index: 2, kind: output, shape index: {}]
  %s3 = sld [smem:[#allocation0]]
  $region45: #{_lambda_.6} parent=0
    _
  %s5 = ssub.s32 1, %s3
  %s6 = scalar_select 0, %s5, %s3
  loop: start=0, step=1, limit=4
  $region2: #{_lambda_.6} parent=0 // loop_pre_header
    _
  $region3: #{_lambda_.6} parent=0 // loop_header
    %s8 = sphi 0, %s12
    %p9 = scmp.ge.s32.totalorder %s8, 4
    %s15 = sphi 0, %s34
    %s16 = sphi 0, %s30
    %s17 = sphi 0, %s26
    %s18 = sphi 0, %s15
    %s19 = sphi 0, %s16
    %s20 = sphi 0, %s17
    %s21 = sphi 0, %s18
    %s22 = sphi 0, %s19
    %s23 = sphi 0, %s20
    %s37 = sphi 0, %s39
    %s40 = sphi 0, %s37
    %s41 = sphi 0, %s40
    %s57 = sphi 0, %s41
    %s63 = sphi 0, %s65
    %s66 = sphi 0, %s63
    %s67 = sphi 0, %s66
    %s83 = sphi 0, %s67
    %s93 = sphi 0, %s95
    %s96 = sphi 0, %s93
    %s97 = sphi 0, %s96
    %s113 = sphi 0, %s97
  $region4: #{_lambda_.6} parent=0 // loop_header_branch
    %11 = sbr.rel (%p9) target = $region8
  $region5: #{_lambda_.6} parent=0 // loop_body
    %s13 = ssub.s32 %s8, 1
    %s14 = ssub.s32 %s8, 2
    %s24 = sadd.s32 1, %s17
    %p25 = scmp.ge.s32.totalorder %s24, 1
    %s26 = scalar_select %p25, 0, %s24
    %s27 = sadd.s32 1, %s16
    %s28 = scalar_select %p25, %s27, %s16
    %p29 = scmp.ge.s32.totalorder %s28, 1
    %s30 = scalar_select %p29, 0, %s28
    %s31 = sadd.s32 1, %s15
    %s32 = scalar_select %p29, %s31, %s15
    %p33 = scmp.ge.s32.totalorder %s32, 2
    %s34 = scalar_select %p33, 0, %s32
    %s35 = ssub.s32 %s15, %s34
    %p36 = scmp.eq.s32.totalorder %s35, 0
    %s38 = sadd.s32 %s37, 1
    %s39 = scalar_select %p36, %s37, %s38
    %p42 = pneg %p36
    %p43 = scmp.eq.s32.totalorder %s8, 1
    %p44 = por %p42, %p43
    %p45 = scmp.ne.s32.totalorder %s37, %s40
    %p46 = scmp.eq.s32.totalorder %s8, 0
    %p47 = por %p45, %p46
    %p48 = scmp.ne.s32.totalorder %s37, %s40
    %p49 = scmp.eq.s32.totalorder %s13, 1
    %p50 = por %p48, %p49
    %p51 = scmp.ne.s32.totalorder %s40, %s41
    %p52 = scmp.eq.s32.totalorder %s13, 0
    %p53 = por %p51, %p52
    %p54 = scmp.ne.s32.totalorder %s40, %s41
    %p55 = scmp.eq.s32.totalorder %s14, 1
    %p56 = por %p54, %p55
    %p58 = scmp.ne.s32.totalorder %s41, %s57
    %p59 = scmp.eq.s32.totalorder %s14, 0
    %p60 = por %p58, %p59
    %s61 = ssub.s32 %s17, %s26
    %p62 = scmp.eq.s32.totalorder %s61, 0
    %s64 = sadd.s32 %s63, 1
    %s65 = scalar_select %p62, %s63, %s64
    %p68 = pneg %p62
    %p69 = scmp.eq.s32.totalorder %s8, 1
    %p70 = por %p68, %p69
    %p71 = scmp.ne.s32.totalorder %s63, %s66
    %p72 = scmp.eq.s32.totalorder %s8, 0
    %p73 = por %p71, %p72
    %p74 = scmp.ne.s32.totalorder %s63, %s66
    %p75 = scmp.eq.s32.totalorder %s13, 1
    %p76 = por %p74, %p75
    %p77 = scmp.ne.s32.totalorder %s66, %s67
    %p78 = scmp.eq.s32.totalorder %s13, 0
    %p79 = por %p77, %p78
    %p80 = scmp.ne.s32.totalorder %s66, %s67
    %p81 = scmp.eq.s32.totalorder %s14, 1
    %p82 = por %p80, %p81
    %p84 = scmp.ne.s32.totalorder %s67, %s83
    %p85 = scmp.eq.s32.totalorder %s14, 0
    %p86 = por %p84, %p85
    %s87 = ssub.s32 %s15, %s34
    %s88 = ssub.s32 %s16, %s30
    %s89 = sor.u32 %s87, %s88
    %s90 = ssub.s32 %s17, %s26
    %s91 = sor.u32 %s89, %s90
    %p92 = scmp.eq.s32.totalorder %s91, 0
    %s94 = sadd.s32 %s93, 1
    %s95 = scalar_select %p92, %s93, %s94
    %p98 = pneg %p92
    %p99 = scmp.eq.s32.totalorder %s8, 1
    %p100 = por %p98, %p99
    %p101 = scmp.ne.s32.totalorder %s93, %s96
    %p102 = scmp.eq.s32.totalorder %s8, 0
    %p103 = por %p101, %p102
    %p104 = scmp.ne.s32.totalorder %s93, %s96
    %p105 = scmp.eq.s32.totalorder %s13, 1
    %p106 = por %p104, %p105
    %p107 = scmp.ne.s32.totalorder %s96, %s97
    %p108 = scmp.eq.s32.totalorder %s13, 0
    %p109 = por %p107, %p108
    %p110 = scmp.ne.s32.totalorder %s96, %s97
    %p111 = scmp.eq.s32.totalorder %s14, 1
    %p112 = por %p110, %p111
    %p114 = scmp.ne.s32.totalorder %s97, %s113
    %p115 = scmp.eq.s32.totalorder %s14, 0
    %p116 = por %p114, %p115
    %p117 = scmp.le.s32.totalorder 1, %s8
    %p118 = scmp.lt.s32.totalorder %s8, 3
    %p119 = pnand %p117, %p118
    %p120 = pneg %p119
    // Predicated region
    $region9: #{_lambda_.6} parent=5 // pred_check
      _
    $region10: #{_lambda_.6} parent=5 // pred_check_branch
      %122 = sbr.rel (%p119) target = $region12
    $region11: #{_lambda_.6} parent=5 // pred_region
      %s123 = ssub.s32 %s8, 1
      // Predicated region
      $region13: #{_lambda_.6} parent=11 // pred_check
        %p124 = pneg %p79
      $region14: #{_lambda_.6} parent=11 // pred_check_branch
        %126 = sbr.rel (%p124) target = $region16
      $region15: #{_lambda_.6} parent=11 // pred_region
        %p127 = scmp.lt.s32.totalorder %s20, 0
        %s128 = scalar_select %p127, %s20, 0
        %s129 = smul.addr %s128, 4
        %s130 = scalar_lea.vmem %s1, %s129
      $region16: #{_lambda_.6} parent=11 // pred_fallthru
        _
    $region12: #{_lambda_.6} parent=5 // pred_fallthru
      _
    %p131 = scmp.lt.s32.totalorder %s8, 2
    // Predicated region
    $region17: #{_lambda_.6} parent=5 // pred_check
      %p132 = pneg %p131
    $region18: #{_lambda_.6} parent=5 // pred_check_branch
      %134 = sbr.rel (%p132) target = $region20
    $region19: #{_lambda_.6} parent=5 // pred_region
      // Predicated region
      $region21: #{_lambda_.6} parent=19 // pred_check
        %p135 = pneg %p47
      $region22: #{_lambda_.6} parent=19 // pred_check_branch
        %137 = sbr.rel (%p135) target = $region24
      $region23: #{_lambda_.6} parent=19 // pred_region
        %p138 = scmp.lt.s32.totalorder %s15, 1
        %s139 = scalar_select %p138, %s15, 1
        %s140 = smul.addr %s139, 3
        %s141 = smul.addr %s140, 2
        %s142 = scalar_lea.vmem %s0, %s141
      $region24: #{_lambda_.6} parent=19 // pred_fallthru
        _
    $region20: #{_lambda_.6} parent=5 // pred_fallthru
      _
    %p143 = scmp.le.s32.totalorder 1, %s8
    %p144 = scmp.lt.s32.totalorder %s8, 3
    %p145 = pnand %p143, %p144
    %p146 = pneg %p145
    // Predicated region
    $region25: #{_lambda_.6} parent=5 // pred_check
      _
    $region26: #{_lambda_.6} parent=5 // pred_check_branch
      %148 = sbr.rel (%p145) target = $region28
    $region27: #{_lambda_.6} parent=5 // pred_region
      %s149 = ssub.s32 %s8, 1
      %p150 = scmp.lt.s32.totalorder %s18, 1
      %s151 = scalar_select %p150, %s18, 1
      %s152 = smul.addr %s151, 3
      %s153 = smul.addr %s152, 2
      %s154 = scalar_lea.vmem %s0, %s153
      %p155 = pneg %p53
      %p156 = pneg %p50
      %p157 = scmp.lt.s32.totalorder %s20, 0
      %s158 = scalar_select %p157, %s20, 0
      %s159 = smul.addr %s158, 4
      %s160 = scalar_lea.vmem %s1, %s159
      %p161 = pneg %p79
      %p162 = pneg %p76
      %p163 = pneg %p109
      %p164 = pneg %p106
      %p165 = scmp.lt.s32.totalorder %s18, 1
      %s166 = scalar_select %p165, %s18, 1
      %p167 = scmp.lt.s32.totalorder %s19, 0
      %s168 = scalar_select %p167, %s19, 0
      %p169 = scmp.lt.s32.totalorder %s20, 0
      %s170 = scalar_select %p169, %s20, 0
      %s171 = sadd.s32 %s170, %s168
      %s172 = sadd.s32 %s171, %s166
      %s173 = smul.addr %s172, 2
      %s174 = scalar_lea.vmem %s2, %s173
      %p175 = scmp.lt.s32.totalorder %s18, 1
      %s176 = scalar_select %p175, %s18, 1
      %s177 = smul.addr %s176, 3
      %s178 = smul.addr %s177, 2
      %s179 = scalar_lea.vmem %s0, %s178
      %p180 = scmp.lt.s32.totalorder %s20, 0
      %s181 = scalar_select %p180, %s20, 0
      %s182 = smul.addr %s181, 4
      %s183 = scalar_lea.vmem %s1, %s182
      %p184 = scmp.lt.s32.totalorder %s18, 1
      %s185 = scalar_select %p184, %s18, 1
      %p186 = scmp.lt.s32.totalorder %s19, 0
      %s187 = scalar_select %p186, %s19, 0
      %p188 = scmp.lt.s32.totalorder %s20, 0
      %s189 = scalar_select %p188, %s20, 0
      %s190 = sadd.s32 %s189, %s187
      %s191 = sadd.s32 %s190, %s185
      %s192 = smul.addr %s191, 2
      %s193 = scalar_lea.vmem %s2, %s192
      %s195 = smul.u32 %s19, 2
      %p196 = scmp.eq.s32.totalorder %s20, 0
      // Predicated region
      $region29: #{_lambda_.6} parent=27 // pred_check
        %p197 = pneg %p196
      $region30: #{_lambda_.6} parent=27 // pred_check_branch
        %199 = sbr.rel (%p197) target = $region32
      $region31: #{_lambda_.6} parent=27 // pred_region
        %s200 = smul.addr %s195, 2
        %s201 = scalar_lea.vmem %s179, %s200
        %v202 = vld [vmem:[%s201] sm:$0x1]
        %v203 = vld [vmem:[%s201 + $0x2] sm:$0x1]
        %v206 = vcombine.low %v202, %v203
        %v208 = vunpack.c.l.s4 1935823168
        %v209 = vunpack.c.0.s8 %v208
        %v210 = vlaneseq
        %v211 = vshrl.u32 %v210, 7
        %v212 = vsub.s32 %v209, %v211
        %v213 = vrot.slane %v206, %v212
        %vm215 = vcmask 517120
        %216 = vst.msk [vmem:[#allocation2] sm:$0x3] %vm215, %v213
        %v217 = vld [vmem:[%s201] sm:$0x3]
        %v218 = vld [vmem:[%s201 + $0x2] sm:$0x3]
        %v222 = vunpack.c.l.s4 1966171168
        %v223 = vunpack.c.0.s8 %v222
        %v224 = vlaneseq
        %v225 = vshrl.u32 %v224, 7
        %v226 = vsub.s32 %v223, %v225
        %v227 = vrot.slane %v217, %v226
        %v228 = vcombine.high %v227, %v227
        %v230 = vunpack.c.l.s4 1966171168
        %v231 = vunpack.c.0.s8 %v230
        %v232 = vlaneseq
        %v233 = vshrl.u32 %v232, 7
        %v234 = vsub.s32 %v231, %v233
        %v235 = vrot.slane %v218, %v234
        %v236 = vcombine.high %v235, %v235
        %vm237 = vsmask.f32 256
        %vm238 = vsmask.f32 1284
        %vm239 = vmor %vm237, %vm238
        %vm240 = vsmask.f32 2312
        %vm241 = vmor %vm239, %vm240
        %vm242 = vsmask.f32 3340
        %vm243 = vmor %vm241, %vm242
        %vm244 = vsmask.f32 4368
        %vm245 = vmor %vm243, %vm244
        %vm246 = vsmask.f32 5396
        %vm247 = vmor %vm245, %vm246
        %vm248 = vsmask.f32 6424
        %vm249 = vmor %vm247, %vm248
        %vm250 = vsmask.f32 7452
        %vm251 = vmor %vm249, %vm250
        %v253 = vshrl.u32 %v227, 16
        %v255 = vrot.slane %v253, 7
        %v256 = vrot.slane %v255, 1
        %v258 = vshll.u32 %v228, 16
        %v260 = vsel %vm251, %v256, %v258
        %v262 = vshrl.u32 %v235, 16
        %v264 = vrot.slane %v262, 7
        %v265 = vrot.slane %v264, 1
        %v267 = vshll.u32 %v236, 16
        %v269 = vsel %vm251, %v265, %v267
        %v270 = vcombine.low %v260, %v269
        %v272 = vunpack.c.l.s4 1935823168
        %v273 = vunpack.c.0.s8 %v272
        %v274 = vlaneseq
        %v275 = vshrl.u32 %v274, 7
        %v276 = vsub.s32 %v273, %v275
        %v277 = vrot.slane %v270, %v276
        %s279 = scalar_lea.vmem [#allocation2], 2
        %280 = vst.msk [vmem:[%s279] sm:$0x3] %vm215, %v277
        %s281 = sadd.s32 %s195, 1
        %s282 = smul.addr %s281, 2
        %s283 = scalar_lea.vmem %s179, %s282
        %v284 = vld [vmem:[%s283] sm:$0x1]
        %v285 = vld [vmem:[%s283 + $0x2] sm:$0x1]
        %v288 = vcombine.low %v284, %v285
        %v290 = vunpack.c.l.s4 1935823168
        %v291 = vunpack.c.0.s8 %v290
        %v292 = vlaneseq
        %v293 = vshrl.u32 %v292, 7
        %v294 = vsub.s32 %v291, %v293
        %v295 = vrot.slane %v288, %v294
        %s297 = scalar_lea.vmem [#allocation2], 4
        %298 = vst.msk [vmem:[%s297] sm:$0x3] %vm215, %v295
        %v299 = vld [vmem:[%s283] sm:$0x3]
        %v300 = vld [vmem:[%s283 + $0x2] sm:$0x3]
        %v304 = vunpack.c.l.s4 1966171168
        %v305 = vunpack.c.0.s8 %v304
        %v306 = vlaneseq
        %v307 = vshrl.u32 %v306, 7
        %v308 = vsub.s32 %v305, %v307
        %v309 = vrot.slane %v299, %v308
        %v310 = vcombine.high %v309, %v309
        %v312 = vunpack.c.l.s4 1966171168
        %v313 = vunpack.c.0.s8 %v312
        %v314 = vlaneseq
        %v315 = vshrl.u32 %v314, 7
        %v316 = vsub.s32 %v313, %v315
        %v317 = vrot.slane %v300, %v316
        %v318 = vcombine.high %v317, %v317
        %v320 = vshrl.u32 %v309, 16
        %v322 = vrot.slane %v320, 7
        %v323 = vrot.slane %v322, 1
        %v325 = vshll.u32 %v310, 16
        %v327 = vsel %vm251, %v323, %v325
        %v329 = vshrl.u32 %v317, 16
        %v331 = vrot.slane %v329, 7
        %v332 = vrot.slane %v331, 1
        %v334 = vshll.u32 %v318, 16
        %v336 = vsel %vm251, %v332, %v334
        %v337 = vcombine.low %v327, %v336
        %v339 = vunpack.c.l.s4 1935823168
        %v340 = vunpack.c.0.s8 %v339
        %v341 = vlaneseq
        %v342 = vshrl.u32 %v341, 7
        %v343 = vsub.s32 %v340, %v342
        %v344 = vrot.slane %v337, %v343
        %s346 = scalar_lea.vmem [#allocation2], 6
        %347 = vst.msk [vmem:[%s346] sm:$0x3] %vm215, %v344
      $region32: #{_lambda_.6} parent=27 // pred_fallthru
        _
      %v348 = vld [vmem:[#allocation2] sm:$0x3]
      %v349 = vld [vmem:[%s183] sm:$0xf]
      %v350 = vld [vmem:[%s183 + $0x4] sm:$0xf]
      %v351 = vld [vmem:[%s183 + $0x8] sm:$0xf]
      %v352 = vld [vmem:[%s183 + $0xc] sm:$0xf]
      %v353 = vld [vmem:[%s183 + $0x10] sm:$0xf]
      %v354 = vld [vmem:[%s183 + $0x14] sm:$0xf]
      %v355 = vld [vmem:[%s183 + $0x18] sm:$0xf]
      %v356 = vld [vmem:[%s183 + $0x1c] sm:$0xf]
      %v365 = vunpack.c.l.b16 %v349
      %v366 = vunpack.c.l.b16 %v350
      %v367 = vunpack.c.l.b16 %v351
      %v368 = vunpack.c.l.b16 %v352
      %v369 = vunpack.c.l.b16 %v353
      %v370 = vunpack.c.l.b16 %v354
      %v371 = vunpack.c.l.b16 %v355
      %v372 = vunpack.c.l.b16 %v356
      %v373 = vpack.c.b16 %v366, %v365
      %v374 = vpack.c.b16 %v368, %v367
      %v375 = vpack.c.b16 %v370, %v369
      %v376 = vpack.c.b16 %v372, %v371
      %vm381 = vcmask 523264
      %v383 = vsel %vm381, %v348, 0
      %385 = vmatprep.subr.bf16.mxu0 0
      %386 = vmatpush1.bf16.msra.mxu0 %v373
      %387 = vmatprep.subr.bf16.mxu0 0
      %388 = vmatpush1.bf16.msra.mxu0 %v374
      %389 = vmatprep.subr.bf16.mxu0 0
      %390 = vmatpush1.bf16.msra.mxu0 %v375
      %391 = vmatprep.subr.bf16.mxu0 0
      %392 = vmatpush1.bf16.msra.mxu0 %v376
      %393 = vmatprep.subr.bf16.mxu0 0
      %394 = vmatpush1.bf16.msra.mxu0 0
      %395 = vmatprep.subr.bf16.mxu0 0
      %396 = vmatpush1.bf16.msra.mxu0 0
      %397 = vmatprep.subr.bf16.mxu0 0
      %398 = vmatpush1.bf16.msra.mxu0 0
      %399 = vmatprep.subr.bf16.mxu0 0
      %400 = vmatpush1.bf16.msra.mxu0 0
      %401 = vmatprep.subr.bf16.mxu0 0
      %402 = vmatpush1.bf16.msra.mxu0 0
      %403 = vmatprep.subr.bf16.mxu0 0
      %404 = vmatpush1.bf16.msra.mxu0 0
      %405 = vmatprep.subr.bf16.mxu0 0
      %406 = vmatpush1.bf16.msra.mxu0 0
      %407 = vmatprep.subr.bf16.mxu0 0
      %408 = vmatpush1.bf16.msra.mxu0 0
      %409 = vmatprep.subr.bf16.mxu0 0
      %410 = vmatpush1.bf16.msra.mxu0 0
      %411 = vmatprep.subr.bf16.mxu0 0
      %412 = vmatpush1.bf16.msra.mxu0 0
      %413 = vmatprep.subr.bf16.mxu0 0
      %414 = vmatpush1.bf16.msra.mxu0 0
      %415 = vmatprep.subr.bf16.mxu0 0
      %416 = vmatpush1.bf16.msra.mxu0 0
      %417 = vmatprep.mubr.bf16.mxu0 0
      %418 = vmatmul.mubr.bf16.gmra.mrb[0].mxu0 %v383
      %v419 = vpop.f32.mrb[0].mxu0
      %v420 = vadd.f32 0.0, %v419
      %v421 = vpop.f32.mrb[0].mxu0
      %v422 = vpop.f32.mrb[0].mxu0
      %v423 = vpop.f32.mrb[0].mxu0
      %424 = vdwg.mxu0
      %425 = vst [vmem:[#allocation3] sm:$0xf] %v420
      %v426 = vld [vmem:[#allocation3] sm:$0xf]
      %s427 = scalar_lea.vmem [#allocation2], 2
      %v428 = vld [vmem:[%s427] sm:$0x3]
      %s429 = scalar_lea.vmem %s183, 32
      %v430 = vld [vmem:[%s429] sm:$0xf]
      %v431 = vld [vmem:[%s429 + $0x4] sm:$0xf]
      %v432 = vld [vmem:[%s429 + $0x8] sm:$0xf]
      %v433 = vld [vmem:[%s429 + $0xc] sm:$0xf]
      %v434 = vld [vmem:[%s429 + $0x10] sm:$0xf]
      %v435 = vld [vmem:[%s429 + $0x14] sm:$0xf]
      %v436 = vld [vmem:[%s429 + $0x18] sm:$0xf]
      %v437 = vld [vmem:[%s429 + $0x1c] sm:$0xf]
      %v446 = vunpack.c.l.b16 %v430
      %v447 = vunpack.c.l.b16 %v431
      %v448 = vunpack.c.l.b16 %v432
      %v449 = vunpack.c.l.b16 %v433
      %v450 = vunpack.c.l.b16 %v434
      %v451 = vunpack.c.l.b16 %v435
      %v452 = vunpack.c.l.b16 %v436
      %v453 = vunpack.c.l.b16 %v437
      %v454 = vpack.c.b16 %v447, %v446
      %v455 = vpack.c.b16 %v449, %v448
      %v456 = vpack.c.b16 %v451, %v450
      %v457 = vpack.c.b16 %v453, %v452
      %v463 = vsel %vm381, %v428, 0
      %465 = vmatprep.subr.bf16.mxu0 0
      %466 = vmatpush1.bf16.msra.mxu0 %v454
      %467 = vmatprep.subr.bf16.mxu0 0
      %468 = vmatpush1.bf16.msra.mxu0 %v455
      %469 = vmatprep.subr.bf16.mxu0 0
      %470 = vmatpush1.bf16.msra.mxu0 %v456
      %471 = vmatprep.subr.bf16.mxu0 0
      %472 = vmatpush1.bf16.msra.mxu0 %v457
      %473 = vmatprep.subr.bf16.mxu0 0
      %474 = vmatpush1.bf16.msra.mxu0 0
      %475 = vmatprep.subr.bf16.mxu0 0
      %476 = vmatpush1.bf16.msra.mxu0 0
      %477 = vmatprep.subr.bf16.mxu0 0
      %478 = vmatpush1.bf16.msra.mxu0 0
      %479 = vmatprep.subr.bf16.mxu0 0
      %480 = vmatpush1.bf16.msra.mxu0 0
      %481 = vmatprep.subr.bf16.mxu0 0
      %482 = vmatpush1.bf16.msra.mxu0 0
      %483 = vmatprep.subr.bf16.mxu0 0
      %484 = vmatpush1.bf16.msra.mxu0 0
      %485 = vmatprep.subr.bf16.mxu0 0
      %486 = vmatpush1.bf16.msra.mxu0 0
      %487 = vmatprep.subr.bf16.mxu0 0
      %488 = vmatpush1.bf16.msra.mxu0 0
      %489 = vmatprep.subr.bf16.mxu0 0
      %490 = vmatpush1.bf16.msra.mxu0 0
      %491 = vmatprep.subr.bf16.mxu0 0
      %492 = vmatpush1.bf16.msra.mxu0 0
      %493 = vmatprep.subr.bf16.mxu0 0
      %494 = vmatpush1.bf16.msra.mxu0 0
      %495 = vmatprep.subr.bf16.mxu0 0
      %496 = vmatpush1.bf16.msra.mxu0 0
      %497 = vmatprep.mubr.bf16.mxu0 0
      %498 = vmatmul.mubr.bf16.gmra.mrb[0].mxu0 %v463
      %v499 = vpop.f32.mrb[0].mxu0
      %v500 = vadd.f32 0.0, %v499
      %v501 = vpop.f32.mrb[0].mxu0
      %v502 = vpop.f32.mrb[0].mxu0
      %v503 = vpop.f32.mrb[0].mxu0
      %504 = vdwg.mxu0
      %v505 = vadd.f32 %v426, %v500
      %506 = vst [vmem:[#allocation3] sm:$0xf] %v505
      %v507 = vld [vmem:[#allocation3] sm:$0xf]
      %s508 = scalar_lea.vmem [#allocation2], 4
      %v509 = vld [vmem:[%s508] sm:$0x3]
      %s510 = scalar_lea.vmem %s183, 64
      %v511 = vld [vmem:[%s510] sm:$0xf]
      %v512 = vld [vmem:[%s510 + $0x4] sm:$0xf]
      %v513 = vld [vmem:[%s510 + $0x8] sm:$0xf]
      %v514 = vld [vmem:[%s510 + $0xc] sm:$0xf]
      %v515 = vld [vmem:[%s510 + $0x10] sm:$0xf]
      %v516 = vld [vmem:[%s510 + $0x14] sm:$0xf]
      %v517 = vld [vmem:[%s510 + $0x18] sm:$0xf]
      %v518 = vld [vmem:[%s510 + $0x1c] sm:$0xf]
      %v527 = vunpack.c.l.b16 %v511
      %v528 = vunpack.c.l.b16 %v512
      %v529 = vunpack.c.l.b16 %v513
      %v530 = vunpack.c.l.b16 %v514
      %v531 = vunpack.c.l.b16 %v515
      %v532 = vunpack.c.l.b16 %v516
      %v533 = vunpack.c.l.b16 %v517
      %v534 = vunpack.c.l.b16 %v518
      %v535 = vpack.c.b16 %v528, %v527
      %v536 = vpack.c.b16 %v530, %v529
      %v537 = vpack.c.b16 %v532, %v531
      %v538 = vpack.c.b16 %v534, %v533
      %v544 = vsel %vm381, %v509, 0
      %546 = vmatprep.subr.bf16.mxu0 0
      %547 = vmatpush1.bf16.msra.mxu0 %v535
      %548 = vmatprep.subr.bf16.mxu0 0
      %549 = vmatpush1.bf16.msra.mxu0 %v536
      %550 = vmatprep.subr.bf16.mxu0 0
      %551 = vmatpush1.bf16.msra.mxu0 %v537
      %552 = vmatprep.subr.bf16.mxu0 0
      %553 = vmatpush1.bf16.msra.mxu0 %v538
      %554 = vmatprep.subr.bf16.mxu0 0
      %555 = vmatpush1.bf16.msra.mxu0 0
      %556 = vmatprep.subr.bf16.mxu0 0
      %557 = vmatpush1.bf16.msra.mxu0 0
      %558 = vmatprep.subr.bf16.mxu0 0
      %559 = vmatpush1.bf16.msra.mxu0 0
      %560 = vmatprep.subr.bf16.mxu0 0
      %561 = vmatpush1.bf16.msra.mxu0 0
      %562 = vmatprep.subr.bf16.mxu0 0
      %563 = vmatpush1.bf16.msra.mxu0 0
      %564 = vmatprep.subr.bf16.mxu0 0
      %565 = vmatpush1.bf16.msra.mxu0 0
      %566 = vmatprep.subr.bf16.mxu0 0
      %567 = vmatpush1.bf16.msra.mxu0 0
      %568 = vmatprep.subr.bf16.mxu0 0
      %569 = vmatpush1.bf16.msra.mxu0 0
      %570 = vmatprep.subr.bf16.mxu0 0
      %571 = vmatpush1.bf16.msra.mxu0 0
      %572 = vmatprep.subr.bf16.mxu0 0
      %573 = vmatpush1.bf16.msra.mxu0 0
      %574 = vmatprep.subr.bf16.mxu0 0
      %575 = vmatpush1.bf16.msra.mxu0 0
      %576 = vmatprep.subr.bf16.mxu0 0
      %577 = vmatpush1.bf16.msra.mxu0 0
      %578 = vmatprep.mubr.bf16.mxu0 0
      %579 = vmatmul.mubr.bf16.gmra.mrb[0].mxu0 %v544
      %v580 = vpop.f32.mrb[0].mxu0
      %v581 = vadd.f32 0.0, %v580
      %v582 = vpop.f32.mrb[0].mxu0
      %v583 = vpop.f32.mrb[0].mxu0
      %v584 = vpop.f32.mrb[0].mxu0
      %585 = vdwg.mxu0
      %v586 = vadd.f32 %v507, %v581
      %587 = vst [vmem:[#allocation3] sm:$0xf] %v586
      %v588 = vld [vmem:[#allocation3] sm:$0xf]
      %s589 = scalar_lea.vmem [#allocation2], 6
      %v590 = vld [vmem:[%s589] sm:$0x3]
      %s591 = scalar_lea.vmem %s183, 96
      %v592 = vld [vmem:[%s591] sm:$0xf]
      %v593 = vld [vmem:[%s591 + $0x4] sm:$0xf]
      %v594 = vld [vmem:[%s591 + $0x8] sm:$0xf]
      %v595 = vld [vmem:[%s591 + $0xc] sm:$0xf]
      %v596 = vld [vmem:[%s591 + $0x10] sm:$0xf]
      %v597 = vld [vmem:[%s591 + $0x14] sm:$0xf]
      %v598 = vld [vmem:[%s591 + $0x18] sm:$0xf]
      %v599 = vld [vmem:[%s591 + $0x1c] sm:$0xf]
      %v608 = vunpack.c.l.b16 %v592
      %v609 = vunpack.c.l.b16 %v593
      %v610 = vunpack.c.l.b16 %v594
      %v611 = vunpack.c.l.b16 %v595
      %v612 = vunpack.c.l.b16 %v596
      %v613 = vunpack.c.l.b16 %v597
      %v614 = vunpack.c.l.b16 %v598
      %v615 = vunpack.c.l.b16 %v599
      %v616 = vpack.c.b16 %v609, %v608
      %v617 = vpack.c.b16 %v611, %v610
      %v618 = vpack.c.b16 %v613, %v612
      %v619 = vpack.c.b16 %v615, %v614
      %v625 = vsel %vm381, %v590, 0
      %627 = vmatprep.subr.bf16.mxu0 0
      %628 = vmatpush1.bf16.msra.mxu0 %v616
      %629 = vmatprep.subr.bf16.mxu0 0
      %630 = vmatpush1.bf16.msra.mxu0 %v617
      %631 = vmatprep.subr.bf16.mxu0 0
      %632 = vmatpush1.bf16.msra.mxu0 %v618
      %633 = vmatprep.subr.bf16.mxu0 0
      %634 = vmatpush1.bf16.msra.mxu0 %v619
      %635 = vmatprep.subr.bf16.mxu0 0
      %636 = vmatpush1.bf16.msra.mxu0 0
      %637 = vmatprep.subr.bf16.mxu0 0
      %638 = vmatpush1.bf16.msra.mxu0 0
      %639 = vmatprep.subr.bf16.mxu0 0
      %640 = vmatpush1.bf16.msra.mxu0 0
      %641 = vmatprep.subr.bf16.mxu0 0
      %642 = vmatpush1.bf16.msra.mxu0 0
      %643 = vmatprep.subr.bf16.mxu0 0
      %644 = vmatpush1.bf16.msra.mxu0 0
      %645 = vmatprep.subr.bf16.mxu0 0
      %646 = vmatpush1.bf16.msra.mxu0 0
      %647 = vmatprep.subr.bf16.mxu0 0
      %648 = vmatpush1.bf16.msra.mxu0 0
      %649 = vmatprep.subr.bf16.mxu0 0
      %650 = vmatpush1.bf16.msra.mxu0 0
      %651 = vmatprep.subr.bf16.mxu0 0
      %652 = vmatpush1.bf16.msra.mxu0 0
      %653 = vmatprep.subr.bf16.mxu0 0
      %654 = vmatpush1.bf16.msra.mxu0 0
      %655 = vmatprep.subr.bf16.mxu0 0
      %656 = vmatpush1.bf16.msra.mxu0 0
      %657 = vmatprep.subr.bf16.mxu0 0
      %658 = vmatpush1.bf16.msra.mxu0 0
      %659 = vmatprep.mubr.bf16.mxu0 0
      %660 = vmatmul.mubr.bf16.gmra.mrb[0].mxu0 %v625
      %v661 = vpop.f32.mrb[0].mxu0
      %v662 = vadd.f32 0.0, %v661
      %v663 = vpop.f32.mrb[0].mxu0
      %v664 = vpop.f32.mrb[0].mxu0
      %v665 = vpop.f32.mrb[0].mxu0
      %666 = vdwg.mxu0
      %v667 = vadd.f32 %v588, %v662
      %668 = vst [vmem:[#allocation3] sm:$0xf] %v667
      %v669 = vld [vmem:[#allocation3] sm:$0xf]
      %vm670 = vcmp.ge.f32.partialorder %v669, 0.0
      %v671 = vmul.f32 %v669, 0.01
      %v672 = vsel %vm670, %v669, %v671
      %v673 = vpack.c.bf16 %v672, %v672
      %674 = vst [vmem:[%s193] sm:$0x3] %v673
      %p675 = scmp.lt.s32.totalorder %s18, 1
      %s676 = scalar_select %p675, %s18, 1
      %p677 = scmp.lt.s32.totalorder %s19, 0
      %s678 = scalar_select %p677, %s19, 0
      %p679 = scmp.lt.s32.totalorder %s20, 0
      %s680 = scalar_select %p679, %s20, 0
      %s681 = sadd.s32 %s680, %s678
      %s682 = sadd.s32 %s681, %s676
      %s683 = smul.addr %s682, 2
      %s684 = scalar_lea.vmem %s2, %s683
      // Predicated region
      $region33: #{_lambda_.6} parent=27 // pred_check
        %p685 = pneg %p106
      $region34: #{_lambda_.6} parent=27 // pred_check_branch
        %687 = sbr.rel (%p685) target = $region36
      $region35: #{_lambda_.6} parent=27 // pred_region
        _
      $region36: #{_lambda_.6} parent=27 // pred_fallthru
        _
    $region28: #{_lambda_.6} parent=5 // pred_fallthru
      _
    %p688 = scmp.le.s32.totalorder 2, %s8
    // Predicated region
    $region37: #{_lambda_.6} parent=5 // pred_check
      %p689 = pneg %p688
    $region38: #{_lambda_.6} parent=5 // pred_check_branch
      %691 = sbr.rel (%p689) target = $region40
    $region39: #{_lambda_.6} parent=5 // pred_region
      %s692 = ssub.s32 %s8, 2
      // Predicated region
      $region41: #{_lambda_.6} parent=39 // pred_check
        %p693 = pneg %p112
      $region42: #{_lambda_.6} parent=39 // pred_check_branch
        %695 = sbr.rel (%p693) target = $region44
      $region43: #{_lambda_.6} parent=39 // pred_region
        %p696 = scmp.lt.s32.totalorder %s21, 1
        %s697 = scalar_select %p696, %s21, 1
        %p698 = scmp.lt.s32.totalorder %s22, 0
        %s699 = scalar_select %p698, %s22, 0
        %p700 = scmp.lt.s32.totalorder %s23, 0
        %s701 = scalar_select %p700, %s23, 0
        %s702 = sadd.s32 %s701, %s699
        %s703 = sadd.s32 %s702, %s697
        %s704 = smul.addr %s703, 2
        %s705 = scalar_lea.vmem %s2, %s704
      $region44: #{_lambda_.6} parent=39 // pred_fallthru
        _
    $region40: #{_lambda_.6} parent=5 // pred_fallthru
      _
  $region6: #{_lambda_.6} parent=0 // loop_footer
    %s12 = sadd.s32 1, %s8
  $region7: #{_lambda_.6} parent=0 // loop_footer_branch
    %7 = sbr.rel target = $region3
  $region8: #{_lambda_.6} parent=0 // loop_exit
    _

// kernel: _lambda_.7
$region0: #{_lambda_.7}
  #allocation0 [shape = 'u32[]', space=smem, size = 0x4, offset = 0x4, fixed_abs, tag = 'smem constant byte address 0x4 - core index']
  #allocation1 [shape = 'u32[144,128]{1,0:T(1,128)}', space=vmem, size = 0x12000, scoped, tag = 'internal scratch']
  %s0 = inlined_call_operand.vmem [shape: bf16[2,4,4,32], index: 0, kind: input, shape index: {}]
  %s1 = inlined_call_operand.vmem [shape: bf16[9,32,128], index: 1, kind: input, shape index: {}]
  %s2 = inlined_call_operand.vmem [shape: bf16[4,32,128], index: 2, kind: input, shape index: {}]
  %s3 = inlined_call_operand.vmem [shape: f32[2,4,128], index: 3, kind: output, shape index: {0}]
  %s4 = inlined_call_operand.hbm [shape: f32[2,1,128], index: 4, kind: output, shape index: {1}]
  %5 = xla_tuple %s3, %s4
  %s6 = sld [smem:[#allocation0]]
  $region53: #{_lambda_.7} parent=0
    _
  %s8 = ssub.s32 1, %s6
  %s9 = scalar_select 0, %s8, %s6
  $region1: #{_lambda_.7} parent=0
    #allocation2 [shape = 'u8[1024]{0}', space=vmem, size = 0x400, scoped, tag = 'output window, operand 1']
    #allocation3 [shape = 's32[2]{0}', space=sflag, size = 0x8, scoped, tag = 'scoped memory for _lambda_.7']
    %10 = vsyncpa [#allocation3], 0
    %s11 = scalar_lea.sflag [#allocation3], 1
    %12 = vsyncpa %s11, 0
    loop: start=0, step=1, limit=4
    $region2: #{_lambda_.7} parent=1 // loop_pre_header
      _
    $region3: #{_lambda_.7} parent=1 // loop_header
      %s14 = sphi 0, %s18
      %p15 = scmp.ge.s32.totalorder %s14, 4
      %s24 = sphi 0, %s26
      %s27 = sphi 0, %s24
      %s28 = sphi 0, %s27
      %s44 = sphi 0, %s28
      %s48 = sphi 0, %s48
      %s50 = sphi 0, %s48
      %s51 = sphi 0, %s50
      %s65 = sphi 0, %s51
      %s69 = sphi 0, %s69
      %s71 = sphi 0, %s69
      %s72 = sphi 0, %s71
      %s86 = sphi 0, %s72
      %s92 = sphi 0, %s94
      %s95 = sphi 0, %s92
      %s96 = sphi 0, %s95
      %s112 = sphi 0, %s96
      %s118 = sphi 0, %s120
      %s121 = sphi 0, %s118
      %s122 = sphi 0, %s121
      %s138 = sphi 0, %s122
    $region4: #{_lambda_.7} parent=1 // loop_header_branch
      %17 = sbr.rel (%p15) target = $region8
    $region5: #{_lambda_.7} parent=1 // loop_body
      %s19 = ssub.s32 %s14, 1
      %s20 = ssub.s32 %s14, 2
      %s21 = sadd.s32 %s14, 1
      %s22 = ssub.s32 %s14, %s21
      %p23 = scmp.eq.s32.totalorder %s22, 0
      %s25 = sadd.s32 %s24, 1
      %s26 = scalar_select %p23, %s24, %s25
      %p29 = pneg %p23
      %p30 = scmp.eq.s32.totalorder %s14, 1
      %p31 = por %p29, %p30
      %p32 = scmp.ne.s32.totalorder %s24, %s27
      %p33 = scmp.eq.s32.totalorder %s14, 0
      %p34 = por %p32, %p33
      %p35 = scmp.ne.s32.totalorder %s24, %s27
      %p36 = scmp.eq.s32.totalorder %s19, 1
      %p37 = por %p35, %p36
      %p38 = scmp.ne.s32.totalorder %s27, %s28
      %p39 = scmp.eq.s32.totalorder %s19, 0
      %p40 = por %p38, %p39
      %p41 = scmp.ne.s32.totalorder %s27, %s28
      %p42 = scmp.eq.s32.totalorder %s20, 1
      %p43 = por %p41, %p42
      %p45 = scmp.ne.s32.totalorder %s28, %s44
      %p46 = scmp.eq.s32.totalorder %s20, 0
      %p47 = por %p45, %p46
      %s49 = sadd.s32 %s48, 1
      %p52 = scmp.eq.s32.totalorder %s14, 1
      %p53 = scmp.ne.s32.totalorder %s48, %s50
      %p54 = scmp.eq.s32.totalorder %s14, 0
      %p55 = por %p53, %p54
      %p56 = scmp.ne.s32.totalorder %s48, %s50
      %p57 = scmp.eq.s32.totalorder %s19, 1
      %p58 = por %p56, %p57
      %p59 = scmp.ne.s32.totalorder %s50, %s51
      %p60 = scmp.eq.s32.totalorder %s19, 0
      %p61 = por %p59, %p60
      %p62 = scmp.ne.s32.totalorder %s50, %s51
      %p63 = scmp.eq.s32.totalorder %s20, 1
      %p64 = por %p62, %p63
      %p66 = scmp.ne.s32.totalorder %s51, %s65
      %p67 = scmp.eq.s32.totalorder %s20, 0
      %p68 = por %p66, %p67
      %s70 = sadd.s32 %s69, 1
      %p73 = scmp.eq.s32.totalorder %s14, 1
      %p74 = scmp.ne.s32.totalorder %s69, %s71
      %p75 = scmp.eq.s32.totalorder %s14, 0
      %p76 = por %p74, %p75
      %p77 = scmp.ne.s32.totalorder %s69, %s71
      %p78 = scmp.eq.s32.totalorder %s19, 1
      %p79 = por %p77, %p78
      %p80 = scmp.ne.s32.totalorder %s71, %s72
      %p81 = scmp.eq.s32.totalorder %s19, 0
      %p82 = por %p80, %p81
      %p83 = scmp.ne.s32.totalorder %s71, %s72
      %p84 = scmp.eq.s32.totalorder %s20, 1
      %p85 = por %p83, %p84
      %p87 = scmp.ne.s32.totalorder %s72, %s86
      %p88 = scmp.eq.s32.totalorder %s20, 0
      %p89 = por %p87, %p88
      %s90 = ssub.s32 %s14, %s21
      %p91 = scmp.eq.s32.totalorder %s90, 0
      %s93 = sadd.s32 %s92, 1
      %s94 = scalar_select %p91, %s92, %s93
      %p97 = pneg %p91
      %p98 = scmp.eq.s32.totalorder %s14, 1
      %p99 = por %p97, %p98
      %p100 = scmp.ne.s32.totalorder %s92, %s95
      %p101 = scmp.eq.s32.totalorder %s14, 0
      %p102 = por %p100, %p101
      %p103 = scmp.ne.s32.totalorder %s92, %s95
      %p104 = scmp.eq.s32.totalorder %s19, 1
      %p105 = por %p103, %p104
      %p106 = scmp.ne.s32.totalorder %s95, %s96
      %p107 = scmp.eq.s32.totalorder %s19, 0
      %p108 = por %p106, %p107
      %p109 = scmp.ne.s32.totalorder %s95, %s96
      %p110 = scmp.eq.s32.totalorder %s20, 1
      %p111 = por %p109, %p110
      %p113 = scmp.ne.s32.totalorder %s96, %s112
      %p114 = scmp.eq.s32.totalorder %s20, 0
      %p115 = por %p113, %p114
      %s116 = ssub.s32 %s14, %s21
      %p117 = scmp.eq.s32.totalorder %s116, 0
      %s119 = sadd.s32 %s118, 1
      %s120 = scalar_select %p117, %s118, %s119
      %p123 = pneg %p117
      %p124 = scmp.eq.s32.totalorder %s14, 1
      %p125 = por %p123, %p124
      %p126 = scmp.ne.s32.totalorder %s118, %s121
      %p127 = scmp.eq.s32.totalorder %s14, 0
      %p128 = por %p126, %p127
      %p129 = scmp.ne.s32.totalorder %s118, %s121
      %p130 = scmp.eq.s32.totalorder %s19, 1
      %p131 = por %p129, %p130
      %p132 = scmp.ne.s32.totalorder %s121, %s122
      %p133 = scmp.eq.s32.totalorder %s19, 0
      %p134 = por %p132, %p133
      %p135 = scmp.ne.s32.totalorder %s121, %s122
      %p136 = scmp.eq.s32.totalorder %s20, 1
      %p137 = por %p135, %p136
      %p139 = scmp.ne.s32.totalorder %s122, %s138
      %p140 = scmp.eq.s32.totalorder %s20, 0
      %p141 = por %p139, %p140
      %p142 = scmp.le.s32.totalorder 1, %s14
      %p143 = scmp.lt.s32.totalorder %s14, 3
      %p144 = pnand %p142, %p143
      %p145 = pneg %p144
      // Predicated region
      $region9: #{_lambda_.7} parent=5 // pred_check
        _
      $region10: #{_lambda_.7} parent=5 // pred_check_branch
        %147 = sbr.rel (%p144) target = $region12
      $region11: #{_lambda_.7} parent=5 // pred_region
        %s148 = ssub.s32 %s14, 1
        // Predicated region
        $region13: #{_lambda_.7} parent=11 // pred_check
          %p149 = pneg %p61
        $region14: #{_lambda_.7} parent=11 // pred_check_branch
          %151 = sbr.rel (%p149) target = $region16
        $region15: #{_lambda_.7} parent=11 // pred_region
          _
        $region16: #{_lambda_.7} parent=11 // pred_fallthru
          _
        // Predicated region
        $region17: #{_lambda_.7} parent=11 // pred_check
          %p152 = pneg %p82
        $region18: #{_lambda_.7} parent=11 // pred_check_branch
          %154 = sbr.rel (%p152) target = $region20
        $region19: #{_lambda_.7} parent=11 // pred_region
          _
        $region20: #{_lambda_.7} parent=11 // pred_fallthru
          _
      $region12: #{_lambda_.7} parent=5 // pred_fallthru
        _
      %p155 = scmp.lt.s32.totalorder %s14, 2
      // Predicated region
      $region21: #{_lambda_.7} parent=5 // pred_check
        %p156 = pneg %p155
      $region22: #{_lambda_.7} parent=5 // pred_check_branch
        %158 = sbr.rel (%p156) target = $region24
      $region23: #{_lambda_.7} parent=5 // pred_region
        // Predicated region
        $region25: #{_lambda_.7} parent=23 // pred_check
          %p159 = pneg %p34
        $region26: #{_lambda_.7} parent=23 // pred_check_branch
          %161 = sbr.rel (%p159) target = $region28
        $region27: #{_lambda_.7} parent=23 // pred_region
          %p162 = scmp.lt.s32.totalorder %s14, 1
          %s163 = scalar_select %p162, %s14, 1
          %s164 = smul.addr %s163, 4
          %s165 = smul.addr %s164, 2
          %s166 = scalar_lea.vmem %s0, %s165
        $region28: #{_lambda_.7} parent=23 // pred_fallthru
          _
      $region24: #{_lambda_.7} parent=5 // pred_fallthru
        _
      %p167 = scmp.le.s32.totalorder 1, %s14
      %p168 = scmp.lt.s32.totalorder %s14, 3
      %p169 = pnand %p167, %p168
      %p170 = pneg %p169
      // Predicated region
      $region29: #{_lambda_.7} parent=5 // pred_check
        _
      $region30: #{_lambda_.7} parent=5 // pred_check_branch
        %172 = sbr.rel (%p169) target = $region32
      $region31: #{_lambda_.7} parent=5 // pred_region
        %s173 = ssub.s32 %s14, 1
        %p174 = scmp.lt.s32.totalorder %s19, 1
        %s175 = scalar_select %p174, %s19, 1
        %s176 = smul.addr %s175, 4
        %s177 = smul.addr %s176, 2
        %s178 = scalar_lea.vmem %s0, %s177
        %p179 = pneg %p40
        %p180 = pneg %p37
        %p181 = pneg %p61
        %p182 = pneg %p58
        %p183 = pneg %p82
        %p184 = pneg %p79
        %p185 = pneg %p108
        %p186 = pneg %p105
        %p187 = scmp.lt.s32.totalorder %s19, 1
        %s188 = scalar_select %p187, %s19, 1
        %s189 = smul.addr %s188, 4
        %s190 = scalar_lea.vmem %s3, %s189
        %p191 = pneg %p134
        %p192 = pneg %p131
        %s193 = sand.u32 %s121, 1
        %s194 = scalar_lea.sflag [#allocation3], %s193
        %s195 = sand.u32 %s121, 1
        %s196 = scalar_lea.vmem [#allocation2], %s195
        %p197 = scmp.lt.s32.totalorder %s19, 1
        %s198 = scalar_select %p197, %s19, 1
        %s199 = smul.addr %s198, 4
        %s200 = smul.addr %s199, 2
        %s201 = scalar_lea.vmem %s0, %s200
        %p202 = scmp.lt.s32.totalorder %s19, 1
        %s203 = scalar_select %p202, %s19, 1
        %s204 = smul.addr %s203, 4
        %s205 = scalar_lea.vmem %s3, %s204
        %v207 = vld [vmem:[%s201] sm:$0x1]
        %v208 = vld [vmem:[%s201 + $0x2] sm:$0x1]
        %v209 = vld [vmem:[%s1] sm:$0xf]
        %v210 = vld [vmem:[%s1 + $0x4] sm:$0xf]
        %v211 = vld [vmem:[%s1 + $0x8] sm:$0xf]
        %v212 = vld [vmem:[%s1 + $0xc] sm:$0xf]
        %v213 = vld [vmem:[%s201] sm:$0x3]
        %v214 = vld [vmem:[%s201 + $0x2] sm:$0x3]
        %v218 = vunpack.c.l.s4 1966171168
        %v219 = vunpack.c.0.s8 %v218
        %v220 = vlaneseq
        %v221 = vshrl.u32 %v220, 7
        %v222 = vsub.s32 %v219, %v221
        %v223 = vrot.slane %v213, %v222
        %v224 = vcombine.high %v223, %v223
        %v226 = vunpack.c.l.s4 1966171168
        %v227 = vunpack.c.0.s8 %v226
        %v228 = vlaneseq
        %v229 = vshrl.u32 %v228, 7
        %v230 = vsub.s32 %v227, %v229
        %v231 = vrot.slane %v214, %v230
        %v232 = vcombine.high %v231, %v231
        %vm233 = vsmask.f32 256
        %vm234 = vsmask.f32 1284
        %vm235 = vmor %vm233, %vm234
        %vm236 = vsmask.f32 2312
        %vm237 = vmor %vm235, %vm236
        %vm238 = vsmask.f32 3340
        %vm239 = vmor %vm237, %vm238
        %vm240 = vsmask.f32 4368
        %vm241 = vmor %vm239, %vm240
        %vm242 = vsmask.f32 5396
        %vm243 = vmor %vm241, %vm242
        %vm244 = vsmask.f32 6424
        %vm245 = vmor %vm243, %vm244
        %vm246 = vsmask.f32 7452
        %vm247 = vmor %vm245, %vm246
        %v249 = vshrl.u32 %v223, 16
        %v251 = vrot.slane %v249, 7
        %v252 = vrot.slane %v251, 1
        %v254 = vshll.u32 %v224, 16
        %v256 = vsel %vm247, %v252, %v254
        %v258 = vshrl.u32 %v231, 16
        %v260 = vrot.slane %v258, 7
        %v261 = vrot.slane %v260, 1
        %v263 = vshll.u32 %v232, 16
        %v265 = vsel %vm247, %v261, %v263
        %s266 = scalar_lea.vmem %s1, 16
        %v267 = vld [vmem:[%s266] sm:$0xf]
        %v268 = vld [vmem:[%s266 + $0x4] sm:$0xf]
        %v269 = vld [vmem:[%s266 + $0x8] sm:$0xf]
        %v270 = vld [vmem:[%s266 + $0xc] sm:$0xf]
        %v271 = vcombine.low %v256, %v265
        %v273 = vunpack.c.l.s4 1966171168
        %v274 = vunpack.c.0.s8 %v273
        %v275 = vlaneseq
        %v276 = vshrl.u32 %v275, 7
        %v277 = vsub.s32 %v274, %v276
        %v278 = vrot.slane %v271, %v277
        %v280 = vunpack.c.l.s4 1966171168
        %v281 = vunpack.c.0.s8 %v280
        %v282 = vlaneseq
        %v283 = vshrl.u32 %v282, 7
        %v284 = vsub.s32 %v281, %v283
        %v285 = vrot.slane %v278, %v284
        %v290 = vunpack.c.l.b16 %v267
        %v291 = vunpack.c.l.b16 %v268
        %v292 = vunpack.c.l.b16 %v269
        %v293 = vunpack.c.l.b16 %v270
        %v294 = vpack.c.b16 %v291, %v290
        %v295 = vpack.c.b16 %v293, %v292
        %vm298 = vcmask 261120
        %v300 = vsel %vm298, %v285, 0
        %302 = vmatprep.subr.bf16.mxu0 0
        %303 = vmatpush1.bf16.msra.mxu0 %v294
        %304 = vmatprep.subr.bf16.mxu0 0
        %305 = vmatpush1.bf16.msra.mxu0 %v295
        %306 = vmatprep.subr.bf16.mxu0 0
        %307 = vmatpush1.bf16.msra.mxu0 0
        %308 = vmatprep.subr.bf16.mxu0 0
        %309 = vmatpush1.bf16.msra.mxu0 0
        %310 = vmatprep.subr.bf16.mxu0 0
        %311 = vmatpush1.bf16.msra.mxu0 0
        %312 = vmatprep.subr.bf16.mxu0 0
        %313 = vmatpush1.bf16.msra.mxu0 0
        %314 = vmatprep.subr.bf16.mxu0 0
        %315 = vmatpush1.bf16.msra.mxu0 0
        %316 = vmatprep.subr.bf16.mxu0 0
        %317 = vmatpush1.bf16.msra.mxu0 0
        %318 = vmatprep.subr.bf16.mxu0 0
        %319 = vmatpush1.bf16.msra.mxu0 0
        %320 = vmatprep.subr.bf16.mxu0 0
        %321 = vmatpush1.bf16.msra.mxu0 0
        %322 = vmatprep.subr.bf16.mxu0 0
        %323 = vmatpush1.bf16.msra.mxu0 0
        %324 = vmatprep.subr.bf16.mxu0 0
        %325 = vmatpush1.bf16.msra.mxu0 0
        %326 = vmatprep.subr.bf16.mxu0 0
        %327 = vmatpush1.bf16.msra.mxu0 0
        %328 = vmatprep.subr.bf16.mxu0 0
        %329 = vmatpush1.bf16.msra.mxu0 0
        %330 = vmatprep.subr.bf16.mxu0 0
        %331 = vmatpush1.bf16.msra.mxu0 0
        %332 = vmatprep.subr.bf16.mxu0 0
        %333 = vmatpush1.bf16.msra.mxu0 0
        %334 = vmatprep.mubr.bf16.mxu0 0
        %335 = vmatmul.mubr.bf16.gmra.mrb[0].mxu0 %v300
        %v336 = vpop.f32.mrb[0].mxu0
        %v337 = vadd.f32 0.0, %v336
        %v338 = vpop.f32.mrb[0].mxu0
        %v339 = vpop.f32.mrb[0].mxu0
        %v340 = vpop.f32.mrb[0].mxu0
        %341 = vdwg.mxu0
        %v344 = vcombine.low %v207, %v208
        %v346 = vunpack.c.l.s4 1966171168
        %v347 = vunpack.c.0.s8 %v346
        %v348 = vlaneseq
        %v349 = vshrl.u32 %v348, 7
        %v350 = vsub.s32 %v347, %v349
        %v351 = vrot.slane %v344, %v350
        %v353 = vunpack.c.l.s4 1966171168
        %v354 = vunpack.c.0.s8 %v353
        %v355 = vlaneseq
        %v356 = vshrl.u32 %v355, 7
        %v357 = vsub.s32 %v354, %v356
        %v358 = vrot.slane %v351, %v357
        %v363 = vunpack.c.l.b16 %v209
        %v364 = vunpack.c.l.b16 %v210
        %v365 = vunpack.c.l.b16 %v211
        %v366 = vunpack.c.l.b16 %v212
        %v367 = vpack.c.b16 %v364, %v363
        %v368 = vpack.c.b16 %v366, %v365
        %v372 = vsel %vm298, %v358, 0
        %374 = vmatprep.subr.bf16.mxu0 0
        %375 = vmatpush1.bf16.msra.mxu0 %v367
        %376 = vmatprep.subr.bf16.mxu0 0
        %377 = vmatpush1.bf16.msra.mxu0 %v368
        %378 = vmatprep.subr.bf16.mxu0 0
        %379 = vmatpush1.bf16.msra.mxu0 0
        %380 = vmatprep.subr.bf16.mxu0 0
        %381 = vmatpush1.bf16.msra.mxu0 0
        %382 = vmatprep.subr.bf16.mxu0 0
        %383 = vmatpush1.bf16.msra.mxu0 0
        %384 = vmatprep.subr.bf16.mxu0 0
        %385 = vmatpush1.bf16.msra.mxu0 0
        %386 = vmatprep.subr.bf16.mxu0 0
        %387 = vmatpush1.bf16.msra.mxu0 0
        %388 = vmatprep.subr.bf16.mxu0 0
        %389 = vmatpush1.bf16.msra.mxu0 0
        %390 = vmatprep.subr.bf16.mxu0 0
        %391 = vmatpush1.bf16.msra.mxu0 0
        %392 = vmatprep.subr.bf16.mxu0 0
        %393 = vmatpush1.bf16.msra.mxu0 0
        %394 = vmatprep.subr.bf16.mxu0 0
        %395 = vmatpush1.bf16.msra.mxu0 0
        %396 = vmatprep.subr.bf16.mxu0 0
        %397 = vmatpush1.bf16.msra.mxu0 0
        %398 = vmatprep.subr.bf16.mxu0 0
        %399 = vmatpush1.bf16.msra.mxu0 0
        %400 = vmatprep.subr.bf16.mxu0 0
        %401 = vmatpush1.bf16.msra.mxu0 0
        %402 = vmatprep.subr.bf16.mxu0 0
        %403 = vmatpush1.bf16.msra.mxu0 0
        %404 = vmatprep.subr.bf16.mxu0 0
        %405 = vmatpush1.bf16.msra.mxu0 0
        %406 = vmatprep.mubr.bf16.mxu0 0
        %407 = vmatmul.mubr.bf16.gmra.mrb[0].mxu0 %v372
        %v408 = vpop.f32.mrb[0].mxu0
        %v409 = vadd.f32 %v337, %v408
        %v410 = vpop.f32.mrb[0].mxu0
        %v411 = vpop.f32.mrb[0].mxu0
        %v412 = vpop.f32.mrb[0].mxu0
        %413 = vdwg.mxu0
        %v414 = vld [vmem:[%s201] sm:$0x2]
        %v415 = vld [vmem:[%s201 + $0x2] sm:$0x2]
        %v419 = vunpack.c.l.s4 1966171168
        %v420 = vunpack.c.0.s8 %v419
        %v421 = vlaneseq
        %v422 = vshrl.u32 %v421, 7
        %v423 = vsub.s32 %v420, %v422
        %v424 = vrot.slane %v414, %v423
        %v425 = vcombine.high %v424, %v424
        %v427 = vunpack.c.l.s4 1966171168
        %v428 = vunpack.c.0.s8 %v427
        %v429 = vlaneseq
        %v430 = vshrl.u32 %v429, 7
        %v431 = vsub.s32 %v428, %v430
        %v432 = vrot.slane %v415, %v431
        %v433 = vcombine.high %v432, %v432
        %s434 = scalar_lea.vmem %s1, 32
        %v435 = vld [vmem:[%s434] sm:$0xf]
        %v436 = vld [vmem:[%s434 + $0x4] sm:$0xf]
        %v437 = vld [vmem:[%s434 + $0x8] sm:$0xf]
        %v438 = vld [vmem:[%s434 + $0xc] sm:$0xf]
        %v439 = vcombine.low %v425, %v433
        %v441 = vunpack.c.l.s4 1966171168
        %v442 = vunpack.c.0.s8 %v441
        %v443 = vlaneseq
        %v444 = vshrl.u32 %v443, 7
        %v445 = vsub.s32 %v442, %v444
        %v446 = vrot.slane %v439, %v445
        %v448 = vunpack.c.l.s4 1966171168
        %v449 = vunpack.c.0.s8 %v448
        %v450 = vlaneseq
        %v451 = vshrl.u32 %v450, 7
        %v452 = vsub.s32 %v449, %v451
        %v453 = vrot.slane %v446, %v452
        %v458 = vunpack.c.l.b16 %v435
        %v459 = vunpack.c.l.b16 %v436
        %v460 = vunpack.c.l.b16 %v437
        %v461 = vunpack.c.l.b16 %v438
        %v462 = vpack.c.b16 %v459, %v458
        %v463 = vpack.c.b16 %v461, %v460
        %v467 = vsel %vm298, %v453, 0
        %469 = vmatprep.subr.bf16.mxu0 0
        %470 = vmatpush1.bf16.msra.mxu0 %v462
        %471 = vmatprep.subr.bf16.mxu0 0
        %472 = vmatpush1.bf16.msra.mxu0 %v463
        %473 = vmatprep.subr.bf16.mxu0 0
        %474 = vmatpush1.bf16.msra.mxu0 0
        %475 = vmatprep.subr.bf16.mxu0 0
        %476 = vmatpush1.bf16.msra.mxu0 0
        %477 = vmatprep.subr.bf16.mxu0 0
        %478 = vmatpush1.bf16.msra.mxu0 0
        %479 = vmatprep.subr.bf16.mxu0 0
        %480 = vmatpush1.bf16.msra.mxu0 0
        %481 = vmatprep.subr.bf16.mxu0 0
        %482 = vmatpush1.bf16.msra.mxu0 0
        %483 = vmatprep.subr.bf16.mxu0 0
        %484 = vmatpush1.bf16.msra.mxu0 0
        %485 = vmatprep.subr.bf16.mxu0 0
        %486 = vmatpush1.bf16.msra.mxu0 0
        %487 = vmatprep.subr.bf16.mxu0 0
        %488 = vmatpush1.bf16.msra.mxu0 0
        %489 = vmatprep.subr.bf16.mxu0 0
        %490 = vmatpush1.bf16.msra.mxu0 0
        %491 = vmatprep.subr.bf16.mxu0 0
        %492 = vmatpush1.bf16.msra.mxu0 0
        %493 = vmatprep.subr.bf16.mxu0 0
        %494 = vmatpush1.bf16.msra.mxu0 0
        %495 = vmatprep.subr.bf16.mxu0 0
        %496 = vmatpush1.bf16.msra.mxu0 0
        %497 = vmatprep.subr.bf16.mxu0 0
        %498 = vmatpush1.bf16.msra.mxu0 0
        %499 = vmatprep.subr.bf16.mxu0 0
        %500 = vmatpush1.bf16.msra.mxu0 0
        %501 = vmatprep.mubr.bf16.mxu0 0
        %502 = vmatmul.mubr.bf16.gmra.mrb[0].mxu0 %v467
        %v503 = vpop.f32.mrb[0].mxu0
        %v504 = vadd.f32 0.0, %v503
        %v505 = vpop.f32.mrb[0].mxu0
        %v506 = vpop.f32.mrb[0].mxu0
        %v507 = vpop.f32.mrb[0].mxu0
        %508 = vdwg.mxu0
        %v509 = vadd.f32 %v409, %v504
        %s510 = scalar_lea.vmem %s201, 2
        %v511 = vld [vmem:[%s510] sm:$0x1]
        %v512 = vld [vmem:[%s510 + $0x2] sm:$0x1]
        %s513 = scalar_lea.vmem %s1, 48
        %v514 = vld [vmem:[%s513] sm:$0xf]
        %v515 = vld [vmem:[%s513 + $0x4] sm:$0xf]
        %v516 = vld [vmem:[%s513 + $0x8] sm:$0xf]
        %v517 = vld [vmem:[%s513 + $0xc] sm:$0xf]
        %v520 = vcombine.low %v511, %v512
        %v522 = vunpack.c.l.s4 1966171168
        %v523 = vunpack.c.0.s8 %v522
        %v524 = vlaneseq
        %v525 = vshrl.u32 %v524, 7
        %v526 = vsub.s32 %v523, %v525
        %v527 = vrot.slane %v520, %v526
        %v529 = vunpack.c.l.s4 1966171168
        %v530 = vunpack.c.0.s8 %v529
        %v531 = vlaneseq
        %v532 = vshrl.u32 %v531, 7
        %v533 = vsub.s32 %v530, %v532
        %v534 = vrot.slane %v527, %v533
        %v539 = vunpack.c.l.b16 %v514
        %v540 = vunpack.c.l.b16 %v515
        %v541 = vunpack.c.l.b16 %v516
        %v542 = vunpack.c.l.b16 %v517
        %v543 = vpack.c.b16 %v540, %v539
        %v544 = vpack.c.b16 %v542, %v541
        %v548 = vsel %vm298, %v534, 0
        %550 = vmatprep.subr.bf16.mxu0 0
        %551 = vmatpush1.bf16.msra.mxu0 %v543
        %552 = vmatprep.subr.bf16.mxu0 0
        %553 = vmatpush1.bf16.msra.mxu0 %v544
        %554 = vmatprep.subr.bf16.mxu0 0
        %555 = vmatpush1.bf16.msra.mxu0 0
        %556 = vmatprep.subr.bf16.mxu0 0
        %557 = vmatpush1.bf16.msra.mxu0 0
        %558 = vmatprep.subr.bf16.mxu0 0
        %559 = vmatpush1.bf16.msra.mxu0 0
        %560 = vmatprep.subr.bf16.mxu0 0
        %561 = vmatpush1.bf16.msra.mxu0 0
        %562 = vmatprep.subr.bf16.mxu0 0
        %563 = vmatpush1.bf16.msra.mxu0 0
        %564 = vmatprep.subr.bf16.mxu0 0
        %565 = vmatpush1.bf16.msra.mxu0 0
        %566 = vmatprep.subr.bf16.mxu0 0
        %567 = vmatpush1.bf16.msra.mxu0 0
        %568 = vmatprep.subr.bf16.mxu0 0
        %569 = vmatpush1.bf16.msra.mxu0 0
        %570 = vmatprep.subr.bf16.mxu0 0
        %571 = vmatpush1.bf16.msra.mxu0 0
        %572 = vmatprep.subr.bf16.mxu0 0
        %573 = vmatpush1.bf16.msra.mxu0 0
        %574 = vmatprep.subr.bf16.mxu0 0
        %575 = vmatpush1.bf16.msra.mxu0 0
        %576 = vmatprep.subr.bf16.mxu0 0
        %577 = vmatpush1.bf16.msra.mxu0 0
        %578 = vmatprep.subr.bf16.mxu0 0
        %579 = vmatpush1.bf16.msra.mxu0 0
        %580 = vmatprep.subr.bf16.mxu0 0
        %581 = vmatpush1.bf16.msra.mxu0 0
        %582 = vmatprep.mubr.bf16.mxu0 0
        %583 = vmatmul.mubr.bf16.gmra.mrb[0].mxu0 %v548
        %v584 = vpop.f32.mrb[0].mxu0
        %v585 = vadd.f32 0.0, %v584
        %v586 = vpop.f32.mrb[0].mxu0
        %v587 = vpop.f32.mrb[0].mxu0
        %v588 = vpop.f32.mrb[0].mxu0
        %589 = vdwg.mxu0
        %v590 = vadd.f32 %v509, %v585
        %v591 = vld [vmem:[%s510] sm:$0x3]
        %v592 = vld [vmem:[%s510 + $0x2] sm:$0x3]
        %v596 = vunpack.c.l.s4 1966171168
        %v597 = vunpack.c.0.s8 %v596
        %v598 = vlaneseq
        %v599 = vshrl.u32 %v598, 7
        %v600 = vsub.s32 %v597, %v599
        %v601 = vrot.slane %v591, %v600
        %v602 = vcombine.high %v601, %v601
        %v604 = vunpack.c.l.s4 1966171168
        %v605 = vunpack.c.0.s8 %v604
        %v606 = vlaneseq
        %v607 = vshrl.u32 %v606, 7
        %v608 = vsub.s32 %v605, %v607
        %v609 = vrot.slane %v592, %v608
        %v610 = vcombine.high %v609, %v609
        %v612 = vshrl.u32 %v601, 16
        %v614 = vrot.slane %v612, 7
        %v615 = vrot.slane %v614, 1
        %v617 = vshll.u32 %v602, 16
        %v619 = vsel %vm247, %v615, %v617
        %v621 = vshrl.u32 %v609, 16
        %v623 = vrot.slane %v621, 7
        %v624 = vrot.slane %v623, 1
        %v626 = vshll.u32 %v610, 16
        %v628 = vsel %vm247, %v624, %v626
        %s629 = scalar_lea.vmem %s1, 64
        %v630 = vld [vmem:[%s629] sm:$0xf]
        %v631 = vld [vmem:[%s629 + $0x4] sm:$0xf]
        %v632 = vld [vmem:[%s629 + $0x8] sm:$0xf]
        %v633 = vld [vmem:[%s629 + $0xc] sm:$0xf]
        %v634 = vcombine.low %v619, %v628
        %v636 = vunpack.c.l.s4 1966171168
        %v637 = vunpack.c.0.s8 %v636
        %v638 = vlaneseq
        %v639 = vshrl.u32 %v638, 7
        %v640 = vsub.s32 %v637, %v639
        %v641 = vrot.slane %v634, %v640
        %v643 = vunpack.c.l.s4 1966171168
        %v644 = vunpack.c.0.s8 %v643
        %v645 = vlaneseq
        %v646 = vshrl.u32 %v645, 7
        %v647 = vsub.s32 %v644, %v646
        %v648 = vrot.slane %v641, %v647
        %v653 = vunpack.c.l.b16 %v630
        %v654 = vunpack.c.l.b16 %v631
        %v655 = vunpack.c.l.b16 %v632
        %v656 = vunpack.c.l.b16 %v633
        %v657 = vpack.c.b16 %v654, %v653
        %v658 = vpack.c.b16 %v656, %v655
        %v662 = vsel %vm298, %v648, 0
        %664 = vmatprep.subr.bf16.mxu0 0
        %665 = vmatpush1.bf16.msra.mxu0 %v657
        %666 = vmatprep.subr.bf16.mxu0 0
        %667 = vmatpush1.bf16.msra.mxu0 %v658
        %668 = vmatprep.subr.bf16.mxu0 0
        %669 = vmatpush1.bf16.msra.mxu0 0
        %670 = vmatprep.subr.bf16.mxu0 0
        %671 = vmatpush1.bf16.msra.mxu0 0
        %672 = vmatprep.subr.bf16.mxu0 0
        %673 = vmatpush1.bf16.msra.mxu0 0
        %674 = vmatprep.subr.bf16.mxu0 0
        %675 = vmatpush1.bf16.msra.mxu0 0
        %676 = vmatprep.subr.bf16.mxu0 0
        %677 = vmatpush1.bf16.msra.mxu0 0
        %678 = vmatprep.subr.bf16.mxu0 0
        %679 = vmatpush1.bf16.msra.mxu0 0
        %680 = vmatprep.subr.bf16.mxu0 0
        %681 = vmatpush1.bf16.msra.mxu0 0
        %682 = vmatprep.subr.bf16.mxu0 0
        %683 = vmatpush1.bf16.msra.mxu0 0
        %684 = vmatprep.subr.bf16.mxu0 0
        %685 = vmatpush1.bf16.msra.mxu0 0
        %686 = vmatprep.subr.bf16.mxu0 0
        %687 = vmatpush1.bf16.msra.mxu0 0
        %688 = vmatprep.subr.bf16.mxu0 0
        %689 = vmatpush1.bf16.msra.mxu0 0
        %690 = vmatprep.subr.bf16.mxu0 0
        %691 = vmatpush1.bf16.msra.mxu0 0
        %692 = vmatprep.subr.bf16.mxu0 0
        %693 = vmatpush1.bf16.msra.mxu0 0
        %694 = vmatprep.subr.bf16.mxu0 0
        %695 = vmatpush1.bf16.msra.mxu0 0
        %696 = vmatprep.mubr.bf16.mxu0 0
        %697 = vmatmul.mubr.bf16.gmra.mrb[0].mxu0 %v662
        %v698 = vpop.f32.mrb[0].mxu0
        %v699 = vadd.f32 0.0, %v698
        %v700 = vpop.f32.mrb[0].mxu0
        %v701 = vpop.f32.mrb[0].mxu0
        %v702 = vpop.f32.mrb[0].mxu0
        %703 = vdwg.mxu0
        %v704 = vadd.f32 %v590, %v699
        %v705 = vld [vmem:[%s510] sm:$0x2]
        %v706 = vld [vmem:[%s510 + $0x2] sm:$0x2]
        %v710 = vunpack.c.l.s4 1966171168
        %v711 = vunpack.c.0.s8 %v710
        %v712 = vlaneseq
        %v713 = vshrl.u32 %v712, 7
        %v714 = vsub.s32 %v711, %v713
        %v715 = vrot.slane %v705, %v714
        %v716 = vcombine.high %v715, %v715
        %v718 = vunpack.c.l.s4 1966171168
        %v719 = vunpack.c.0.s8 %v718
        %v720 = vlaneseq
        %v721 = vshrl.u32 %v720, 7
        %v722 = vsub.s32 %v719, %v721
        %v723 = vrot.slane %v706, %v722
        %v724 = vcombine.high %v723, %v723
        %s725 = scalar_lea.vmem %s1, 80
        %v726 = vld [vmem:[%s725] sm:$0xf]
        %v727 = vld [vmem:[%s725 + $0x4] sm:$0xf]
        %v728 = vld [vmem:[%s725 + $0x8] sm:$0xf]
        %v729 = vld [vmem:[%s725 + $0xc] sm:$0xf]
        %v730 = vcombine.low %v716, %v724
        %v732 = vunpack.c.l.s4 1966171168
        %v733 = vunpack.c.0.s8 %v732
        %v734 = vlaneseq
        %v735 = vshrl.u32 %v734, 7
        %v736 = vsub.s32 %v733, %v735
        %v737 = vrot.slane %v730, %v736
        %v739 = vunpack.c.l.s4 1966171168
        %v740 = vunpack.c.0.s8 %v739
        %v741 = vlaneseq
        %v742 = vshrl.u32 %v741, 7
        %v743 = vsub.s32 %v740, %v742
        %v744 = vrot.slane %v737, %v743
        %v749 = vunpack.c.l.b16 %v726
        %v750 = vunpack.c.l.b16 %v727
        %v751 = vunpack.c.l.b16 %v728
        %v752 = vunpack.c.l.b16 %v729
        %v753 = vpack.c.b16 %v750, %v749
        %v754 = vpack.c.b16 %v752, %v751
        %v758 = vsel %vm298, %v744, 0
        %760 = vmatprep.subr.bf16.mxu0 0
        %761 = vmatpush1.bf16.msra.mxu0 %v753
        %762 = vmatprep.subr.bf16.mxu0 0
        %763 = vmatpush1.bf16.msra.mxu0 %v754
        %764 = vmatprep.subr.bf16.mxu0 0
        %765 = vmatpush1.bf16.msra.mxu0 0
        %766 = vmatprep.subr.bf16.mxu0 0
        %767 = vmatpush1.bf16.msra.mxu0 0
        %768 = vmatprep.subr.bf16.mxu0 0
        %769 = vmatpush1.bf16.msra.mxu0 0
        %770 = vmatprep.subr.bf16.mxu0 0
        %771 = vmatpush1.bf16.msra.mxu0 0
        %772 = vmatprep.subr.bf16.mxu0 0
        %773 = vmatpush1.bf16.msra.mxu0 0
        %774 = vmatprep.subr.bf16.mxu0 0
        %775 = vmatpush1.bf16.msra.mxu0 0
        %776 = vmatprep.subr.bf16.mxu0 0
        %777 = vmatpush1.bf16.msra.mxu0 0
        %778 = vmatprep.subr.bf16.mxu0 0
        %779 = vmatpush1.bf16.msra.mxu0 0
        %780 = vmatprep.subr.bf16.mxu0 0
        %781 = vmatpush1.bf16.msra.mxu0 0
        %782 = vmatprep.subr.bf16.mxu0 0
        %783 = vmatpush1.bf16.msra.mxu0 0
        %784 = vmatprep.subr.bf16.mxu0 0
        %785 = vmatpush1.bf16.msra.mxu0 0
        %786 = vmatprep.subr.bf16.mxu0 0
        %787 = vmatpush1.bf16.msra.mxu0 0
        %788 = vmatprep.subr.bf16.mxu0 0
        %789 = vmatpush1.bf16.msra.mxu0 0
        %790 = vmatprep.subr.bf16.mxu0 0
        %791 = vmatpush1.bf16.msra.mxu0 0
        %792 = vmatprep.mubr.bf16.mxu0 0
        %793 = vmatmul.mubr.bf16.gmra.mrb[0].mxu0 %v758
        %v794 = vpop.f32.mrb[0].mxu0
        %v795 = vadd.f32 0.0, %v794
        %v796 = vpop.f32.mrb[0].mxu0
        %v797 = vpop.f32.mrb[0].mxu0
        %v798 = vpop.f32.mrb[0].mxu0
        %799 = vdwg.mxu0
        %v800 = vadd.f32 %v704, %v795
        %s801 = scalar_lea.vmem %s201, 4
        %v802 = vld [vmem:[%s801] sm:$0x1]
        %v803 = vld [vmem:[%s801 + $0x2] sm:$0x1]
        %s804 = scalar_lea.vmem %s1, 96
        %v805 = vld [vmem:[%s804] sm:$0xf]
        %v806 = vld [vmem:[%s804 + $0x4] sm:$0xf]
        %v807 = vld [vmem:[%s804 + $0x8] sm:$0xf]
        %v808 = vld [vmem:[%s804 + $0xc] sm:$0xf]
        %v811 = vcombine.low %v802, %v803
        %v813 = vunpack.c.l.s4 1966171168
        %v814 = vunpack.c.0.s8 %v813
        %v815 = vlaneseq
        %v816 = vshrl.u32 %v815, 7
        %v817 = vsub.s32 %v814, %v816
        %v818 = vrot.slane %v811, %v817
        %v820 = vunpack.c.l.s4 1966171168
        %v821 = vunpack.c.0.s8 %v820
        %v822 = vlaneseq
        %v823 = vshrl.u32 %v822, 7
        %v824 = vsub.s32 %v821, %v823
        %v825 = vrot.slane %v818, %v824
        %v830 = vunpack.c.l.b16 %v805
        %v831 = vunpack.c.l.b16 %v806
        %v832 = vunpack.c.l.b16 %v807
        %v833 = vunpack.c.l.b16 %v808
        %v834 = vpack.c.b16 %v831, %v830
        %v835 = vpack.c.b16 %v833, %v832
        %v839 = vsel %vm298, %v825, 0
        %841 = vmatprep.subr.bf16.mxu0 0
        %842 = vmatpush1.bf16.msra.mxu0 %v834
        %843 = vmatprep.subr.bf16.mxu0 0
        %844 = vmatpush1.bf16.msra.mxu0 %v835
        %845 = vmatprep.subr.bf16.mxu0 0
        %846 = vmatpush1.bf16.msra.mxu0 0
        %847 = vmatprep.subr.bf16.mxu0 0
        %848 = vmatpush1.bf16.msra.mxu0 0
        %849 = vmatprep.subr.bf16.mxu0 0
        %850 = vmatpush1.bf16.msra.mxu0 0
        %851 = vmatprep.subr.bf16.mxu0 0
        %852 = vmatpush1.bf16.msra.mxu0 0
        %853 = vmatprep.subr.bf16.mxu0 0
        %854 = vmatpush1.bf16.msra.mxu0 0
        %855 = vmatprep.subr.bf16.mxu0 0
        %856 = vmatpush1.bf16.msra.mxu0 0
        %857 = vmatprep.subr.bf16.mxu0 0
        %858 = vmatpush1.bf16.msra.mxu0 0
        %859 = vmatprep.subr.bf16.mxu0 0
        %860 = vmatpush1.bf16.msra.mxu0 0
        %861 = vmatprep.subr.bf16.mxu0 0
        %862 = vmatpush1.bf16.msra.mxu0 0
        %863 = vmatprep.subr.bf16.mxu0 0
        %864 = vmatpush1.bf16.msra.mxu0 0
        %865 = vmatprep.subr.bf16.mxu0 0
        %866 = vmatpush1.bf16.msra.mxu0 0
        %867 = vmatprep.subr.bf16.mxu0 0
        %868 = vmatpush1.bf16.msra.mxu0 0
        %869 = vmatprep.subr.bf16.mxu0 0
        %870 = vmatpush1.bf16.msra.mxu0 0
        %871 = vmatprep.subr.bf16.mxu0 0
        %872 = vmatpush1.bf16.msra.mxu0 0
        %873 = vmatprep.mubr.bf16.mxu0 0
        %874 = vmatmul.mubr.bf16.gmra.mrb[0].mxu0 %v839
        %v875 = vpop.f32.mrb[0].mxu0
        %v876 = vadd.f32 0.0, %v875
        %v877 = vpop.f32.mrb[0].mxu0
        %v878 = vpop.f32.mrb[0].mxu0
        %v879 = vpop.f32.mrb[0].mxu0
        %880 = vdwg.mxu0
        %v881 = vadd.f32 %v800, %v876
        %v882 = vld [vmem:[%s801] sm:$0x3]
        %v883 = vld [vmem:[%s801 + $0x2] sm:$0x3]
        %v887 = vunpack.c.l.s4 1966171168
        %v888 = vunpack.c.0.s8 %v887
        %v889 = vlaneseq
        %v890 = vshrl.u32 %v889, 7
        %v891 = vsub.s32 %v888, %v890
        %v892 = vrot.slane %v882, %v891
        %v893 = vcombine.high %v892, %v892
        %v895 = vunpack.c.l.s4 1966171168
        %v896 = vunpack.c.0.s8 %v895
        %v897 = vlaneseq
        %v898 = vshrl.u32 %v897, 7
        %v899 = vsub.s32 %v896, %v898
        %v900 = vrot.slane %v883, %v899
        %v901 = vcombine.high %v900, %v900
        %v903 = vshrl.u32 %v892, 16
        %v905 = vrot.slane %v903, 7
        %v906 = vrot.slane %v905, 1
        %v908 = vshll.u32 %v893, 16
        %v910 = vsel %vm247, %v906, %v908
        %v912 = vshrl.u32 %v900, 16
        %v914 = vrot.slane %v912, 7
        %v915 = vrot.slane %v914, 1
        %v917 = vshll.u32 %v901, 16
        %v919 = vsel %vm247, %v915, %v917
        %s920 = scalar_lea.vmem %s1, 112
        %v921 = vld [vmem:[%s920] sm:$0xf]
        %v922 = vld [vmem:[%s920 + $0x4] sm:$0xf]
        %v923 = vld [vmem:[%s920 + $0x8] sm:$0xf]
        %v924 = vld [vmem:[%s920 + $0xc] sm:$0xf]
        %v925 = vcombine.low %v910, %v919
        %v927 = vunpack.c.l.s4 1966171168
        %v928 = vunpack.c.0.s8 %v927
        %v929 = vlaneseq
        %v930 = vshrl.u32 %v929, 7
        %v931 = vsub.s32 %v928, %v930
        %v932 = vrot.slane %v925, %v931
        %v934 = vunpack.c.l.s4 1966171168
        %v935 = vunpack.c.0.s8 %v934
        %v936 = vlaneseq
        %v937 = vshrl.u32 %v936, 7
        %v938 = vsub.s32 %v935, %v937
        %v939 = vrot.slane %v932, %v938
        %v944 = vunpack.c.l.b16 %v921
        %v945 = vunpack.c.l.b16 %v922
        %v946 = vunpack.c.l.b16 %v923
        %v947 = vunpack.c.l.b16 %v924
        %v948 = vpack.c.b16 %v945, %v944
        %v949 = vpack.c.b16 %v947, %v946
        %v953 = vsel %vm298, %v939, 0
        %955 = vmatprep.subr.bf16.mxu0 0
        %956 = vmatpush1.bf16.msra.mxu0 %v948
        %957 = vmatprep.subr.bf16.mxu0 0
        %958 = vmatpush1.bf16.msra.mxu0 %v949
        %959 = vmatprep.subr.bf16.mxu0 0
        %960 = vmatpush1.bf16.msra.mxu0 0
        %961 = vmatprep.subr.bf16.mxu0 0
        %962 = vmatpush1.bf16.msra.mxu0 0
        %963 = vmatprep.subr.bf16.mxu0 0
        %964 = vmatpush1.bf16.msra.mxu0 0
        %965 = vmatprep.subr.bf16.mxu0 0
        %966 = vmatpush1.bf16.msra.mxu0 0
        %967 = vmatprep.subr.bf16.mxu0 0
        %968 = vmatpush1.bf16.msra.mxu0 0
        %969 = vmatprep.subr.bf16.mxu0 0
        %970 = vmatpush1.bf16.msra.mxu0 0
        %971 = vmatprep.subr.bf16.mxu0 0
        %972 = vmatpush1.bf16.msra.mxu0 0
        %973 = vmatprep.subr.bf16.mxu0 0
        %974 = vmatpush1.bf16.msra.mxu0 0
        %975 = vmatprep.subr.bf16.mxu0 0
        %976 = vmatpush1.bf16.msra.mxu0 0
        %977 = vmatprep.subr.bf16.mxu0 0
        %978 = vmatpush1.bf16.msra.mxu0 0
        %979 = vmatprep.subr.bf16.mxu0 0
        %980 = vmatpush1.bf16.msra.mxu0 0
        %981 = vmatprep.subr.bf16.mxu0 0
        %982 = vmatpush1.bf16.msra.mxu0 0
        %983 = vmatprep.subr.bf16.mxu0 0
        %984 = vmatpush1.bf16.msra.mxu0 0
        %985 = vmatprep.subr.bf16.mxu0 0
        %986 = vmatpush1.bf16.msra.mxu0 0
        %987 = vmatprep.mubr.bf16.mxu0 0
        %988 = vmatmul.mubr.bf16.gmra.mrb[0].mxu0 %v953
        %v989 = vpop.f32.mrb[0].mxu0
        %v990 = vadd.f32 0.0, %v989
        %v991 = vpop.f32.mrb[0].mxu0
        %v992 = vpop.f32.mrb[0].mxu0
        %v993 = vpop.f32.mrb[0].mxu0
        %994 = vdwg.mxu0
        %v995 = vadd.f32 %v881, %v990
        %v996 = vld [vmem:[%s801] sm:$0x2]
        %v997 = vld [vmem:[%s801 + $0x2] sm:$0x2]
        %v1001 = vunpack.c.l.s4 1966171168
        %v1002 = vunpack.c.0.s8 %v1001
        %v1003 = vlaneseq
        %v1004 = vshrl.u32 %v1003, 7
        %v1005 = vsub.s32 %v1002, %v1004
        %v1006 = vrot.slane %v996, %v1005
        %v1007 = vcombine.high %v1006, %v1006
        %v1009 = vunpack.c.l.s4 1966171168
        %v1010 = vunpack.c.0.s8 %v1009
        %v1011 = vlaneseq
        %v1012 = vshrl.u32 %v1011, 7
        %v1013 = vsub.s32 %v1010, %v1012
        %v1014 = vrot.slane %v997, %v1013
        %v1015 = vcombine.high %v1014, %v1014
        %s1016 = scalar_lea.vmem %s1, 128
        %v1017 = vld [vmem:[%s1016] sm:$0xf]
        %v1018 = vld [vmem:[%s1016 + $0x4] sm:$0xf]
        %v1019 = vld [vmem:[%s1016 + $0x8] sm:$0xf]
        %v1020 = vld [vmem:[%s1016 + $0xc] sm:$0xf]
        %v1021 = vcombine.low %v1007, %v1015
        %v1023 = vunpack.c.l.s4 1966171168
        %v1024 = vunpack.c.0.s8 %v1023
        %v1025 = vlaneseq
        %v1026 = vshrl.u32 %v1025, 7
        %v1027 = vsub.s32 %v1024, %v1026
        %v1028 = vrot.slane %v1021, %v1027
        %v1030 = vunpack.c.l.s4 1966171168
        %v1031 = vunpack.c.0.s8 %v1030
        %v1032 = vlaneseq
        %v1033 = vshrl.u32 %v1032, 7
        %v1034 = vsub.s32 %v1031, %v1033
        %v1035 = vrot.slane %v1028, %v1034
        %v1040 = vunpack.c.l.b16 %v1017
        %v1041 = vunpack.c.l.b16 %v1018
        %v1042 = vunpack.c.l.b16 %v1019
        %v1043 = vunpack.c.l.b16 %v1020
        %v1044 = vpack.c.b16 %v1041, %v1040
        %v1045 = vpack.c.b16 %v1043, %v1042
        %v1049 = vsel %vm298, %v1035, 0
        %1051 = vmatprep.subr.bf16.mxu0 0
        %1052 = vmatpush1.bf16.msra.mxu0 %v1044
        %1053 = vmatprep.subr.bf16.mxu0 0
        %1054 = vmatpush1.bf16.msra.mxu0 %v1045
        %1055 = vmatprep.subr.bf16.mxu0 0
        %1056 = vmatpush1.bf16.msra.mxu0 0
        %1057 = vmatprep.subr.bf16.mxu0 0
        %1058 = vmatpush1.bf16.msra.mxu0 0
        %1059 = vmatprep.subr.bf16.mxu0 0
        %1060 = vmatpush1.bf16.msra.mxu0 0
        %1061 = vmatprep.subr.bf16.mxu0 0
        %1062 = vmatpush1.bf16.msra.mxu0 0
        %1063 = vmatprep.subr.bf16.mxu0 0
        %1064 = vmatpush1.bf16.msra.mxu0 0
        %1065 = vmatprep.subr.bf16.mxu0 0
        %1066 = vmatpush1.bf16.msra.mxu0 0
        %1067 = vmatprep.subr.bf16.mxu0 0
        %1068 = vmatpush1.bf16.msra.mxu0 0
        %1069 = vmatprep.subr.bf16.mxu0 0
        %1070 = vmatpush1.bf16.msra.mxu0 0
        %1071 = vmatprep.subr.bf16.mxu0 0
        %1072 = vmatpush1.bf16.msra.mxu0 0
        %1073 = vmatprep.subr.bf16.mxu0 0
        %1074 = vmatpush1.bf16.msra.mxu0 0
        %1075 = vmatprep.subr.bf16.mxu0 0
        %1076 = vmatpush1.bf16.msra.mxu0 0
        %1077 = vmatprep.subr.bf16.mxu0 0
        %1078 = vmatpush1.bf16.msra.mxu0 0
        %1079 = vmatprep.subr.bf16.mxu0 0
        %1080 = vmatpush1.bf16.msra.mxu0 0
        %1081 = vmatprep.subr.bf16.mxu0 0
        %1082 = vmatpush1.bf16.msra.mxu0 0
        %1083 = vmatprep.mubr.bf16.mxu0 0
        %1084 = vmatmul.mubr.bf16.gmra.mrb[0].mxu0 %v1049
        %v1085 = vpop.f32.mrb[0].mxu0
        %v1086 = vadd.f32 0.0, %v1085
        %v1087 = vpop.f32.mrb[0].mxu0
        %v1088 = vpop.f32.mrb[0].mxu0
        %v1089 = vpop.f32.mrb[0].mxu0
        %1090 = vdwg.mxu0
        %v1091 = vadd.f32 %v995, %v1086
        %1092 = vst [vmem:[%s205] sm:$0xf] %v1091
        %v1093 = vld [vmem:[%s510] sm:$0x1]
        %v1094 = vld [vmem:[%s2] sm:$0xf]
        %v1095 = vld [vmem:[%s2 + $0x4] sm:$0xf]
        %v1096 = vld [vmem:[%s2 + $0x8] sm:$0xf]
        %v1097 = vld [vmem:[%s2 + $0xc] sm:$0xf]
        %v1098 = vld [vmem:[%s510] sm:$0x2]
        %s1099 = scalar_lea.vmem %s2, 16
        %v1100 = vld [vmem:[%s1099] sm:$0xf]
        %v1101 = vld [vmem:[%s1099 + $0x4] sm:$0xf]
        %v1102 = vld [vmem:[%s1099 + $0x8] sm:$0xf]
        %v1103 = vld [vmem:[%s1099 + $0xc] sm:$0xf]
        %v1106 = vunpack.c.l.s4 1983009808
        %v1107 = vunpack.c.0.s8 %v1106
        %v1108 = vlaneseq
        %v1109 = vshrl.u32 %v1108, 7
        %v1110 = vsub.s32 %v1107, %v1109
        %v1111 = vrot.slane %v1098, %v1110
        %v1112 = vrot.slane %v1111, 1
        %v1117 = vunpack.c.l.b16 %v1100
        %v1118 = vunpack.c.l.b16 %v1101
        %v1119 = vunpack.c.l.b16 %v1102
        %v1120 = vunpack.c.l.b16 %v1103
        %v1121 = vpack.c.b16 %v1118, %v1117
        %v1122 = vpack.c.b16 %v1120, %v1119
        %v1126 = vsel %vm298, %v1112, 0
        %1128 = vmatprep.subr.bf16.mxu0 0
        %1129 = vmatpush1.bf16.msra.mxu0 %v1121
        %1130 = vmatprep.subr.bf16.mxu0 0
        %1131 = vmatpush1.bf16.msra.mxu0 %v1122
        %1132 = vmatprep.subr.bf16.mxu0 0
        %1133 = vmatpush1.bf16.msra.mxu0 0
        %1134 = vmatprep.subr.bf16.mxu0 0
        %1135 = vmatpush1.bf16.msra.mxu0 0
        %1136 = vmatprep.subr.bf16.mxu0 0
        %1137 = vmatpush1.bf16.msra.mxu0 0
        %1138 = vmatprep.subr.bf16.mxu0 0
        %1139 = vmatpush1.bf16.msra.mxu0 0
        %1140 = vmatprep.subr.bf16.mxu0 0
        %1141 = vmatpush1.bf16.msra.mxu0 0
        %1142 = vmatprep.subr.bf16.mxu0 0
        %1143 = vmatpush1.bf16.msra.mxu0 0
        %1144 = vmatprep.subr.bf16.mxu0 0
        %1145 = vmatpush1.bf16.msra.mxu0 0
        %1146 = vmatprep.subr.bf16.mxu0 0
        %1147 = vmatpush1.bf16.msra.mxu0 0
        %1148 = vmatprep.subr.bf16.mxu0 0
        %1149 = vmatpush1.bf16.msra.mxu0 0
        %1150 = vmatprep.subr.bf16.mxu0 0
        %1151 = vmatpush1.bf16.msra.mxu0 0
        %1152 = vmatprep.subr.bf16.mxu0 0
        %1153 = vmatpush1.bf16.msra.mxu0 0
        %1154 = vmatprep.subr.bf16.mxu0 0
        %1155 = vmatpush1.bf16.msra.mxu0 0
        %1156 = vmatprep.subr.bf16.mxu0 0
        %1157 = vmatpush1.bf16.msra.mxu0 0
        %1158 = vmatprep.subr.bf16.mxu0 0
        %1159 = vmatpush1.bf16.msra.mxu0 0
        %1160 = vmatprep.mubr.bf16.mxu0 0
        %1161 = vmatmul.mubr.bf16.gmra.mrb[0].mxu0 %v1126
        %v1162 = vpop.f32.mrb[0].mxu0
        %v1163 = vadd.f32 0.0, %v1162
        %v1164 = vpop.f32.mrb[0].mxu0
        %v1165 = vpop.f32.mrb[0].mxu0
        %v1166 = vpop.f32.mrb[0].mxu0
        %1167 = vdwg.mxu0
        %v1170 = vunpack.c.l.s4 1983009808
        %v1171 = vunpack.c.0.s8 %v1170
        %v1172 = vlaneseq
        %v1173 = vshrl.u32 %v1172, 7
        %v1174 = vsub.s32 %v1171, %v1173
        %v1175 = vrot.slane %v1093, %v1174
        %v1177 = vshrl.u32 %v1175, 16
        %v1183 = vunpack.c.l.b16 %v1094
        %v1184 = vunpack.c.l.b16 %v1095
        %v1185 = vunpack.c.l.b16 %v1096
        %v1186 = vunpack.c.l.b16 %v1097
        %v1187 = vpack.c.b16 %v1184, %v1183
        %v1188 = vpack.c.b16 %v1186, %v1185
        %v1192 = vsel %vm298, %v1177, 0
        %1194 = vmatprep.subr.bf16.mxu0 0
        %1195 = vmatpush1.bf16.msra.mxu0 %v1187
        %1196 = vmatprep.subr.bf16.mxu0 0
        %1197 = vmatpush1.bf16.msra.mxu0 %v1188
        %1198 = vmatprep.subr.bf16.mxu0 0
        %1199 = vmatpush1.bf16.msra.mxu0 0
        %1200 = vmatprep.subr.bf16.mxu0 0
        %1201 = vmatpush1.bf16.msra.mxu0 0
        %1202 = vmatprep.subr.bf16.mxu0 0
        %1203 = vmatpush1.bf16.msra.mxu0 0
        %1204 = vmatprep.subr.bf16.mxu0 0
        %1205 = vmatpush1.bf16.msra.mxu0 0
        %1206 = vmatprep.subr.bf16.mxu0 0
        %1207 = vmatpush1.bf16.msra.mxu0 0
        %1208 = vmatprep.subr.bf16.mxu0 0
        %1209 = vmatpush1.bf16.msra.mxu0 0
        %1210 = vmatprep.subr.bf16.mxu0 0
        %1211 = vmatpush1.bf16.msra.mxu0 0
        %1212 = vmatprep.subr.bf16.mxu0 0
        %1213 = vmatpush1.bf16.msra.mxu0 0
        %1214 = vmatprep.subr.bf16.mxu0 0
        %1215 = vmatpush1.bf16.msra.mxu0 0
        %1216 = vmatprep.subr.bf16.mxu0 0
        %1217 = vmatpush1.bf16.msra.mxu0 0
        %1218 = vmatprep.subr.bf16.mxu0 0
        %1219 = vmatpush1.bf16.msra.mxu0 0
        %1220 = vmatprep.subr.bf16.mxu0 0
        %1221 = vmatpush1.bf16.msra.mxu0 0
        %1222 = vmatprep.subr.bf16.mxu0 0
        %1223 = vmatpush1.bf16.msra.mxu0 0
        %1224 = vmatprep.subr.bf16.mxu0 0
        %1225 = vmatpush1.bf16.msra.mxu0 0
        %1226 = vmatprep.mubr.bf16.mxu0 0
        %1227 = vmatmul.mubr.bf16.gmra.mrb[0].mxu0 %v1192
        %v1228 = vpop.f32.mrb[0].mxu0
        %v1229 = vadd.f32 %v1163, %v1228
        %v1230 = vpop.f32.mrb[0].mxu0
        %v1231 = vpop.f32.mrb[0].mxu0
        %v1232 = vpop.f32.mrb[0].mxu0
        %1233 = vdwg.mxu0
        %v1234 = vld [vmem:[%s801] sm:$0x1]
        %s1235 = scalar_lea.vmem %s2, 32
        %v1236 = vld [vmem:[%s1235] sm:$0xf]
        %v1237 = vld [vmem:[%s1235 + $0x4] sm:$0xf]
        %v1238 = vld [vmem:[%s1235 + $0x8] sm:$0xf]
        %v1239 = vld [vmem:[%s1235 + $0xc] sm:$0xf]
        %v1242 = vunpack.c.l.s4 1983009808
        %v1243 = vunpack.c.0.s8 %v1242
        %v1244 = vlaneseq
        %v1245 = vshrl.u32 %v1244, 7
        %v1246 = vsub.s32 %v1243, %v1245
        %v1247 = vrot.slane %v1234, %v1246
        %v1249 = vshrl.u32 %v1247, 16
        %v1255 = vunpack.c.l.b16 %v1236
        %v1256 = vunpack.c.l.b16 %v1237
        %v1257 = vunpack.c.l.b16 %v1238
        %v1258 = vunpack.c.l.b16 %v1239
        %v1259 = vpack.c.b16 %v1256, %v1255
        %v1260 = vpack.c.b16 %v1258, %v1257
        %v1264 = vsel %vm298, %v1249, 0
        %1266 = vmatprep.subr.bf16.mxu0 0
        %1267 = vmatpush1.bf16.msra.mxu0 %v1259
        %1268 = vmatprep.subr.bf16.mxu0 0
        %1269 = vmatpush1.bf16.msra.mxu0 %v1260
        %1270 = vmatprep.subr.bf16.mxu0 0
        %1271 = vmatpush1.bf16.msra.mxu0 0
        %1272 = vmatprep.subr.bf16.mxu0 0
        %1273 = vmatpush1.bf16.msra.mxu0 0
        %1274 = vmatprep.subr.bf16.mxu0 0
        %1275 = vmatpush1.bf16.msra.mxu0 0
        %1276 = vmatprep.subr.bf16.mxu0 0
        %1277 = vmatpush1.bf16.msra.mxu0 0
        %1278 = vmatprep.subr.bf16.mxu0 0
        %1279 = vmatpush1.bf16.msra.mxu0 0
        %1280 = vmatprep.subr.bf16.mxu0 0
        %1281 = vmatpush1.bf16.msra.mxu0 0
        %1282 = vmatprep.subr.bf16.mxu0 0
        %1283 = vmatpush1.bf16.msra.mxu0 0
        %1284 = vmatprep.subr.bf16.mxu0 0
        %1285 = vmatpush1.bf16.msra.mxu0 0
        %1286 = vmatprep.subr.bf16.mxu0 0
        %1287 = vmatpush1.bf16.msra.mxu0 0
        %1288 = vmatprep.subr.bf16.mxu0 0
        %1289 = vmatpush1.bf16.msra.mxu0 0
        %1290 = vmatprep.subr.bf16.mxu0 0
        %1291 = vmatpush1.bf16.msra.mxu0 0
        %1292 = vmatprep.subr.bf16.mxu0 0
        %1293 = vmatpush1.bf16.msra.mxu0 0
        %1294 = vmatprep.subr.bf16.mxu0 0
        %1295 = vmatpush1.bf16.msra.mxu0 0
        %1296 = vmatprep.subr.bf16.mxu0 0
        %1297 = vmatpush1.bf16.msra.mxu0 0
        %1298 = vmatprep.mubr.bf16.mxu0 0
        %1299 = vmatmul.mubr.bf16.gmra.mrb[0].mxu0 %v1264
        %v1300 = vpop.f32.mrb[0].mxu0
        %v1301 = vadd.f32 0.0, %v1300
        %v1302 = vpop.f32.mrb[0].mxu0
        %v1303 = vpop.f32.mrb[0].mxu0
        %v1304 = vpop.f32.mrb[0].mxu0
        %1305 = vdwg.mxu0
        %v1306 = vadd.f32 %v1229, %v1301
        %v1307 = vld [vmem:[%s801] sm:$0x2]
        %s1308 = scalar_lea.vmem %s2, 48
        %v1309 = vld [vmem:[%s1308] sm:$0xf]
        %v1310 = vld [vmem:[%s1308 + $0x4] sm:$0xf]
        %v1311 = vld [vmem:[%s1308 + $0x8] sm:$0xf]
        %v1312 = vld [vmem:[%s1308 + $0xc] sm:$0xf]
        %v1315 = vunpack.c.l.s4 1983009808
        %v1316 = vunpack.c.0.s8 %v1315
        %v1317 = vlaneseq
        %v1318 = vshrl.u32 %v1317, 7
        %v1319 = vsub.s32 %v1316, %v1318
        %v1320 = vrot.slane %v1307, %v1319
        %v1321 = vrot.slane %v1320, 1
        %v1326 = vunpack.c.l.b16 %v1309
        %v1327 = vunpack.c.l.b16 %v1310
        %v1328 = vunpack.c.l.b16 %v1311
        %v1329 = vunpack.c.l.b16 %v1312
        %v1330 = vpack.c.b16 %v1327, %v1326
        %v1331 = vpack.c.b16 %v1329, %v1328
        %v1335 = vsel %vm298, %v1321, 0
        %1337 = vmatprep.subr.bf16.mxu0 0
        %1338 = vmatpush1.bf16.msra.mxu0 %v1330
        %1339 = vmatprep.subr.bf16.mxu0 0
        %1340 = vmatpush1.bf16.msra.mxu0 %v1331
        %1341 = vmatprep.subr.bf16.mxu0 0
        %1342 = vmatpush1.bf16.msra.mxu0 0
        %1343 = vmatprep.subr.bf16.mxu0 0
        %1344 = vmatpush1.bf16.msra.mxu0 0
        %1345 = vmatprep.subr.bf16.mxu0 0
        %1346 = vmatpush1.bf16.msra.mxu0 0
        %1347 = vmatprep.subr.bf16.mxu0 0
        %1348 = vmatpush1.bf16.msra.mxu0 0
        %1349 = vmatprep.subr.bf16.mxu0 0
        %1350 = vmatpush1.bf16.msra.mxu0 0
        %1351 = vmatprep.subr.bf16.mxu0 0
        %1352 = vmatpush1.bf16.msra.mxu0 0
        %1353 = vmatprep.subr.bf16.mxu0 0
        %1354 = vmatpush1.bf16.msra.mxu0 0
        %1355 = vmatprep.subr.bf16.mxu0 0
        %1356 = vmatpush1.bf16.msra.mxu0 0
        %1357 = vmatprep.subr.bf16.mxu0 0
        %1358 = vmatpush1.bf16.msra.mxu0 0
        %1359 = vmatprep.subr.bf16.mxu0 0
        %1360 = vmatpush1.bf16.msra.mxu0 0
        %1361 = vmatprep.subr.bf16.mxu0 0
        %1362 = vmatpush1.bf16.msra.mxu0 0
        %1363 = vmatprep.subr.bf16.mxu0 0
        %1364 = vmatpush1.bf16.msra.mxu0 0
        %1365 = vmatprep.subr.bf16.mxu0 0
        %1366 = vmatpush1.bf16.msra.mxu0 0
        %1367 = vmatprep.subr.bf16.mxu0 0
        %1368 = vmatpush1.bf16.msra.mxu0 0
        %1369 = vmatprep.mubr.bf16.mxu0 0
        %1370 = vmatmul.mubr.bf16.gmra.mrb[0].mxu0 %v1335
        %v1371 = vpop.f32.mrb[0].mxu0
        %v1372 = vadd.f32 0.0, %v1371
        %v1373 = vpop.f32.mrb[0].mxu0
        %v1374 = vpop.f32.mrb[0].mxu0
        %v1375 = vpop.f32.mrb[0].mxu0
        %1376 = vdwg.mxu0
        %v1377 = vadd.f32 %v1306, %v1372
        %1378 = vst [vmem:[%s196] sm:$0x1] %v1377
        %p1379 = scmp.lt.s32.totalorder %s19, 1
        %s1380 = scalar_select %p1379, %s19, 1
        %s1381 = smul.addr %s1380, 4
        %s1382 = scalar_lea.vmem %s3, %s1381
        %s1383 = sand.u32 %s121, 1
        %s1384 = scalar_lea.sflag [#allocation3], %s1383
        %s1385 = sand.u32 %s121, 1
        %s1386 = scalar_lea.vmem [#allocation2], %s1385
        // Predicated region
        $region33: #{_lambda_.7} parent=31 // pred_check
          %p1387 = pneg %p105
        $region34: #{_lambda_.7} parent=31 // pred_check_branch
          %1389 = sbr.rel (%p1387) target = $region36
        $region35: #{_lambda_.7} parent=31 // pred_region
          _
        $region36: #{_lambda_.7} parent=31 // pred_fallthru
          _
        // Predicated region
        $region37: #{_lambda_.7} parent=31 // pred_check
          %p1390 = pneg %p131
        $region38: #{_lambda_.7} parent=31 // pred_check_branch
          %1392 = sbr.rel (%p1390) target = $region40
        $region39: #{_lambda_.7} parent=31 // pred_region
          %s1394 = ssub.s32 16, 16
          %1395 = vsyncadd %s1384, %s1394
          %s1396 = smul.addr %s19, 16
          %s1397 = scalar_lea.hbm %s4, %s1396
          %s1399 = sshll.u32 %s1386, 4
          %s1400 = int_to_ptr.vmem [resolvable:$true] %s1399
          %1402 = dma.vmem_to_hbm [thread:$0]  %s1400, 16, %s1397, %s1384
        $region40: #{_lambda_.7} parent=31 // pred_fallthru
          _
      $region32: #{_lambda_.7} parent=5 // pred_fallthru
        _
      %p1403 = scmp.le.s32.totalorder 2, %s14
      // Predicated region
      $region41: #{_lambda_.7} parent=5 // pred_check
        %p1404 = pneg %p1403
      $region42: #{_lambda_.7} parent=5 // pred_check_branch
        %1406 = sbr.rel (%p1404) target = $region44
      $region43: #{_lambda_.7} parent=5 // pred_region
        %s1407 = ssub.s32 %s14, 2
        // Predicated region
        $region45: #{_lambda_.7} parent=43 // pred_check
          %p1408 = pneg %p111
        $region46: #{_lambda_.7} parent=43 // pred_check_branch
          %1410 = sbr.rel (%p1408) target = $region48
        $region47: #{_lambda_.7} parent=43 // pred_region
          %p1411 = scmp.lt.s32.totalorder %s20, 1
          %s1412 = scalar_select %p1411, %s20, 1
          %s1413 = smul.addr %s1412, 4
          %s1414 = scalar_lea.vmem %s3, %s1413
        $region48: #{_lambda_.7} parent=43 // pred_fallthru
          _
        // Predicated region
        $region49: #{_lambda_.7} parent=43 // pred_check
          %p1415 = pneg %p137
        $region50: #{_lambda_.7} parent=43 // pred_check_branch
          %1417 = sbr.rel (%p1415) target = $region52
        $region51: #{_lambda_.7} parent=43 // pred_region
          %s1418 = sand.u32 %s122, 1
          %s1419 = scalar_lea.sflag [#allocation3], %s1418
          %s1420 = sand.u32 %s122, 1
          %s1421 = scalar_lea.vmem [#allocation2], %s1420
          %1422 = dma.done %s1419, 16
        $region52: #{_lambda_.7} parent=43 // pred_fallthru
          _
      $region44: #{_lambda_.7} parent=5 // pred_fallthru
        _
    $region6: #{_lambda_.7} parent=1 // loop_footer
      %s18 = sadd.s32 1, %s14
    $region7: #{_lambda_.7} parent=1 // loop_footer_branch
      %13 = sbr.rel target = $region3
    $region8: #{_lambda_.7} parent=1 // loop_exit
      _
    %1423 = vsyncpa [#allocation3], 1
    %s1424 = scalar_lea.sflag [#allocation3], 1
    %1425 = vsyncpa %s1424, 1

</llo_original>
